<compile_context>
chip_gen: v7x
topology: tpu7x:2x2x1
jax: 0.10.0
libtpu: 0.0.40
codegen_flags: <defaults>
</compile_context>

<pallas_src>
import functools

import jax
import jax.numpy as jnp
from jax import lax
from jax.experimental import pallas as pl
from jax.experimental.pallas import tpu as pltpu


# ----------------------------------------------------------------------------
# Tiling helpers
# ----------------------------------------------------------------------------
# Conservative streaming budget for pipeline buffers: fits v5e's 16 MiB scoped
# VMEM default and v7x's 64 MiB physical VMEM with plenty of headroom.
_VMEM_STREAM_BUDGET = 8 * 1024 * 1024


def _round_up(x, m):
    return ((x + m - 1) // m) * m


def _pick_tile_m(m, stream_bytes_per_row, fixed_bytes, *, cap=1024,
                 budget=_VMEM_STREAM_BUDGET):
    """Largest row tile (multiple of 16, <= cap) whose double-buffered pipeline
    footprint (2 bufs per streamed operand + resident weights) fits the budget."""
    tm = min(cap, _round_up(m, 16))
    while tm > 16 and fixed_bytes + 2 * tm * stream_bytes_per_row > budget:
        tm = max(16, _round_up(tm // 2, 16))
    return tm


def _pad_rows(x, rows):
    if rows == x.shape[0]:
        return x
    return jnp.pad(x, ((0, rows - x.shape[0]), (0, 0)))


# ----------------------------------------------------------------------------
# Pallas kernels
# ----------------------------------------------------------------------------
def _conv_pool_relu_kernel(p00_ref, p01_ref, p10_ref, p11_ref, w_ref, b_ref,
                           o_ref):
    """Fused 3x3 conv (4 pooled-tap matmuls) + 2x2 maxpool + bias + ReLU.

    Everything is a 2-D slab: bf16 operands, f32 MXU accumulation, pooled
    output written once (no full-resolution conv output ever hits HBM)."""
    w = w_ref[...]
    acc = jnp.dot(p00_ref[...], w, preferred_element_type=jnp.float32)
    acc = jnp.maximum(acc, jnp.dot(p01_ref[...], w,
                                   preferred_element_type=jnp.float32))
    acc = jnp.maximum(acc, jnp.dot(p10_ref[...], w,
                                   preferred_element_type=jnp.float32))
    acc = jnp.maximum(acc, jnp.dot(p11_ref[...], w,
                                   preferred_element_type=jnp.float32))
    # Per-channel bias commutes with max; relu∘max == max∘relu -> exact.
    o_ref[...] = jnp.maximum(acc + b_ref[...], 0.0).astype(o_ref.dtype)


def _linear_kernel(x_ref, w_ref, b_ref, o_ref, *, relu):
    acc = jnp.dot(x_ref[...], w_ref[...], preferred_element_type=jnp.float32)
    acc = acc + b_ref[...]
    if relu:
        acc = jnp.maximum(acc, 0.0)
    o_ref[...] = acc.astype(o_ref.dtype)


# ----------------------------------------------------------------------------
# Fused conv3x3(same) + maxpool(2) + relu layer
# ----------------------------------------------------------------------------
def _pool_tap_patches(xpad, dy, dx, ho, wo):
    """Patch matrix for pooling tap (dy, dx): rows = pooled output positions,
    cols = the 3x3xCin receptive field in (kh, kw, cin) order (bf16)."""
    b, _, _, cin = xpad.shape
    pieces = []
    for kh in range(3):
        for kw in range(3):
            h0, w0 = dy + kh, dx + kw
            t = lax.slice(
                xpad,
                (0, h0, w0, 0),
                (b, h0 + 2 * (ho - 1) + 1, w0 + 2 * (wo - 1) + 1, cin),
                (1, 2, 2, 1))                       # (B, Ho, Wo, Cin)
            pieces.append(t)
    p = jnp.concatenate(pieces, axis=-1)            # (B, Ho, Wo, 9*Cin)
    return p.reshape(b * ho * wo, 9 * cin)


def conv3x3_pool_relu(x_nhwc, w_mat, b, *, out_dtype=jnp.bfloat16):
    """relu(max_pool2d(conv3x3_same(x), 2)) as a single Pallas kernel.

    x:(B,H,W,Cin)   w_mat:(9*Cin,Cout) bf16, K ordered (kh,kw,cin)   b:(Cout,)
    Returns (B, H//2, W//2, Cout) in `out_dtype`."""
    B, H, W, Cin = x_nhwc.shape
    K, Cout = w_mat.shape
    assert K == 9 * Cin
    Ho, Wo = H // 2, W // 2
    M = B * Ho * Wo

    xpad = jnp.pad(x_nhwc.astype(jnp.bfloat16),
                   ((0, 0), (1, 1), (1, 1), (0, 0)))
    taps = [_pool_tap_patches(xpad, dy, dx, Ho, Wo)
            for dy in (0, 1) for dx in (0, 1)]

    out_isz = jnp.dtype(out_dtype).itemsize
    stream_row = 4 * K * 2 + Cout * out_isz          # 4 bf16 patch rows + out row
    fixed = 2 * K * Cout * 2 + Cout * 4              # resident weights + bias
    tm = _pick_tile_m(M, stream_row, fixed)
    Mp = _round_up(M, tm)
    taps = [_pad_rows(t, Mp) for t in taps]

    out = pl.pallas_call(
        _conv_pool_relu_kernel,
        out_shape=jax.ShapeDtypeStruct((Mp, Cout), out_dtype),
        grid=(Mp // tm,),
        in_specs=[pl.BlockSpec((tm, K), lambda i: (i, 0)) for _ in range(4)]
        + [pl.BlockSpec((K, Cout), lambda i: (0, 0)),
           pl.BlockSpec((1, Cout), lambda i: (0, 0))],
        out_specs=pl.BlockSpec((tm, Cout), lambda i: (i, 0)),
        compiler_params=pltpu.CompilerParams(
            dimension_semantics=("parallel",)),
    )(*taps, w_mat, b.reshape(1, Cout).astype(jnp.float32))
    return out[:M].reshape(B, Ho, Wo, Cout)


# ----------------------------------------------------------------------------
# Fully-connected layer (tiled matmul + bias [+ relu])
# ----------------------------------------------------------------------------
def linear(x, w_mat, b, *, relu, out_dtype):
    """y = relu_opt(x @ w + b).  x:(M,K)  w:(K,N) bf16  b:(N,)."""
    M, K = x.shape
    Kw, N = w_mat.shape
    assert K == Kw
    x = x.astype(jnp.bfloat16)

    out_isz = jnp.dtype(out_dtype).itemsize
    stream_row = K * 2 + N * out_isz
    fixed = 2 * K * N * 2 + N * 4
    tm = _pick_tile_m(M, stream_row, fixed)
    Mp = _round_up(M, tm)
    xp = _pad_rows(x, Mp)

    kernel = functools.partial(_linear_kernel, relu=relu)
    out = pl.pallas_call(
        kernel,
        out_shape=jax.ShapeDtypeStruct((Mp, N), out_dtype),
        grid=(Mp // tm,),
        in_specs=[pl.BlockSpec((tm, K), lambda i: (i, 0)),
                  pl.BlockSpec((K, N), lambda i: (0, 0)),
                  pl.BlockSpec((1, N), lambda i: (0, 0))],
        out_specs=pl.BlockSpec((tm, N), lambda i: (i, 0)),
        compiler_params=pltpu.CompilerParams(
            dimension_semantics=("parallel",)),
    )(xp, w_mat, b.reshape(1, N).astype(jnp.float32))
    return out[:M]


# ----------------------------------------------------------------------------
# Params
# ----------------------------------------------------------------------------
def init_params(key):
    ks = jax.random.split(key, 8)
    s = 0.05
    return {
        "conv1_w": jax.random.normal(ks[0], (32, 1, 3, 3), jnp.float32) * s,
        "conv1_b": jax.random.normal(ks[1], (32,), jnp.float32) * s,
        "conv2_w": jax.random.normal(ks[2], (64, 32, 3, 3), jnp.float32) * s,
        "conv2_b": jax.random.normal(ks[3], (64,), jnp.float32) * s,
        "fc1_w": jax.random.normal(ks[4], (128, 64 * 7 * 7), jnp.float32) * s,
        "fc1_b": jax.random.normal(ks[5], (128,), jnp.float32) * s,
        "fc2_w": jax.random.normal(ks[6], (10, 128), jnp.float32) * s,
        "fc2_b": jax.random.normal(ks[7], (10,), jnp.float32) * s,
    }


def prepare_params(p):
    """One-time weight layout conversion (outside jit):
      * conv weights (Cout,Cin,3,3) -> (9*Cin, Cout) with K ordered (kh,kw,cin), bf16
      * fc1 weight K-axis permuted from torch's (C,7,7) flatten order to the
        NHWC (7,7,C) order produced by our conv kernel, pre-transposed to (K,N), bf16
      * fc2 weight pre-transposed to (K,N), bf16; biases stay f32."""
    def conv_w(w):
        cout, cin = w.shape[0], w.shape[1]
        return jnp.transpose(w, (2, 3, 1, 0)).reshape(9 * cin, cout).astype(jnp.bfloat16)

    fc1 = (p["fc1_w"].reshape(128, 64, 7, 7)
           .transpose(0, 2, 3, 1).reshape(128, 64 * 7 * 7))
    return {
        "conv1_w": conv_w(p["conv1_w"]), "conv1_b": p["conv1_b"],
        "conv2_w": conv_w(p["conv2_w"]), "conv2_b": p["conv2_b"],
        "fc1_w": jnp.transpose(fc1).astype(jnp.bfloat16), "fc1_b": p["fc1_b"],
        "fc2_w": jnp.transpose(p["fc2_w"]).astype(jnp.bfloat16), "fc2_b": p["fc2_b"],
    }


# ----------------------------------------------------------------------------
# Full forward
# ----------------------------------------------------------------------------
@jax.jit
def cnn_forward(params, x_nchw):
    # NCHW (PyTorch) -> NHWC.  With Cin=1 this transpose is layout-free.
    x = jnp.transpose(x_nchw, (0, 2, 3, 1)).astype(jnp.float32)       # (B,28,28,1)

    y = conv3x3_pool_relu(x, params["conv1_w"], params["conv1_b"])    # (B,14,14,32)
    y = conv3x3_pool_relu(y, params["conv2_w"], params["conv2_b"])    # (B,7,7,64)

    # NHWC flatten; fc1_w was pre-permuted to match -> no activation transpose.
    B = y.shape[0]
    flat = y.reshape(B, 64 * 7 * 7)                                   # (B,3136)

    h = linear(flat, params["fc1_w"], params["fc1_b"], relu=True,
               out_dtype=jnp.bfloat16)                                # (B,128)
    return linear(h, params["fc2_w"], params["fc2_b"], relu=False,
                  out_dtype=jnp.float32)                              # (B,10)


if __name__ == "__main__":
    key = jax.random.PRNGKey(0)
    pkey, xkey = jax.random.split(key)
    params = prepare_params(init_params(pkey))
    # fc1 expects 64*7*7 features -> 28x28 spatial input (MNIST-shaped).
    x = jax.random.normal(xkey, (2, 1, 28, 28), jnp.float32)
    logits = cnn_forward(params, x)
    jax.block_until_ready(logits)
    assert logits.shape == (2, 10) and logits.dtype == jnp.float32
    print("KERNEL_OK")
</pallas_src>

<mosaic_0001>
module attributes {stable_mosaic.version = 11 : i64} {
  func.func @_conv_pool_relu_kernel(%arg0: i32, %arg1: memref<400x9xbf16, #tpu.memory_space<vmem>>, %arg2: memref<400x9xbf16, #tpu.memory_space<vmem>>, %arg3: memref<400x9xbf16, #tpu.memory_space<vmem>>, %arg4: memref<400x9xbf16, #tpu.memory_space<vmem>>, %arg5: memref<9x32xbf16, #tpu.memory_space<vmem>>, %arg6: memref<1x32xf32, #tpu.memory_space<vmem>>, %arg7: memref<400x32xbf16, #tpu.memory_space<vmem>>) attributes {dimension_semantics = [#tpu.dimension_semantics<parallel>], iteration_bounds = array<i64: 1>, scalar_prefetch = 0 : i64, scratch_operands = 0 : i64, tpu.core_type = #tpu.core_type<tc>, window_params = [{transform_indices = @transform_0, window_bounds = array<i64: 400, 9>}, {transform_indices = @transform_1, window_bounds = array<i64: 400, 9>}, {transform_indices = @transform_2, window_bounds = array<i64: 400, 9>}, {transform_indices = @transform_3, window_bounds = array<i64: 400, 9>}, {pipeline_mode = #tpu.pipeline_mode<synchronous>, transform_indices = @transform_4, window_bounds = array<i64: 9, 32>}, {pipeline_mode = #tpu.pipeline_mode<synchronous>, transform_indices = @transform_5, window_bounds = array<i64: 1, 32>}, {transform_indices = @transform_6, window_bounds = array<i64: 400, 32>}]} {
    %c0 = arith.constant 0 : index
    %c0_0 = arith.constant 0 : index
    %0 = vector.load %arg5[%c0, %c0_0] : memref<9x32xbf16, #tpu.memory_space<vmem>>, vector<9x32xbf16>
    %c0_1 = arith.constant 0 : index
    %c0_2 = arith.constant 0 : index
    %1 = vector.load %arg1[%c0_1, %c0_2] : memref<400x9xbf16, #tpu.memory_space<vmem>>, vector<400x9xbf16>
    %cst = arith.constant dense<0.000000e+00> : vector<400x32xf32>
    %2 = tpu.matmul %1, %0, %cst {dimension_numbers = #tpu.dot_dimension_numbers<[1], [0], [0], [1], [0, 0, 1, 1], [], []>} : vector<400x9xbf16>, vector<9x32xbf16>, vector<400x32xf32> -> vector<400x32xf32>
    %c0_3 = arith.constant 0 : index
    %c0_4 = arith.constant 0 : index
    %3 = vector.load %arg2[%c0_3, %c0_4] : memref<400x9xbf16, #tpu.memory_space<vmem>>, vector<400x9xbf16>
    %cst_5 = arith.constant dense<0.000000e+00> : vector<400x32xf32>
    %4 = tpu.matmul %3, %0, %cst_5 {dimension_numbers = #tpu.dot_dimension_numbers<[1], [0], [0], [1], [0, 0, 1, 1], [], []>} : vector<400x9xbf16>, vector<9x32xbf16>, vector<400x32xf32> -> vector<400x32xf32>
    %5 = arith.maximumf %2, %4 : vector<400x32xf32>
    %c0_6 = arith.constant 0 : index
    %c0_7 = arith.constant 0 : index
    %6 = vector.load %arg3[%c0_6, %c0_7] : memref<400x9xbf16, #tpu.memory_space<vmem>>, vector<400x9xbf16>
    %cst_8 = arith.constant dense<0.000000e+00> : vector<400x32xf32>
    %7 = tpu.matmul %6, %0, %cst_8 {dimension_numbers = #tpu.dot_dimension_numbers<[1], [0], [0], [1], [0, 0, 1, 1], [], []>} : vector<400x9xbf16>, vector<9x32xbf16>, vector<400x32xf32> -> vector<400x32xf32>
    %8 = arith.maximumf %5, %7 : vector<400x32xf32>
    %c0_9 = arith.constant 0 : index
    %c0_10 = arith.constant 0 : index
    %9 = vector.load %arg4[%c0_9, %c0_10] : memref<400x9xbf16, #tpu.memory_space<vmem>>, vector<400x9xbf16>
    %cst_11 = arith.constant dense<0.000000e+00> : vector<400x32xf32>
    %10 = tpu.matmul %9, %0, %cst_11 {dimension_numbers = #tpu.dot_dimension_numbers<[1], [0], [0], [1], [0, 0, 1, 1], [], []>} : vector<400x9xbf16>, vector<9x32xbf16>, vector<400x32xf32> -> vector<400x32xf32>
    %11 = arith.maximumf %8, %10 : vector<400x32xf32>
    %c0_12 = arith.constant 0 : index
    %c0_13 = arith.constant 0 : index
    %12 = vector.load %arg6[%c0_12, %c0_13] : memref<1x32xf32, #tpu.memory_space<vmem>>, vector<1x32xf32>
    %13 = vector.broadcast %12 : vector<1x32xf32> to vector<400x32xf32>
    %14 = arith.addf %11, %13 : vector<400x32xf32>
    %cst_14 = arith.constant 0.000000e+00 : f32
    %15 = vector.broadcast %cst_14 : f32 to vector<400x32xf32>
    %16 = arith.maximumf %14, %15 : vector<400x32xf32>
    %17 = arith.truncf %16 : vector<400x32xf32> to vector<400x32xbf16>
    %c0_15 = arith.constant 0 : index
    %c0_16 = arith.constant 0 : index
    %18 = vector.load %arg7[%c0_15, %c0_16] : memref<400x32xbf16, #tpu.memory_space<vmem>>, vector<400x32xbf16>
    tpu.vector_store %arg7[%c0_15, %c0_16], %17 {strides = array<i32>} : memref<400x32xbf16, #tpu.memory_space<vmem>>, vector<400x32xbf16>,
    return
  }
  func.func @transform_0(%arg0: i32) -> (i32, i32) {
    %c0_i32 = arith.constant 0 : i32
    %c0_i32_0 = arith.constant 0 : i32
    return %arg0, %c0_i32 : i32, i32
  }
  func.func @transform_1(%arg0: i32) -> (i32, i32) {
    %c0_i32 = arith.constant 0 : i32
    %c0_i32_0 = arith.constant 0 : i32
    return %arg0, %c0_i32 : i32, i32
  }
  func.func @transform_2(%arg0: i32) -> (i32, i32) {
    %c0_i32 = arith.constant 0 : i32
    %c0_i32_0 = arith.constant 0 : i32
    return %arg0, %c0_i32 : i32, i32
  }
  func.func @transform_3(%arg0: i32) -> (i32, i32) {
    %c0_i32 = arith.constant 0 : i32
    %c0_i32_0 = arith.constant 0 : i32
    return %arg0, %c0_i32 : i32, i32
  }
  func.func @transform_4(%arg0: i32) -> (i32, i32) {
    %c0_i32 = arith.constant 0 : i32
    %c0_i32_0 = arith.constant 0 : i32
    %c0_i32_1 = arith.constant 0 : i32
    return %c0_i32, %c0_i32_0 : i32, i32
  }
  func.func @transform_5(%arg0: i32) -> (i32, i32) {
    %c0_i32 = arith.constant 0 : i32
    %c0_i32_0 = arith.constant 0 : i32
    %c0_i32_1 = arith.constant 0 : i32
    return %c0_i32, %c0_i32_0 : i32, i32
  }
  func.func @transform_6(%arg0: i32) -> (i32, i32) {
    %c0_i32 = arith.constant 0 : i32
    %c0_i32_0 = arith.constant 0 : i32
    return %arg0, %c0_i32 : i32, i32
  }
}

module attributes {stable_mosaic.version = 11 : i64} {
  func.func @_conv_pool_relu_kernel(%arg0: i32, %arg1: memref<112x288xbf16, #tpu.memory_space<vmem>>, %arg2: memref<112x288xbf16, #tpu.memory_space<vmem>>, %arg3: memref<112x288xbf16, #tpu.memory_space<vmem>>, %arg4: memref<112x288xbf16, #tpu.memory_space<vmem>>, %arg5: memref<288x64xbf16, #tpu.memory_space<vmem>>, %arg6: memref<1x64xf32, #tpu.memory_space<vmem>>, %arg7: memref<112x64xbf16, #tpu.memory_space<vmem>>) attributes {dimension_semantics = [#tpu.dimension_semantics<parallel>], iteration_bounds = array<i64: 1>, scalar_prefetch = 0 : i64, scratch_operands = 0 : i64, tpu.core_type = #tpu.core_type<tc>, window_params = [{transform_indices = @transform_0, window_bounds = array<i64: 112, 288>}, {transform_indices = @transform_1, window_bounds = array<i64: 112, 288>}, {transform_indices = @transform_2, window_bounds = array<i64: 112, 288>}, {transform_indices = @transform_3, window_bounds = array<i64: 112, 288>}, {pipeline_mode = #tpu.pipeline_mode<synchronous>, transform_indices = @transform_4, window_bounds = array<i64: 288, 64>}, {pipeline_mode = #tpu.pipeline_mode<synchronous>, transform_indices = @transform_5, window_bounds = array<i64: 1, 64>}, {transform_indices = @transform_6, window_bounds = array<i64: 112, 64>}]} {
    %c0 = arith.constant 0 : index
    %c0_0 = arith.constant 0 : index
    %0 = vector.load %arg5[%c0, %c0_0] : memref<288x64xbf16, #tpu.memory_space<vmem>>, vector<288x64xbf16>
    %c0_1 = arith.constant 0 : index
    %c0_2 = arith.constant 0 : index
    %1 = vector.load %arg1[%c0_1, %c0_2] : memref<112x288xbf16, #tpu.memory_space<vmem>>, vector<112x288xbf16>
    %cst = arith.constant dense<0.000000e+00> : vector<112x64xf32>
    %2 = tpu.matmul %1, %0, %cst {dimension_numbers = #tpu.dot_dimension_numbers<[1], [0], [0], [1], [0, 0, 1, 1], [], []>} : vector<112x288xbf16>, vector<288x64xbf16>, vector<112x64xf32> -> vector<112x64xf32>
    %c0_3 = arith.constant 0 : index
    %c0_4 = arith.constant 0 : index
    %3 = vector.load %arg2[%c0_3, %c0_4] : memref<112x288xbf16, #tpu.memory_space<vmem>>, vector<112x288xbf16>
    %cst_5 = arith.constant dense<0.000000e+00> : vector<112x64xf32>
    %4 = tpu.matmul %3, %0, %cst_5 {dimension_numbers = #tpu.dot_dimension_numbers<[1], [0], [0], [1], [0, 0, 1, 1], [], []>} : vector<112x288xbf16>, vector<288x64xbf16>, vector<112x64xf32> -> vector<112x64xf32>
    %5 = arith.maximumf %2, %4 : vector<112x64xf32>
    %c0_6 = arith.constant 0 : index
    %c0_7 = arith.constant 0 : index
    %6 = vector.load %arg3[%c0_6, %c0_7] : memref<112x288xbf16, #tpu.memory_space<vmem>>, vector<112x288xbf16>
    %cst_8 = arith.constant dense<0.000000e+00> : vector<112x64xf32>
    %7 = tpu.matmul %6, %0, %cst_8 {dimension_numbers = #tpu.dot_dimension_numbers<[1], [0], [0], [1], [0, 0, 1, 1], [], []>} : vector<112x288xbf16>, vector<288x64xbf16>, vector<112x64xf32> -> vector<112x64xf32>
    %8 = arith.maximumf %5, %7 : vector<112x64xf32>
    %c0_9 = arith.constant 0 : index
    %c0_10 = arith.constant 0 : index
    %9 = vector.load %arg4[%c0_9, %c0_10] : memref<112x288xbf16, #tpu.memory_space<vmem>>, vector<112x288xbf16>
    %cst_11 = arith.constant dense<0.000000e+00> : vector<112x64xf32>
    %10 = tpu.matmul %9, %0, %cst_11 {dimension_numbers = #tpu.dot_dimension_numbers<[1], [0], [0], [1], [0, 0, 1, 1], [], []>} : vector<112x288xbf16>, vector<288x64xbf16>, vector<112x64xf32> -> vector<112x64xf32>
    %11 = arith.maximumf %8, %10 : vector<112x64xf32>
    %c0_12 = arith.constant 0 : index
    %c0_13 = arith.constant 0 : index
    %12 = vector.load %arg6[%c0_12, %c0_13] : memref<1x64xf32, #tpu.memory_space<vmem>>, vector<1x64xf32>
    %13 = vector.broadcast %12 : vector<1x64xf32> to vector<112x64xf32>
    %14 = arith.addf %11, %13 : vector<112x64xf32>
    %cst_14 = arith.constant 0.000000e+00 : f32
    %15 = vector.broadcast %cst_14 : f32 to vector<112x64xf32>
    %16 = arith.maximumf %14, %15 : vector<112x64xf32>
    %17 = arith.truncf %16 : vector<112x64xf32> to vector<112x64xbf16>
    %c0_15 = arith.constant 0 : index
    %c0_16 = arith.constant 0 : index
    %18 = vector.load %arg7[%c0_15, %c0_16] : memref<112x64xbf16, #tpu.memory_space<vmem>>, vector<112x64xbf16>
    tpu.vector_store %arg7[%c0_15, %c0_16], %17 {strides = array<i32>} : memref<112x64xbf16, #tpu.memory_space<vmem>>, vector<112x64xbf16>,
    return
  }
  func.func @transform_0(%arg0: i32) -> (i32, i32) {
    %c0_i32 = arith.constant 0 : i32
    %c0_i32_0 = arith.constant 0 : i32
    return %arg0, %c0_i32 : i32, i32
  }
  func.func @transform_1(%arg0: i32) -> (i32, i32) {
    %c0_i32 = arith.constant 0 : i32
    %c0_i32_0 = arith.constant 0 : i32
    return %arg0, %c0_i32 : i32, i32
  }
  func.func @transform_2(%arg0: i32) -> (i32, i32) {
    %c0_i32 = arith.constant 0 : i32
    %c0_i32_0 = arith.constant 0 : i32
    return %arg0, %c0_i32 : i32, i32
  }
  func.func @transform_3(%arg0: i32) -> (i32, i32) {
    %c0_i32 = arith.constant 0 : i32
    %c0_i32_0 = arith.constant 0 : i32
    return %arg0, %c0_i32 : i32, i32
  }
  func.func @transform_4(%arg0: i32) -> (i32, i32) {
    %c0_i32 = arith.constant 0 : i32
    %c0_i32_0 = arith.constant 0 : i32
    %c0_i32_1 = arith.constant 0 : i32
    return %c0_i32, %c0_i32_0 : i32, i32
  }
  func.func @transform_5(%arg0: i32) -> (i32, i32) {
    %c0_i32 = arith.constant 0 : i32
    %c0_i32_0 = arith.constant 0 : i32
    %c0_i32_1 = arith.constant 0 : i32
    return %c0_i32, %c0_i32_0 : i32, i32
  }
  func.func @transform_6(%arg0: i32) -> (i32, i32) {
    %c0_i32 = arith.constant 0 : i32
    %c0_i32_0 = arith.constant 0 : i32
    return %arg0, %c0_i32 : i32, i32
  }
}

module attributes {stable_mosaic.version = 11 : i64} {
  func.func @_linear_kernel(%arg0: i32, %arg1: memref<16x3136xbf16, #tpu.memory_space<vmem>>, %arg2: memref<3136x128xbf16, #tpu.memory_space<vmem>>, %arg3: memref<1x128xf32, #tpu.memory_space<vmem>>, %arg4: memref<16x128xbf16, #tpu.memory_space<vmem>>) attributes {dimension_semantics = [#tpu.dimension_semantics<parallel>], iteration_bounds = array<i64: 1>, scalar_prefetch = 0 : i64, scratch_operands = 0 : i64, tpu.core_type = #tpu.core_type<tc>, window_params = [{transform_indices = @transform_0, window_bounds = array<i64: 16, 3136>}, {pipeline_mode = #tpu.pipeline_mode<synchronous>, transform_indices = @transform_1, window_bounds = array<i64: 3136, 128>}, {pipeline_mode = #tpu.pipeline_mode<synchronous>, transform_indices = @transform_2, window_bounds = array<i64: 1, 128>}, {transform_indices = @transform_3, window_bounds = array<i64: 16, 128>}]} {
    %c0 = arith.constant 0 : index
    %c0_0 = arith.constant 0 : index
    %0 = vector.load %arg1[%c0, %c0_0] : memref<16x3136xbf16, #tpu.memory_space<vmem>>, vector<16x3136xbf16>
    %c0_1 = arith.constant 0 : index
    %c0_2 = arith.constant 0 : index
    %1 = vector.load %arg2[%c0_1, %c0_2] : memref<3136x128xbf16, #tpu.memory_space<vmem>>, vector<3136x128xbf16>
    %cst = arith.constant dense<0.000000e+00> : vector<16x128xf32>
    %2 = tpu.matmul %0, %1, %cst {dimension_numbers = #tpu.dot_dimension_numbers<[1], [0], [0], [1], [0, 0, 1, 1], [], []>} : vector<16x3136xbf16>, vector<3136x128xbf16>, vector<16x128xf32> -> vector<16x128xf32>
    %c0_3 = arith.constant 0 : index
    %c0_4 = arith.constant 0 : index
    %3 = vector.load %arg3[%c0_3, %c0_4] : memref<1x128xf32, #tpu.memory_space<vmem>>, vector<1x128xf32>
    %4 = vector.broadcast %3 : vector<1x128xf32> to vector<16x128xf32>
    %5 = arith.addf %2, %4 : vector<16x128xf32>
    %cst_5 = arith.constant 0.000000e+00 : f32
    %6 = vector.broadcast %cst_5 : f32 to vector<16x128xf32>
    %7 = arith.maximumf %5, %6 : vector<16x128xf32>
    %8 = arith.truncf %7 : vector<16x128xf32> to vector<16x128xbf16>
    %c0_6 = arith.constant 0 : index
    %c0_7 = arith.constant 0 : index
    %9 = vector.load %arg4[%c0_6, %c0_7] : memref<16x128xbf16, #tpu.memory_space<vmem>>, vector<16x128xbf16>
    tpu.vector_store %arg4[%c0_6, %c0_7], %8 {strides = array<i32>} : memref<16x128xbf16, #tpu.memory_space<vmem>>, vector<16x128xbf16>,
    return
  }
  func.func @transform_0(%arg0: i32) -> (i32, i32) {
    %c0_i32 = arith.constant 0 : i32
    %c0_i32_0 = arith.constant 0 : i32
    return %arg0, %c0_i32 : i32, i32
  }
  func.func @transform_1(%arg0: i32) -> (i32, i32) {
    %c0_i32 = arith.constant 0 : i32
    %c0_i32_0 = arith.constant 0 : i32
    %c0_i32_1 = arith.constant 0 : i32
    return %c0_i32, %c0_i32_0 : i32, i32
  }
  func.func @transform_2(%arg0: i32) -> (i32, i32) {
    %c0_i32 = arith.constant 0 : i32
    %c0_i32_0 = arith.constant 0 : i32
    %c0_i32_1 = arith.constant 0 : i32
    return %c0_i32, %c0_i32_0 : i32, i32
  }
  func.func @transform_3(%arg0: i32) -> (i32, i32) {
    %c0_i32 = arith.constant 0 : i32
    %c0_i32_0 = arith.constant 0 : i32
    return %arg0, %c0_i32 : i32, i32
  }
}

module attributes {stable_mosaic.version = 11 : i64} {
  func.func @_linear_kernel(%arg0: i32, %arg1: memref<16x128xbf16, #tpu.memory_space<vmem>>, %arg2: memref<128x10xbf16, #tpu.memory_space<vmem>>, %arg3: memref<1x10xf32, #tpu.memory_space<vmem>>, %arg4: memref<16x10xf32, #tpu.memory_space<vmem>>) attributes {dimension_semantics = [#tpu.dimension_semantics<parallel>], iteration_bounds = array<i64: 1>, scalar_prefetch = 0 : i64, scratch_operands = 0 : i64, tpu.core_type = #tpu.core_type<tc>, window_params = [{transform_indices = @transform_0, window_bounds = array<i64: 16, 128>}, {pipeline_mode = #tpu.pipeline_mode<synchronous>, transform_indices = @transform_1, window_bounds = array<i64: 128, 10>}, {pipeline_mode = #tpu.pipeline_mode<synchronous>, transform_indices = @transform_2, window_bounds = array<i64: 1, 10>}, {transform_indices = @transform_3, window_bounds = array<i64: 16, 10>}]} {
    %c0 = arith.constant 0 : index
    %c0_0 = arith.constant 0 : index
    %0 = vector.load %arg1[%c0, %c0_0] : memref<16x128xbf16, #tpu.memory_space<vmem>>, vector<16x128xbf16>
    %c0_1 = arith.constant 0 : index
    %c0_2 = arith.constant 0 : index
    %1 = vector.load %arg2[%c0_1, %c0_2] : memref<128x10xbf16, #tpu.memory_space<vmem>>, vector<128x10xbf16>
    %cst = arith.constant dense<0.000000e+00> : vector<16x10xf32>
    %2 = tpu.matmul %0, %1, %cst {dimension_numbers = #tpu.dot_dimension_numbers<[1], [0], [0], [1], [0, 0, 1, 1], [], []>} : vector<16x128xbf16>, vector<128x10xbf16>, vector<16x10xf32> -> vector<16x10xf32>
    %c0_3 = arith.constant 0 : index
    %c0_4 = arith.constant 0 : index
    %3 = vector.load %arg3[%c0_3, %c0_4] : memref<1x10xf32, #tpu.memory_space<vmem>>, vector<1x10xf32>
    %4 = vector.broadcast %3 : vector<1x10xf32> to vector<16x10xf32>
    %5 = arith.addf %2, %4 : vector<16x10xf32>
    %c0_5 = arith.constant 0 : index
    %c0_6 = arith.constant 0 : index
    %6 = vector.load %arg4[%c0_5, %c0_6] : memref<16x10xf32, #tpu.memory_space<vmem>>, vector<16x10xf32>
    tpu.vector_store %arg4[%c0_5, %c0_6], %5 {strides = array<i32>} : memref<16x10xf32, #tpu.memory_space<vmem>>, vector<16x10xf32>,
    return
  }
  func.func @transform_0(%arg0: i32) -> (i32, i32) {
    %c0_i32 = arith.constant 0 : i32
    %c0_i32_0 = arith.constant 0 : i32
    return %arg0, %c0_i32 : i32, i32
  }
  func.func @transform_1(%arg0: i32) -> (i32, i32) {
    %c0_i32 = arith.constant 0 : i32
    %c0_i32_0 = arith.constant 0 : i32
    %c0_i32_1 = arith.constant 0 : i32
    return %c0_i32, %c0_i32_0 : i32, i32
  }
  func.func @transform_2(%arg0: i32) -> (i32, i32) {
    %c0_i32 = arith.constant 0 : i32
    %c0_i32_0 = arith.constant 0 : i32
    %c0_i32_1 = arith.constant 0 : i32
    return %c0_i32, %c0_i32_0 : i32, i32
  }
  func.func @transform_3(%arg0: i32) -> (i32, i32) {
    %c0_i32 = arith.constant 0 : i32
    %c0_i32_0 = arith.constant 0 : i32
    return %arg0, %c0_i32 : i32, i32
  }
}

</mosaic_0001>

<llo_original>
// kernel: cnn_forward.4
$region0: #{cnn_forward.4}
  #allocation0 [shape = 'u32[]', space=smem, size = 0x4, offset = 0x4, fixed_abs, tag = 'smem constant byte address 0x4 - core index']
  #allocation1 [shape = 'u32[144,128]{1,0:T(1,128)}', space=vmem, size = 0x12000, scoped, tag = 'internal scratch']
  %s0 = inlined_call_operand.vmem [shape: bf16[400,9], index: 0, kind: input, shape index: {}]
  %s1 = inlined_call_operand.vmem [shape: bf16[400,9], index: 1, kind: input, shape index: {}]
  %s2 = inlined_call_operand.vmem [shape: bf16[400,9], index: 2, kind: input, shape index: {}]
  %s3 = inlined_call_operand.vmem [shape: bf16[400,9], index: 3, kind: input, shape index: {}]
  %s4 = inlined_call_operand.vmem [shape: bf16[9,32], index: 4, kind: input, shape index: {}]
  %s5 = inlined_call_operand.vmem [shape: f32[1,32], index: 5, kind: input, shape index: {}]
  %s6 = inlined_call_operand.vmem [shape: bf16[400,32], index: 6, kind: output, shape index: {}]
  %s7 = sld [smem:[#allocation0]]
  $region34: #{cnn_forward.4} parent=0
    _
  %s9 = ssub.s32 1, %s7
  %s10 = scalar_select 0, %s9, %s7
  // Predicated region
  $region2: #{cnn_forward.4} parent=0 // pred_check
    _
  $region3: #{cnn_forward.4} parent=0 // pred_check_branch
    %12 = sbr.rel (0) target = $region5
  $region4: #{cnn_forward.4} parent=0 // pred_region
    _
  $region5: #{cnn_forward.4} parent=0 // pred_fallthru
    _
  // Predicated region
  $region6: #{cnn_forward.4} parent=0 // pred_check
    _
  $region7: #{cnn_forward.4} parent=0 // pred_check_branch
    %14 = sbr.rel (0) target = $region9
  $region8: #{cnn_forward.4} parent=0 // pred_region
    _
  $region9: #{cnn_forward.4} parent=0 // pred_fallthru
    _
  // Predicated region
  $region10: #{cnn_forward.4} parent=0 // pred_check
    _
  $region11: #{cnn_forward.4} parent=0 // pred_check_branch
    %16 = sbr.rel (0) target = $region13
  $region12: #{cnn_forward.4} parent=0 // pred_region
    _
  $region13: #{cnn_forward.4} parent=0 // pred_fallthru
    _
  // Predicated region
  $region14: #{cnn_forward.4} parent=0 // pred_check
    _
  $region15: #{cnn_forward.4} parent=0 // pred_check_branch
    %18 = sbr.rel (0) target = $region17
  $region16: #{cnn_forward.4} parent=0 // pred_region
    _
  $region17: #{cnn_forward.4} parent=0 // pred_fallthru
    _
  // Predicated region
  $region18: #{cnn_forward.4} parent=0 // pred_check
    _
  $region19: #{cnn_forward.4} parent=0 // pred_check_branch
    %20 = sbr.rel (0) target = $region21
  $region20: #{cnn_forward.4} parent=0 // pred_region
    _
  $region21: #{cnn_forward.4} parent=0 // pred_fallthru
    _
  // Predicated region
  $region22: #{cnn_forward.4} parent=0 // pred_check
    _
  $region23: #{cnn_forward.4} parent=0 // pred_check_branch
    %22 = sbr.rel (0) target = $region25
  $region24: #{cnn_forward.4} parent=0 // pred_region
    _
  $region25: #{cnn_forward.4} parent=0 // pred_fallthru
    _
  %v24 = vld [vmem:[%s4] sm:$0xf]
  %v25 = vld [vmem:[%s4 + $0x4] sm:$0x1]
  %v26 = vld [vmem:[%s0] sm:$0xf]
  %v27 = vld [vmem:[%s0 + $0x4] sm:$0xf]
  %v28 = vld [vmem:[%s0 + $0x8] sm:$0xf]
  %v29 = vld [vmem:[%s0 + $0xc] sm:$0xf]
  %v30 = vld [vmem:[%s0 + $0x10] sm:$0xf]
  %v31 = vld [vmem:[%s0 + $0x14] sm:$0xf]
  %v32 = vld [vmem:[%s0 + $0x18] sm:$0xf]
  %v33 = vld [vmem:[%s0 + $0x1c] sm:$0xf]
  %v34 = vld [vmem:[%s0 + $0x20] sm:$0xf]
  %v35 = vld [vmem:[%s0 + $0x24] sm:$0xf]
  %v36 = vld [vmem:[%s0 + $0x28] sm:$0xf]
  %v37 = vld [vmem:[%s0 + $0x2c] sm:$0xf]
  %v38 = vld [vmem:[%s0 + $0x30] sm:$0xf]
  %v39 = vld [vmem:[%s0 + $0x34] sm:$0xf]
  %v40 = vld [vmem:[%s0 + $0x38] sm:$0xf]
  %v41 = vld [vmem:[%s0 + $0x3c] sm:$0xf]
  %v42 = vld [vmem:[%s0 + $0x40] sm:$0xf]
  %v43 = vld [vmem:[%s0 + $0x44] sm:$0xf]
  %v44 = vld [vmem:[%s0 + $0x48] sm:$0xf]
  %v45 = vld [vmem:[%s0 + $0x4c] sm:$0xf]
  %v46 = vld [vmem:[%s0 + $0x50] sm:$0xf]
  %v47 = vld [vmem:[%s0 + $0x54] sm:$0xf]
  %v48 = vld [vmem:[%s0 + $0x58] sm:$0xf]
  %v49 = vld [vmem:[%s0 + $0x5c] sm:$0xf]
  %v50 = vld [vmem:[%s0 + $0x60] sm:$0xf]
  %v51 = vld [vmem:[%s0 + $0x64] sm:$0xf]
  %v52 = vld [vmem:[%s0 + $0x68] sm:$0xf]
  %v53 = vld [vmem:[%s0 + $0x6c] sm:$0xf]
  %v54 = vld [vmem:[%s0 + $0x70] sm:$0xf]
  %v55 = vld [vmem:[%s0 + $0x74] sm:$0xf]
  %v56 = vld [vmem:[%s0 + $0x78] sm:$0xf]
  %v57 = vld [vmem:[%s0 + $0x7c] sm:$0xf]
  %v58 = vld [vmem:[%s0 + $0x80] sm:$0xf]
  %v59 = vld [vmem:[%s0 + $0x84] sm:$0xf]
  %v60 = vld [vmem:[%s0 + $0x88] sm:$0xf]
  %v61 = vld [vmem:[%s0 + $0x8c] sm:$0xf]
  %v62 = vld [vmem:[%s0 + $0x90] sm:$0xf]
  %v63 = vld [vmem:[%s0 + $0x94] sm:$0xf]
  %v64 = vld [vmem:[%s0 + $0x98] sm:$0xf]
  %v65 = vld [vmem:[%s0 + $0x9c] sm:$0xf]
  %v66 = vld [vmem:[%s0 + $0xa0] sm:$0xf]
  %v67 = vld [vmem:[%s0 + $0xa4] sm:$0xf]
  %v68 = vld [vmem:[%s0 + $0xa8] sm:$0xf]
  %v69 = vld [vmem:[%s0 + $0xac] sm:$0xf]
  %v70 = vld [vmem:[%s0 + $0xb0] sm:$0xf]
  %v71 = vld [vmem:[%s0 + $0xb4] sm:$0xf]
  %v72 = vld [vmem:[%s0 + $0xb8] sm:$0xf]
  %v73 = vld [vmem:[%s0 + $0xbc] sm:$0xf]
  %v74 = vld [vmem:[%s0 + $0xc0] sm:$0xf]
  %v75 = vld [vmem:[%s0 + $0xc4] sm:$0xf]
  %v126 = vunpack.c.l.b16 %v26
  %v127 = vunpack.c.l.b16 %v27
  %v128 = vunpack.c.l.b16 %v28
  %v129 = vunpack.c.l.b16 %v29
  %v130 = vunpack.c.l.b16 %v30
  %v131 = vunpack.c.l.b16 %v31
  %v132 = vunpack.c.l.b16 %v32
  %v133 = vunpack.c.l.b16 %v33
  %v134 = vunpack.c.l.b16 %v34
  %v135 = vunpack.c.l.b16 %v35
  %v136 = vunpack.c.l.b16 %v36
  %v137 = vunpack.c.l.b16 %v37
  %v138 = vunpack.c.l.b16 %v38
  %v139 = vunpack.c.l.b16 %v39
  %v140 = vunpack.c.l.b16 %v40
  %v141 = vunpack.c.l.b16 %v41
  %v142 = vunpack.c.l.b16 %v42
  %v143 = vunpack.c.l.b16 %v43
  %v144 = vunpack.c.l.b16 %v44
  %v145 = vunpack.c.l.b16 %v45
  %v146 = vunpack.c.l.b16 %v46
  %v147 = vunpack.c.l.b16 %v47
  %v148 = vunpack.c.l.b16 %v48
  %v149 = vunpack.c.l.b16 %v49
  %v150 = vunpack.c.l.b16 %v50
  %v151 = vunpack.c.l.b16 %v51
  %v152 = vunpack.c.l.b16 %v52
  %v153 = vunpack.c.l.b16 %v53
  %v154 = vunpack.c.l.b16 %v54
  %v155 = vunpack.c.l.b16 %v55
  %v156 = vunpack.c.l.b16 %v56
  %v157 = vunpack.c.l.b16 %v57
  %v158 = vunpack.c.l.b16 %v58
  %v159 = vunpack.c.l.b16 %v59
  %v160 = vunpack.c.l.b16 %v60
  %v161 = vunpack.c.l.b16 %v61
  %v162 = vunpack.c.l.b16 %v62
  %v163 = vunpack.c.l.b16 %v63
  %v164 = vunpack.c.l.b16 %v64
  %v165 = vunpack.c.l.b16 %v65
  %v166 = vunpack.c.l.b16 %v66
  %v167 = vunpack.c.l.b16 %v67
  %v168 = vunpack.c.l.b16 %v68
  %v169 = vunpack.c.l.b16 %v69
  %v170 = vunpack.c.l.b16 %v70
  %v171 = vunpack.c.l.b16 %v71
  %v172 = vunpack.c.l.b16 %v72
  %v173 = vunpack.c.l.b16 %v73
  %v174 = vunpack.c.l.b16 %v74
  %v175 = vunpack.c.l.b16 %v75
  %v176 = vpack.c.b16 %v127, %v126
  %v177 = vpack.c.b16 %v129, %v128
  %v178 = vpack.c.b16 %v131, %v130
  %v179 = vpack.c.b16 %v133, %v132
  %v180 = vpack.c.b16 %v135, %v134
  %v181 = vpack.c.b16 %v137, %v136
  %v182 = vpack.c.b16 %v139, %v138
  %v183 = vpack.c.b16 %v141, %v140
  %v184 = vpack.c.b16 %v143, %v142
  %v185 = vpack.c.b16 %v145, %v144
  %v186 = vpack.c.b16 %v147, %v146
  %v187 = vpack.c.b16 %v149, %v148
  %v188 = vpack.c.b16 %v151, %v150
  %v189 = vpack.c.b16 %v153, %v152
  %v190 = vpack.c.b16 %v155, %v154
  %v191 = vpack.c.b16 %v157, %v156
  %v192 = vpack.c.b16 %v159, %v158
  %v193 = vpack.c.b16 %v161, %v160
  %v194 = vpack.c.b16 %v163, %v162
  %v195 = vpack.c.b16 %v165, %v164
  %v196 = vpack.c.b16 %v167, %v166
  %v197 = vpack.c.b16 %v169, %v168
  %v198 = vpack.c.b16 %v171, %v170
  %v199 = vpack.c.b16 %v173, %v172
  %v200 = vpack.c.b16 %v175, %v174
  %v203 = vunpack.c.l.b16 %v24
  %v204 = vunpack.c.l.b16 %v25
  %v205 = vpack.c.b16 %v204, %v203
  %vm206 = vcmask 72704
  %v208 = vsel %vm206, %v176, 0
  %v211 = vsel %vm206, %v177, 0
  %v214 = vsel %vm206, %v178, 0
  %v217 = vsel %vm206, %v179, 0
  %v220 = vsel %vm206, %v180, 0
  %v223 = vsel %vm206, %v181, 0
  %v226 = vsel %vm206, %v182, 0
  %v229 = vsel %vm206, %v183, 0
  %v232 = vsel %vm206, %v184, 0
  %v235 = vsel %vm206, %v185, 0
  %v238 = vsel %vm206, %v186, 0
  %v241 = vsel %vm206, %v187, 0
  %v244 = vsel %vm206, %v188, 0
  %v247 = vsel %vm206, %v189, 0
  %v250 = vsel %vm206, %v190, 0
  %v253 = vsel %vm206, %v191, 0
  %v256 = vsel %vm206, %v192, 0
  %v259 = vsel %vm206, %v193, 0
  %v262 = vsel %vm206, %v194, 0
  %v265 = vsel %vm206, %v195, 0
  %v268 = vsel %vm206, %v196, 0
  %v271 = vsel %vm206, %v197, 0
  %v274 = vsel %vm206, %v198, 0
  %v277 = vsel %vm206, %v199, 0
  %v280 = vsel %vm206, %v200, 0
  %vm282 = vcmask 1043456
  %vm283 = vcmask 1044480
  %v284 = vsel %vm282, 4294967295, 65535
  %v285 = vsel %vm283, %v284, 0
  %v287 = vand.u32 %v205, %v285
  %289 = vmatprep.subr.bf16.mxu0 0
  %290 = vmatpush1.bf16.msra.mxu0 %v287
  %291 = vmatprep.subr.bf16.mxu0 0
  %292 = vmatpush1.bf16.msra.mxu0 0
  %293 = vmatprep.subr.bf16.mxu0 0
  %294 = vmatpush1.bf16.msra.mxu0 0
  %295 = vmatprep.subr.bf16.mxu0 0
  %296 = vmatpush1.bf16.msra.mxu0 0
  %297 = vmatprep.subr.bf16.mxu0 0
  %298 = vmatpush1.bf16.msra.mxu0 0
  %299 = vmatprep.subr.bf16.mxu0 0
  %300 = vmatpush1.bf16.msra.mxu0 0
  %301 = vmatprep.subr.bf16.mxu0 0
  %302 = vmatpush1.bf16.msra.mxu0 0
  %303 = vmatprep.subr.bf16.mxu0 0
  %304 = vmatpush1.bf16.msra.mxu0 0
  %305 = vmatprep.subr.bf16.mxu0 0
  %306 = vmatpush1.bf16.msra.mxu0 0
  %307 = vmatprep.subr.bf16.mxu0 0
  %308 = vmatpush1.bf16.msra.mxu0 0
  %309 = vmatprep.subr.bf16.mxu0 0
  %310 = vmatpush1.bf16.msra.mxu0 0
  %311 = vmatprep.subr.bf16.mxu0 0
  %312 = vmatpush1.bf16.msra.mxu0 0
  %313 = vmatprep.subr.bf16.mxu0 0
  %314 = vmatpush1.bf16.msra.mxu0 0
  %315 = vmatprep.subr.bf16.mxu0 0
  %316 = vmatpush1.bf16.msra.mxu0 0
  %317 = vmatprep.subr.bf16.mxu0 0
  %318 = vmatpush1.bf16.msra.mxu0 0
  %319 = vmatprep.subr.bf16.mxu0 0
  %320 = vmatpush1.bf16.msra.mxu0 0
  %321 = vmatprep.mubr.bf16.mxu0 0
  %322 = vmatmul.mubr.bf16.gmra.mrb[0].mxu0 %v208
  %v323 = vpop.f32.mrb[0].mxu0
  %v324 = vadd.f32 0.0, %v323
  %v325 = vpop.f32.mrb[0].mxu0
  %v326 = vpop.f32.mrb[0].mxu0
  %v327 = vadd.f32 0.0, %v326
  %v328 = vpop.f32.mrb[0].mxu0
  %329 = vmatprep.mubr.bf16.mxu0 0
  %330 = vmatmul.mubr.bf16.gmra.mrb[0].mxu0 %v211
  %v331 = vpop.f32.mrb[0].mxu0
  %v332 = vadd.f32 0.0, %v331
  %v333 = vpop.f32.mrb[0].mxu0
  %v334 = vpop.f32.mrb[0].mxu0
  %v335 = vadd.f32 0.0, %v334
  %v336 = vpop.f32.mrb[0].mxu0
  %337 = vmatprep.mubr.bf16.mxu0 0
  %338 = vmatmul.mubr.bf16.gmra.mrb[0].mxu0 %v214
  %v339 = vpop.f32.mrb[0].mxu0
  %v340 = vadd.f32 0.0, %v339
  %v341 = vpop.f32.mrb[0].mxu0
  %v342 = vpop.f32.mrb[0].mxu0
  %v343 = vadd.f32 0.0, %v342
  %v344 = vpop.f32.mrb[0].mxu0
  %345 = vmatprep.mubr.bf16.mxu0 0
  %346 = vmatmul.mubr.bf16.gmra.mrb[0].mxu0 %v217
  %v347 = vpop.f32.mrb[0].mxu0
  %v348 = vadd.f32 0.0, %v347
  %v349 = vpop.f32.mrb[0].mxu0
  %v350 = vpop.f32.mrb[0].mxu0
  %v351 = vadd.f32 0.0, %v350
  %v352 = vpop.f32.mrb[0].mxu0
  %353 = vmatprep.mubr.bf16.mxu0 0
  %354 = vmatmul.mubr.bf16.gmra.mrb[0].mxu0 %v220
  %v355 = vpop.f32.mrb[0].mxu0
  %v356 = vadd.f32 0.0, %v355
  %v357 = vpop.f32.mrb[0].mxu0
  %v358 = vpop.f32.mrb[0].mxu0
  %v359 = vadd.f32 0.0, %v358
  %v360 = vpop.f32.mrb[0].mxu0
  %361 = vmatprep.mubr.bf16.mxu0 0
  %362 = vmatmul.mubr.bf16.gmra.mrb[0].mxu0 %v223
  %v363 = vpop.f32.mrb[0].mxu0
  %v364 = vadd.f32 0.0, %v363
  %v365 = vpop.f32.mrb[0].mxu0
  %v366 = vpop.f32.mrb[0].mxu0
  %v367 = vadd.f32 0.0, %v366
  %v368 = vpop.f32.mrb[0].mxu0
  %369 = vmatprep.mubr.bf16.mxu0 0
  %370 = vmatmul.mubr.bf16.gmra.mrb[0].mxu0 %v226
  %v371 = vpop.f32.mrb[0].mxu0
  %v372 = vadd.f32 0.0, %v371
  %v373 = vpop.f32.mrb[0].mxu0
  %v374 = vpop.f32.mrb[0].mxu0
  %v375 = vadd.f32 0.0, %v374
  %v376 = vpop.f32.mrb[0].mxu0
  %377 = vmatprep.mubr.bf16.mxu0 0
  %378 = vmatmul.mubr.bf16.gmra.mrb[0].mxu0 %v229
  %v379 = vpop.f32.mrb[0].mxu0
  %v380 = vadd.f32 0.0, %v379
  %v381 = vpop.f32.mrb[0].mxu0
  %v382 = vpop.f32.mrb[0].mxu0
  %v383 = vadd.f32 0.0, %v382
  %v384 = vpop.f32.mrb[0].mxu0
  %385 = vmatprep.mubr.bf16.mxu0 0
  %386 = vmatmul.mubr.bf16.gmra.mrb[0].mxu0 %v232
  %v387 = vpop.f32.mrb[0].mxu0
  %v388 = vadd.f32 0.0, %v387
  %v389 = vpop.f32.mrb[0].mxu0
  %v390 = vpop.f32.mrb[0].mxu0
  %v391 = vadd.f32 0.0, %v390
  %v392 = vpop.f32.mrb[0].mxu0
  %393 = vmatprep.mubr.bf16.mxu0 0
  %394 = vmatmul.mubr.bf16.gmra.mrb[0].mxu0 %v235
  %v395 = vpop.f32.mrb[0].mxu0
  %v396 = vadd.f32 0.0, %v395
  %v397 = vpop.f32.mrb[0].mxu0
  %v398 = vpop.f32.mrb[0].mxu0
  %v399 = vadd.f32 0.0, %v398
  %v400 = vpop.f32.mrb[0].mxu0
  %401 = vmatprep.mubr.bf16.mxu0 0
  %402 = vmatmul.mubr.bf16.gmra.mrb[0].mxu0 %v238
  %v403 = vpop.f32.mrb[0].mxu0
  %v404 = vadd.f32 0.0, %v403
  %v405 = vpop.f32.mrb[0].mxu0
  %v406 = vpop.f32.mrb[0].mxu0
  %v407 = vadd.f32 0.0, %v406
  %v408 = vpop.f32.mrb[0].mxu0
  %409 = vmatprep.mubr.bf16.mxu0 0
  %410 = vmatmul.mubr.bf16.gmra.mrb[0].mxu0 %v241
  %v411 = vpop.f32.mrb[0].mxu0
  %v412 = vadd.f32 0.0, %v411
  %v413 = vpop.f32.mrb[0].mxu0
  %v414 = vpop.f32.mrb[0].mxu0
  %v415 = vadd.f32 0.0, %v414
  %v416 = vpop.f32.mrb[0].mxu0
  %417 = vmatprep.mubr.bf16.mxu0 0
  %418 = vmatmul.mubr.bf16.gmra.mrb[0].mxu0 %v244
  %v419 = vpop.f32.mrb[0].mxu0
  %v420 = vadd.f32 0.0, %v419
  %v421 = vpop.f32.mrb[0].mxu0
  %v422 = vpop.f32.mrb[0].mxu0
  %v423 = vadd.f32 0.0, %v422
  %v424 = vpop.f32.mrb[0].mxu0
  %425 = vmatprep.mubr.bf16.mxu0 0
  %426 = vmatmul.mubr.bf16.gmra.mrb[0].mxu0 %v247
  %v427 = vpop.f32.mrb[0].mxu0
  %v428 = vadd.f32 0.0, %v427
  %v429 = vpop.f32.mrb[0].mxu0
  %v430 = vpop.f32.mrb[0].mxu0
  %v431 = vadd.f32 0.0, %v430
  %v432 = vpop.f32.mrb[0].mxu0
  %433 = vmatprep.mubr.bf16.mxu0 0
  %434 = vmatmul.mubr.bf16.gmra.mrb[0].mxu0 %v250
  %v435 = vpop.f32.mrb[0].mxu0
  %v436 = vadd.f32 0.0, %v435
  %v437 = vpop.f32.mrb[0].mxu0
  %v438 = vpop.f32.mrb[0].mxu0
  %v439 = vadd.f32 0.0, %v438
  %v440 = vpop.f32.mrb[0].mxu0
  %441 = vmatprep.mubr.bf16.mxu0 0
  %442 = vmatmul.mubr.bf16.gmra.mrb[0].mxu0 %v253
  %v443 = vpop.f32.mrb[0].mxu0
  %v444 = vadd.f32 0.0, %v443
  %v445 = vpop.f32.mrb[0].mxu0
  %v446 = vpop.f32.mrb[0].mxu0
  %v447 = vadd.f32 0.0, %v446
  %v448 = vpop.f32.mrb[0].mxu0
  %449 = vmatprep.mubr.bf16.mxu0 0
  %450 = vmatmul.mubr.bf16.gmra.mrb[0].mxu0 %v256
  %v451 = vpop.f32.mrb[0].mxu0
  %v452 = vadd.f32 0.0, %v451
  %v453 = vpop.f32.mrb[0].mxu0
  %v454 = vpop.f32.mrb[0].mxu0
  %v455 = vadd.f32 0.0, %v454
  %v456 = vpop.f32.mrb[0].mxu0
  %457 = vmatprep.mubr.bf16.mxu0 0
  %458 = vmatmul.mubr.bf16.gmra.mrb[0].mxu0 %v259
  %v459 = vpop.f32.mrb[0].mxu0
  %v460 = vadd.f32 0.0, %v459
  %v461 = vpop.f32.mrb[0].mxu0
  %v462 = vpop.f32.mrb[0].mxu0
  %v463 = vadd.f32 0.0, %v462
  %v464 = vpop.f32.mrb[0].mxu0
  %465 = vmatprep.mubr.bf16.mxu0 0
  %466 = vmatmul.mubr.bf16.gmra.mrb[0].mxu0 %v262
  %v467 = vpop.f32.mrb[0].mxu0
  %v468 = vadd.f32 0.0, %v467
  %v469 = vpop.f32.mrb[0].mxu0
  %v470 = vpop.f32.mrb[0].mxu0
  %v471 = vadd.f32 0.0, %v470
  %v472 = vpop.f32.mrb[0].mxu0
  %473 = vmatprep.mubr.bf16.mxu0 0
  %474 = vmatmul.mubr.bf16.gmra.mrb[0].mxu0 %v265
  %v475 = vpop.f32.mrb[0].mxu0
  %v476 = vadd.f32 0.0, %v475
  %v477 = vpop.f32.mrb[0].mxu0
  %v478 = vpop.f32.mrb[0].mxu0
  %v479 = vadd.f32 0.0, %v478
  %v480 = vpop.f32.mrb[0].mxu0
  %481 = vmatprep.mubr.bf16.mxu0 0
  %482 = vmatmul.mubr.bf16.gmra.mrb[0].mxu0 %v268
  %v483 = vpop.f32.mrb[0].mxu0
  %v484 = vadd.f32 0.0, %v483
  %v485 = vpop.f32.mrb[0].mxu0
  %v486 = vpop.f32.mrb[0].mxu0
  %v487 = vadd.f32 0.0, %v486
  %v488 = vpop.f32.mrb[0].mxu0
  %489 = vmatprep.mubr.bf16.mxu0 0
  %490 = vmatmul.mubr.bf16.gmra.mrb[0].mxu0 %v271
  %v491 = vpop.f32.mrb[0].mxu0
  %v492 = vadd.f32 0.0, %v491
  %v493 = vpop.f32.mrb[0].mxu0
  %v494 = vpop.f32.mrb[0].mxu0
  %v495 = vadd.f32 0.0, %v494
  %v496 = vpop.f32.mrb[0].mxu0
  %497 = vmatprep.mubr.bf16.mxu0 0
  %498 = vmatmul.mubr.bf16.gmra.mrb[0].mxu0 %v274
  %v499 = vpop.f32.mrb[0].mxu0
  %v500 = vadd.f32 0.0, %v499
  %v501 = vpop.f32.mrb[0].mxu0
  %v502 = vpop.f32.mrb[0].mxu0
  %v503 = vadd.f32 0.0, %v502
  %v504 = vpop.f32.mrb[0].mxu0
  %505 = vmatprep.mubr.bf16.mxu0 0
  %506 = vmatmul.mubr.bf16.gmra.mrb[0].mxu0 %v277
  %v507 = vpop.f32.mrb[0].mxu0
  %v508 = vadd.f32 0.0, %v507
  %v509 = vpop.f32.mrb[0].mxu0
  %v510 = vpop.f32.mrb[0].mxu0
  %v511 = vadd.f32 0.0, %v510
  %v512 = vpop.f32.mrb[0].mxu0
  %513 = vmatprep.mubr.bf16.mxu0 0
  %514 = vmatmul.mubr.bf16.gmra.mrb[0].mxu0 %v280
  %v515 = vpop.f32.mrb[0].mxu0
  %v516 = vadd.f32 0.0, %v515
  %v517 = vpop.f32.mrb[0].mxu0
  %v518 = vpop.f32.mrb[0].mxu0
  %v519 = vadd.f32 0.0, %v518
  %v520 = vpop.f32.mrb[0].mxu0
  %521 = vdwg.mxu0
  %v522 = vld [vmem:[%s1] sm:$0xf]
  %v523 = vld [vmem:[%s1 + $0x4] sm:$0xf]
  %v524 = vld [vmem:[%s1 + $0x8] sm:$0xf]
  %v525 = vld [vmem:[%s1 + $0xc] sm:$0xf]
  %v526 = vld [vmem:[%s1 + $0x10] sm:$0xf]
  %v527 = vld [vmem:[%s1 + $0x14] sm:$0xf]
  %v528 = vld [vmem:[%s1 + $0x18] sm:$0xf]
  %v529 = vld [vmem:[%s1 + $0x1c] sm:$0xf]
  %v530 = vld [vmem:[%s1 + $0x20] sm:$0xf]
  %v531 = vld [vmem:[%s1 + $0x24] sm:$0xf]
  %v532 = vld [vmem:[%s1 + $0x28] sm:$0xf]
  %v533 = vld [vmem:[%s1 + $0x2c] sm:$0xf]
  %v534 = vld [vmem:[%s1 + $0x30] sm:$0xf]
  %v535 = vld [vmem:[%s1 + $0x34] sm:$0xf]
  %v536 = vld [vmem:[%s1 + $0x38] sm:$0xf]
  %v537 = vld [vmem:[%s1 + $0x3c] sm:$0xf]
  %v538 = vld [vmem:[%s1 + $0x40] sm:$0xf]
  %v539 = vld [vmem:[%s1 + $0x44] sm:$0xf]
  %v540 = vld [vmem:[%s1 + $0x48] sm:$0xf]
  %v541 = vld [vmem:[%s1 + $0x4c] sm:$0xf]
  %v542 = vld [vmem:[%s1 + $0x50] sm:$0xf]
  %v543 = vld [vmem:[%s1 + $0x54] sm:$0xf]
  %v544 = vld [vmem:[%s1 + $0x58] sm:$0xf]
  %v545 = vld [vmem:[%s1 + $0x5c] sm:$0xf]
  %v546 = vld [vmem:[%s1 + $0x60] sm:$0xf]
  %v547 = vld [vmem:[%s1 + $0x64] sm:$0xf]
  %v548 = vld [vmem:[%s1 + $0x68] sm:$0xf]
  %v549 = vld [vmem:[%s1 + $0x6c] sm:$0xf]
  %v550 = vld [vmem:[%s1 + $0x70] sm:$0xf]
  %v551 = vld [vmem:[%s1 + $0x74] sm:$0xf]
  %v552 = vld [vmem:[%s1 + $0x78] sm:$0xf]
  %v553 = vld [vmem:[%s1 + $0x7c] sm:$0xf]
  %v554 = vld [vmem:[%s1 + $0x80] sm:$0xf]
  %v555 = vld [vmem:[%s1 + $0x84] sm:$0xf]
  %v556 = vld [vmem:[%s1 + $0x88] sm:$0xf]
  %v557 = vld [vmem:[%s1 + $0x8c] sm:$0xf]
  %v558 = vld [vmem:[%s1 + $0x90] sm:$0xf]
  %v559 = vld [vmem:[%s1 + $0x94] sm:$0xf]
  %v560 = vld [vmem:[%s1 + $0x98] sm:$0xf]
  %v561 = vld [vmem:[%s1 + $0x9c] sm:$0xf]
  %v562 = vld [vmem:[%s1 + $0xa0] sm:$0xf]
  %v563 = vld [vmem:[%s1 + $0xa4] sm:$0xf]
  %v564 = vld [vmem:[%s1 + $0xa8] sm:$0xf]
  %v565 = vld [vmem:[%s1 + $0xac] sm:$0xf]
  %v566 = vld [vmem:[%s1 + $0xb0] sm:$0xf]
  %v567 = vld [vmem:[%s1 + $0xb4] sm:$0xf]
  %v568 = vld [vmem:[%s1 + $0xb8] sm:$0xf]
  %v569 = vld [vmem:[%s1 + $0xbc] sm:$0xf]
  %v570 = vld [vmem:[%s1 + $0xc0] sm:$0xf]
  %v571 = vld [vmem:[%s1 + $0xc4] sm:$0xf]
  %v622 = vunpack.c.l.b16 %v522
  %v623 = vunpack.c.l.b16 %v523
  %v624 = vunpack.c.l.b16 %v524
  %v625 = vunpack.c.l.b16 %v525
  %v626 = vunpack.c.l.b16 %v526
  %v627 = vunpack.c.l.b16 %v527
  %v628 = vunpack.c.l.b16 %v528
  %v629 = vunpack.c.l.b16 %v529
  %v630 = vunpack.c.l.b16 %v530
  %v631 = vunpack.c.l.b16 %v531
  %v632 = vunpack.c.l.b16 %v532
  %v633 = vunpack.c.l.b16 %v533
  %v634 = vunpack.c.l.b16 %v534
  %v635 = vunpack.c.l.b16 %v535
  %v636 = vunpack.c.l.b16 %v536
  %v637 = vunpack.c.l.b16 %v537
  %v638 = vunpack.c.l.b16 %v538
  %v639 = vunpack.c.l.b16 %v539
  %v640 = vunpack.c.l.b16 %v540
  %v641 = vunpack.c.l.b16 %v541
  %v642 = vunpack.c.l.b16 %v542
  %v643 = vunpack.c.l.b16 %v543
  %v644 = vunpack.c.l.b16 %v544
  %v645 = vunpack.c.l.b16 %v545
  %v646 = vunpack.c.l.b16 %v546
  %v647 = vunpack.c.l.b16 %v547
  %v648 = vunpack.c.l.b16 %v548
  %v649 = vunpack.c.l.b16 %v549
  %v650 = vunpack.c.l.b16 %v550
  %v651 = vunpack.c.l.b16 %v551
  %v652 = vunpack.c.l.b16 %v552
  %v653 = vunpack.c.l.b16 %v553
  %v654 = vunpack.c.l.b16 %v554
  %v655 = vunpack.c.l.b16 %v555
  %v656 = vunpack.c.l.b16 %v556
  %v657 = vunpack.c.l.b16 %v557
  %v658 = vunpack.c.l.b16 %v558
  %v659 = vunpack.c.l.b16 %v559
  %v660 = vunpack.c.l.b16 %v560
  %v661 = vunpack.c.l.b16 %v561
  %v662 = vunpack.c.l.b16 %v562
  %v663 = vunpack.c.l.b16 %v563
  %v664 = vunpack.c.l.b16 %v564
  %v665 = vunpack.c.l.b16 %v565
  %v666 = vunpack.c.l.b16 %v566
  %v667 = vunpack.c.l.b16 %v567
  %v668 = vunpack.c.l.b16 %v568
  %v669 = vunpack.c.l.b16 %v569
  %v670 = vunpack.c.l.b16 %v570
  %v671 = vunpack.c.l.b16 %v571
  %v672 = vpack.c.b16 %v623, %v622
  %v673 = vpack.c.b16 %v625, %v624
  %v674 = vpack.c.b16 %v627, %v626
  %v675 = vpack.c.b16 %v629, %v628
  %v676 = vpack.c.b16 %v631, %v630
  %v677 = vpack.c.b16 %v633, %v632
  %v678 = vpack.c.b16 %v635, %v634
  %v679 = vpack.c.b16 %v637, %v636
  %v680 = vpack.c.b16 %v639, %v638
  %v681 = vpack.c.b16 %v641, %v640
  %v682 = vpack.c.b16 %v643, %v642
  %v683 = vpack.c.b16 %v645, %v644
  %v684 = vpack.c.b16 %v647, %v646
  %v685 = vpack.c.b16 %v649, %v648
  %v686 = vpack.c.b16 %v651, %v650
  %v687 = vpack.c.b16 %v653, %v652
  %v688 = vpack.c.b16 %v655, %v654
  %v689 = vpack.c.b16 %v657, %v656
  %v690 = vpack.c.b16 %v659, %v658
  %v691 = vpack.c.b16 %v661, %v660
  %v692 = vpack.c.b16 %v663, %v662
  %v693 = vpack.c.b16 %v665, %v664
  %v694 = vpack.c.b16 %v667, %v666
  %v695 = vpack.c.b16 %v669, %v668
  %v696 = vpack.c.b16 %v671, %v670
  %v698 = vsel %vm206, %v672, 0
  %v701 = vsel %vm206, %v673, 0
  %v704 = vsel %vm206, %v674, 0
  %v707 = vsel %vm206, %v675, 0
  %v710 = vsel %vm206, %v676, 0
  %v713 = vsel %vm206, %v677, 0
  %v716 = vsel %vm206, %v678, 0
  %v719 = vsel %vm206, %v679, 0
  %v722 = vsel %vm206, %v680, 0
  %v725 = vsel %vm206, %v681, 0
  %v728 = vsel %vm206, %v682, 0
  %v731 = vsel %vm206, %v683, 0
  %v734 = vsel %vm206, %v684, 0
  %v737 = vsel %vm206, %v685, 0
  %v740 = vsel %vm206, %v686, 0
  %v743 = vsel %vm206, %v687, 0
  %v746 = vsel %vm206, %v688, 0
  %v749 = vsel %vm206, %v689, 0
  %v752 = vsel %vm206, %v690, 0
  %v755 = vsel %vm206, %v691, 0
  %v758 = vsel %vm206, %v692, 0
  %v761 = vsel %vm206, %v693, 0
  %v764 = vsel %vm206, %v694, 0
  %v767 = vsel %vm206, %v695, 0
  %v770 = vsel %vm206, %v696, 0
  %772 = vmatprep.subr.bf16.mxu0 0
  %773 = vmatpush1.bf16.msra.mxu0 %v287
  %774 = vmatprep.subr.bf16.mxu0 0
  %775 = vmatpush1.bf16.msra.mxu0 0
  %776 = vmatprep.subr.bf16.mxu0 0
  %777 = vmatpush1.bf16.msra.mxu0 0
  %778 = vmatprep.subr.bf16.mxu0 0
  %779 = vmatpush1.bf16.msra.mxu0 0
  %780 = vmatprep.subr.bf16.mxu0 0
  %781 = vmatpush1.bf16.msra.mxu0 0
  %782 = vmatprep.subr.bf16.mxu0 0
  %783 = vmatpush1.bf16.msra.mxu0 0
  %784 = vmatprep.subr.bf16.mxu0 0
  %785 = vmatpush1.bf16.msra.mxu0 0
  %786 = vmatprep.subr.bf16.mxu0 0
  %787 = vmatpush1.bf16.msra.mxu0 0
  %788 = vmatprep.subr.bf16.mxu0 0
  %789 = vmatpush1.bf16.msra.mxu0 0
  %790 = vmatprep.subr.bf16.mxu0 0
  %791 = vmatpush1.bf16.msra.mxu0 0
  %792 = vmatprep.subr.bf16.mxu0 0
  %793 = vmatpush1.bf16.msra.mxu0 0
  %794 = vmatprep.subr.bf16.mxu0 0
  %795 = vmatpush1.bf16.msra.mxu0 0
  %796 = vmatprep.subr.bf16.mxu0 0
  %797 = vmatpush1.bf16.msra.mxu0 0
  %798 = vmatprep.subr.bf16.mxu0 0
  %799 = vmatpush1.bf16.msra.mxu0 0
  %800 = vmatprep.subr.bf16.mxu0 0
  %801 = vmatpush1.bf16.msra.mxu0 0
  %802 = vmatprep.subr.bf16.mxu0 0
  %803 = vmatpush1.bf16.msra.mxu0 0
  %804 = vmatprep.mubr.bf16.mxu0 0
  %805 = vmatmul.mubr.bf16.gmra.mrb[0].mxu0 %v698
  %v806 = vpop.f32.mrb[0].mxu0
  %v807 = vadd.f32 0.0, %v806
  %v808 = vpop.f32.mrb[0].mxu0
  %v809 = vpop.f32.mrb[0].mxu0
  %v810 = vadd.f32 0.0, %v809
  %v811 = vpop.f32.mrb[0].mxu0
  %812 = vmatprep.mubr.bf16.mxu0 0
  %813 = vmatmul.mubr.bf16.gmra.mrb[0].mxu0 %v701
  %v814 = vpop.f32.mrb[0].mxu0
  %v815 = vadd.f32 0.0, %v814
  %v816 = vpop.f32.mrb[0].mxu0
  %v817 = vpop.f32.mrb[0].mxu0
  %v818 = vadd.f32 0.0, %v817
  %v819 = vpop.f32.mrb[0].mxu0
  %820 = vmatprep.mubr.bf16.mxu0 0
  %821 = vmatmul.mubr.bf16.gmra.mrb[0].mxu0 %v704
  %v822 = vpop.f32.mrb[0].mxu0
  %v823 = vadd.f32 0.0, %v822
  %v824 = vpop.f32.mrb[0].mxu0
  %v825 = vpop.f32.mrb[0].mxu0
  %v826 = vadd.f32 0.0, %v825
  %v827 = vpop.f32.mrb[0].mxu0
  %828 = vmatprep.mubr.bf16.mxu0 0
  %829 = vmatmul.mubr.bf16.gmra.mrb[0].mxu0 %v707
  %v830 = vpop.f32.mrb[0].mxu0
  %v831 = vadd.f32 0.0, %v830
  %v832 = vpop.f32.mrb[0].mxu0
  %v833 = vpop.f32.mrb[0].mxu0
  %v834 = vadd.f32 0.0, %v833
  %v835 = vpop.f32.mrb[0].mxu0
  %836 = vmatprep.mubr.bf16.mxu0 0
  %837 = vmatmul.mubr.bf16.gmra.mrb[0].mxu0 %v710
  %v838 = vpop.f32.mrb[0].mxu0
  %v839 = vadd.f32 0.0, %v838
  %v840 = vpop.f32.mrb[0].mxu0
  %v841 = vpop.f32.mrb[0].mxu0
  %v842 = vadd.f32 0.0, %v841
  %v843 = vpop.f32.mrb[0].mxu0
  %844 = vmatprep.mubr.bf16.mxu0 0
  %845 = vmatmul.mubr.bf16.gmra.mrb[0].mxu0 %v713
  %v846 = vpop.f32.mrb[0].mxu0
  %v847 = vadd.f32 0.0, %v846
  %v848 = vpop.f32.mrb[0].mxu0
  %v849 = vpop.f32.mrb[0].mxu0
  %v850 = vadd.f32 0.0, %v849
  %v851 = vpop.f32.mrb[0].mxu0
  %852 = vmatprep.mubr.bf16.mxu0 0
  %853 = vmatmul.mubr.bf16.gmra.mrb[0].mxu0 %v716
  %v854 = vpop.f32.mrb[0].mxu0
  %v855 = vadd.f32 0.0, %v854
  %v856 = vpop.f32.mrb[0].mxu0
  %v857 = vpop.f32.mrb[0].mxu0
  %v858 = vadd.f32 0.0, %v857
  %v859 = vpop.f32.mrb[0].mxu0
  %860 = vmatprep.mubr.bf16.mxu0 0
  %861 = vmatmul.mubr.bf16.gmra.mrb[0].mxu0 %v719
  %v862 = vpop.f32.mrb[0].mxu0
  %v863 = vadd.f32 0.0, %v862
  %v864 = vpop.f32.mrb[0].mxu0
  %v865 = vpop.f32.mrb[0].mxu0
  %v866 = vadd.f32 0.0, %v865
  %v867 = vpop.f32.mrb[0].mxu0
  %868 = vmatprep.mubr.bf16.mxu0 0
  %869 = vmatmul.mubr.bf16.gmra.mrb[0].mxu0 %v722
  %v870 = vpop.f32.mrb[0].mxu0
  %v871 = vadd.f32 0.0, %v870
  %v872 = vpop.f32.mrb[0].mxu0
  %v873 = vpop.f32.mrb[0].mxu0
  %v874 = vadd.f32 0.0, %v873
  %v875 = vpop.f32.mrb[0].mxu0
  %876 = vmatprep.mubr.bf16.mxu0 0
  %877 = vmatmul.mubr.bf16.gmra.mrb[0].mxu0 %v725
  %v878 = vpop.f32.mrb[0].mxu0
  %v879 = vadd.f32 0.0, %v878
  %v880 = vpop.f32.mrb[0].mxu0
  %v881 = vpop.f32.mrb[0].mxu0
  %v882 = vadd.f32 0.0, %v881
  %v883 = vpop.f32.mrb[0].mxu0
  %884 = vmatprep.mubr.bf16.mxu0 0
  %885 = vmatmul.mubr.bf16.gmra.mrb[0].mxu0 %v728
  %v886 = vpop.f32.mrb[0].mxu0
  %v887 = vadd.f32 0.0, %v886
  %v888 = vpop.f32.mrb[0].mxu0
  %v889 = vpop.f32.mrb[0].mxu0
  %v890 = vadd.f32 0.0, %v889
  %v891 = vpop.f32.mrb[0].mxu0
  %892 = vmatprep.mubr.bf16.mxu0 0
  %893 = vmatmul.mubr.bf16.gmra.mrb[0].mxu0 %v731
  %v894 = vpop.f32.mrb[0].mxu0
  %v895 = vadd.f32 0.0, %v894
  %v896 = vpop.f32.mrb[0].mxu0
  %v897 = vpop.f32.mrb[0].mxu0
  %v898 = vadd.f32 0.0, %v897
  %v899 = vpop.f32.mrb[0].mxu0
  %900 = vmatprep.mubr.bf16.mxu0 0
  %901 = vmatmul.mubr.bf16.gmra.mrb[0].mxu0 %v734
  %v902 = vpop.f32.mrb[0].mxu0
  %v903 = vadd.f32 0.0, %v902
  %v904 = vpop.f32.mrb[0].mxu0
  %v905 = vpop.f32.mrb[0].mxu0
  %v906 = vadd.f32 0.0, %v905
  %v907 = vpop.f32.mrb[0].mxu0
  %908 = vmatprep.mubr.bf16.mxu0 0
  %909 = vmatmul.mubr.bf16.gmra.mrb[0].mxu0 %v737
  %v910 = vpop.f32.mrb[0].mxu0
  %v911 = vadd.f32 0.0, %v910
  %v912 = vpop.f32.mrb[0].mxu0
  %v913 = vpop.f32.mrb[0].mxu0
  %v914 = vadd.f32 0.0, %v913
  %v915 = vpop.f32.mrb[0].mxu0
  %916 = vmatprep.mubr.bf16.mxu0 0
  %917 = vmatmul.mubr.bf16.gmra.mrb[0].mxu0 %v740
  %v918 = vpop.f32.mrb[0].mxu0
  %v919 = vadd.f32 0.0, %v918
  %v920 = vpop.f32.mrb[0].mxu0
  %v921 = vpop.f32.mrb[0].mxu0
  %v922 = vadd.f32 0.0, %v921
  %v923 = vpop.f32.mrb[0].mxu0
  %924 = vmatprep.mubr.bf16.mxu0 0
  %925 = vmatmul.mubr.bf16.gmra.mrb[0].mxu0 %v743
  %v926 = vpop.f32.mrb[0].mxu0
  %v927 = vadd.f32 0.0, %v926
  %v928 = vpop.f32.mrb[0].mxu0
  %v929 = vpop.f32.mrb[0].mxu0
  %v930 = vadd.f32 0.0, %v929
  %v931 = vpop.f32.mrb[0].mxu0
  %932 = vmatprep.mubr.bf16.mxu0 0
  %933 = vmatmul.mubr.bf16.gmra.mrb[0].mxu0 %v746
  %v934 = vpop.f32.mrb[0].mxu0
  %v935 = vadd.f32 0.0, %v934
  %v936 = vpop.f32.mrb[0].mxu0
  %v937 = vpop.f32.mrb[0].mxu0
  %v938 = vadd.f32 0.0, %v937
  %v939 = vpop.f32.mrb[0].mxu0
  %940 = vmatprep.mubr.bf16.mxu0 0
  %941 = vmatmul.mubr.bf16.gmra.mrb[0].mxu0 %v749
  %v942 = vpop.f32.mrb[0].mxu0
  %v943 = vadd.f32 0.0, %v942
  %v944 = vpop.f32.mrb[0].mxu0
  %v945 = vpop.f32.mrb[0].mxu0
  %v946 = vadd.f32 0.0, %v945
  %v947 = vpop.f32.mrb[0].mxu0
  %948 = vmatprep.mubr.bf16.mxu0 0
  %949 = vmatmul.mubr.bf16.gmra.mrb[0].mxu0 %v752
  %v950 = vpop.f32.mrb[0].mxu0
  %v951 = vadd.f32 0.0, %v950
  %v952 = vpop.f32.mrb[0].mxu0
  %v953 = vpop.f32.mrb[0].mxu0
  %v954 = vadd.f32 0.0, %v953
  %v955 = vpop.f32.mrb[0].mxu0
  %956 = vmatprep.mubr.bf16.mxu0 0
  %957 = vmatmul.mubr.bf16.gmra.mrb[0].mxu0 %v755
  %v958 = vpop.f32.mrb[0].mxu0
  %v959 = vadd.f32 0.0, %v958
  %v960 = vpop.f32.mrb[0].mxu0
  %v961 = vpop.f32.mrb[0].mxu0
  %v962 = vadd.f32 0.0, %v961
  %v963 = vpop.f32.mrb[0].mxu0
  %964 = vmatprep.mubr.bf16.mxu0 0
  %965 = vmatmul.mubr.bf16.gmra.mrb[0].mxu0 %v758
  %v966 = vpop.f32.mrb[0].mxu0
  %v967 = vadd.f32 0.0, %v966
  %v968 = vpop.f32.mrb[0].mxu0
  %v969 = vpop.f32.mrb[0].mxu0
  %v970 = vadd.f32 0.0, %v969
  %v971 = vpop.f32.mrb[0].mxu0
  %972 = vmatprep.mubr.bf16.mxu0 0
  %973 = vmatmul.mubr.bf16.gmra.mrb[0].mxu0 %v761
  %v974 = vpop.f32.mrb[0].mxu0
  %v975 = vadd.f32 0.0, %v974
  %v976 = vpop.f32.mrb[0].mxu0
  %v977 = vpop.f32.mrb[0].mxu0
  %v978 = vadd.f32 0.0, %v977
  %v979 = vpop.f32.mrb[0].mxu0
  %980 = vmatprep.mubr.bf16.mxu0 0
  %981 = vmatmul.mubr.bf16.gmra.mrb[0].mxu0 %v764
  %v982 = vpop.f32.mrb[0].mxu0
  %v983 = vadd.f32 0.0, %v982
  %v984 = vpop.f32.mrb[0].mxu0
  %v985 = vpop.f32.mrb[0].mxu0
  %v986 = vadd.f32 0.0, %v985
  %v987 = vpop.f32.mrb[0].mxu0
  %988 = vmatprep.mubr.bf16.mxu0 0
  %989 = vmatmul.mubr.bf16.gmra.mrb[0].mxu0 %v767
  %v990 = vpop.f32.mrb[0].mxu0
  %v991 = vadd.f32 0.0, %v990
  %v992 = vpop.f32.mrb[0].mxu0
  %v993 = vpop.f32.mrb[0].mxu0
  %v994 = vadd.f32 0.0, %v993
  %v995 = vpop.f32.mrb[0].mxu0
  %996 = vmatprep.mubr.bf16.mxu0 0
  %997 = vmatmul.mubr.bf16.gmra.mrb[0].mxu0 %v770
  %v998 = vpop.f32.mrb[0].mxu0
  %v999 = vadd.f32 0.0, %v998
  %v1000 = vpop.f32.mrb[0].mxu0
  %v1001 = vpop.f32.mrb[0].mxu0
  %v1002 = vadd.f32 0.0, %v1001
  %v1003 = vpop.f32.mrb[0].mxu0
  %1004 = vdwg.mxu0
  %v1005 = vmax.f32 %v324, %v807
  %v1006 = vmax.f32 %v327, %v810
  %v1007 = vmax.f32 %v332, %v815
  %v1008 = vmax.f32 %v335, %v818
  %v1009 = vmax.f32 %v340, %v823
  %v1010 = vmax.f32 %v343, %v826
  %v1011 = vmax.f32 %v348, %v831
  %v1012 = vmax.f32 %v351, %v834
  %v1013 = vmax.f32 %v356, %v839
  %v1014 = vmax.f32 %v359, %v842
  %v1015 = vmax.f32 %v364, %v847
  %v1016 = vmax.f32 %v367, %v850
  %v1017 = vmax.f32 %v372, %v855
  %v1018 = vmax.f32 %v375, %v858
  %v1019 = vmax.f32 %v380, %v863
  %v1020 = vmax.f32 %v383, %v866
  %v1021 = vmax.f32 %v388, %v871
  %v1022 = vmax.f32 %v391, %v874
  %v1023 = vmax.f32 %v396, %v879
  %v1024 = vmax.f32 %v399, %v882
  %v1025 = vmax.f32 %v404, %v887
  %v1026 = vmax.f32 %v407, %v890
  %v1027 = vmax.f32 %v412, %v895
  %v1028 = vmax.f32 %v415, %v898
  %v1029 = vmax.f32 %v420, %v903
  %v1030 = vmax.f32 %v423, %v906
  %v1031 = vmax.f32 %v428, %v911
  %v1032 = vmax.f32 %v431, %v914
  %v1033 = vmax.f32 %v436, %v919
  %v1034 = vmax.f32 %v439, %v922
  %v1035 = vmax.f32 %v444, %v927
  %v1036 = vmax.f32 %v447, %v930
  %v1037 = vmax.f32 %v452, %v935
  %v1038 = vmax.f32 %v455, %v938
  %v1039 = vmax.f32 %v460, %v943
  %v1040 = vmax.f32 %v463, %v946
  %v1041 = vmax.f32 %v468, %v951
  %v1042 = vmax.f32 %v471, %v954
  %v1043 = vmax.f32 %v476, %v959
  %v1044 = vmax.f32 %v479, %v962
  %v1045 = vmax.f32 %v484, %v967
  %v1046 = vmax.f32 %v487, %v970
  %v1047 = vmax.f32 %v492, %v975
  %v1048 = vmax.f32 %v495, %v978
  %v1049 = vmax.f32 %v500, %v983
  %v1050 = vmax.f32 %v503, %v986
  %v1051 = vmax.f32 %v508, %v991
  %v1052 = vmax.f32 %v511, %v994
  %v1053 = vmax.f32 %v516, %v999
  %v1054 = vmax.f32 %v519, %v1002
  %v1055 = vld [vmem:[%s2] sm:$0xf]
  %v1056 = vld [vmem:[%s2 + $0x4] sm:$0xf]
  %v1057 = vld [vmem:[%s2 + $0x8] sm:$0xf]
  %v1058 = vld [vmem:[%s2 + $0xc] sm:$0xf]
  %v1059 = vld [vmem:[%s2 + $0x10] sm:$0xf]
  %v1060 = vld [vmem:[%s2 + $0x14] sm:$0xf]
  %v1061 = vld [vmem:[%s2 + $0x18] sm:$0xf]
  %v1062 = vld [vmem:[%s2 + $0x1c] sm:$0xf]
  %v1063 = vld [vmem:[%s2 + $0x20] sm:$0xf]
  %v1064 = vld [vmem:[%s2 + $0x24] sm:$0xf]
  %v1065 = vld [vmem:[%s2 + $0x28] sm:$0xf]
  %v1066 = vld [vmem:[%s2 + $0x2c] sm:$0xf]
  %v1067 = vld [vmem:[%s2 + $0x30] sm:$0xf]
  %v1068 = vld [vmem:[%s2 + $0x34] sm:$0xf]
  %v1069 = vld [vmem:[%s2 + $0x38] sm:$0xf]
  %v1070 = vld [vmem:[%s2 + $0x3c] sm:$0xf]
  %v1071 = vld [vmem:[%s2 + $0x40] sm:$0xf]
  %v1072 = vld [vmem:[%s2 + $0x44] sm:$0xf]
  %v1073 = vld [vmem:[%s2 + $0x48] sm:$0xf]
  %v1074 = vld [vmem:[%s2 + $0x4c] sm:$0xf]
  %v1075 = vld [vmem:[%s2 + $0x50] sm:$0xf]
  %v1076 = vld [vmem:[%s2 + $0x54] sm:$0xf]
  %v1077 = vld [vmem:[%s2 + $0x58] sm:$0xf]
  %v1078 = vld [vmem:[%s2 + $0x5c] sm:$0xf]
  %v1079 = vld [vmem:[%s2 + $0x60] sm:$0xf]
  %v1080 = vld [vmem:[%s2 + $0x64] sm:$0xf]
  %v1081 = vld [vmem:[%s2 + $0x68] sm:$0xf]
  %v1082 = vld [vmem:[%s2 + $0x6c] sm:$0xf]
  %v1083 = vld [vmem:[%s2 + $0x70] sm:$0xf]
  %v1084 = vld [vmem:[%s2 + $0x74] sm:$0xf]
  %v1085 = vld [vmem:[%s2 + $0x78] sm:$0xf]
  %v1086 = vld [vmem:[%s2 + $0x7c] sm:$0xf]
  %v1087 = vld [vmem:[%s2 + $0x80] sm:$0xf]
  %v1088 = vld [vmem:[%s2 + $0x84] sm:$0xf]
  %v1089 = vld [vmem:[%s2 + $0x88] sm:$0xf]
  %v1090 = vld [vmem:[%s2 + $0x8c] sm:$0xf]
  %v1091 = vld [vmem:[%s2 + $0x90] sm:$0xf]
  %v1092 = vld [vmem:[%s2 + $0x94] sm:$0xf]
  %v1093 = vld [vmem:[%s2 + $0x98] sm:$0xf]
  %v1094 = vld [vmem:[%s2 + $0x9c] sm:$0xf]
  %v1095 = vld [vmem:[%s2 + $0xa0] sm:$0xf]
  %v1096 = vld [vmem:[%s2 + $0xa4] sm:$0xf]
  %v1097 = vld [vmem:[%s2 + $0xa8] sm:$0xf]
  %v1098 = vld [vmem:[%s2 + $0xac] sm:$0xf]
  %v1099 = vld [vmem:[%s2 + $0xb0] sm:$0xf]
  %v1100 = vld [vmem:[%s2 + $0xb4] sm:$0xf]
  %v1101 = vld [vmem:[%s2 + $0xb8] sm:$0xf]
  %v1102 = vld [vmem:[%s2 + $0xbc] sm:$0xf]
  %v1103 = vld [vmem:[%s2 + $0xc0] sm:$0xf]
  %v1104 = vld [vmem:[%s2 + $0xc4] sm:$0xf]
  %v1155 = vunpack.c.l.b16 %v1055
  %v1156 = vunpack.c.l.b16 %v1056
  %v1157 = vunpack.c.l.b16 %v1057
  %v1158 = vunpack.c.l.b16 %v1058
  %v1159 = vunpack.c.l.b16 %v1059
  %v1160 = vunpack.c.l.b16 %v1060
  %v1161 = vunpack.c.l.b16 %v1061
  %v1162 = vunpack.c.l.b16 %v1062
  %v1163 = vunpack.c.l.b16 %v1063
  %v1164 = vunpack.c.l.b16 %v1064
  %v1165 = vunpack.c.l.b16 %v1065
  %v1166 = vunpack.c.l.b16 %v1066
  %v1167 = vunpack.c.l.b16 %v1067
  %v1168 = vunpack.c.l.b16 %v1068
  %v1169 = vunpack.c.l.b16 %v1069
  %v1170 = vunpack.c.l.b16 %v1070
  %v1171 = vunpack.c.l.b16 %v1071
  %v1172 = vunpack.c.l.b16 %v1072
  %v1173 = vunpack.c.l.b16 %v1073
  %v1174 = vunpack.c.l.b16 %v1074
  %v1175 = vunpack.c.l.b16 %v1075
  %v1176 = vunpack.c.l.b16 %v1076
  %v1177 = vunpack.c.l.b16 %v1077
  %v1178 = vunpack.c.l.b16 %v1078
  %v1179 = vunpack.c.l.b16 %v1079
  %v1180 = vunpack.c.l.b16 %v1080
  %v1181 = vunpack.c.l.b16 %v1081
  %v1182 = vunpack.c.l.b16 %v1082
  %v1183 = vunpack.c.l.b16 %v1083
  %v1184 = vunpack.c.l.b16 %v1084
  %v1185 = vunpack.c.l.b16 %v1085
  %v1186 = vunpack.c.l.b16 %v1086
  %v1187 = vunpack.c.l.b16 %v1087
  %v1188 = vunpack.c.l.b16 %v1088
  %v1189 = vunpack.c.l.b16 %v1089
  %v1190 = vunpack.c.l.b16 %v1090
  %v1191 = vunpack.c.l.b16 %v1091
  %v1192 = vunpack.c.l.b16 %v1092
  %v1193 = vunpack.c.l.b16 %v1093
  %v1194 = vunpack.c.l.b16 %v1094
  %v1195 = vunpack.c.l.b16 %v1095
  %v1196 = vunpack.c.l.b16 %v1096
  %v1197 = vunpack.c.l.b16 %v1097
  %v1198 = vunpack.c.l.b16 %v1098
  %v1199 = vunpack.c.l.b16 %v1099
  %v1200 = vunpack.c.l.b16 %v1100
  %v1201 = vunpack.c.l.b16 %v1101
  %v1202 = vunpack.c.l.b16 %v1102
  %v1203 = vunpack.c.l.b16 %v1103
  %v1204 = vunpack.c.l.b16 %v1104
  %v1205 = vpack.c.b16 %v1156, %v1155
  %v1206 = vpack.c.b16 %v1158, %v1157
  %v1207 = vpack.c.b16 %v1160, %v1159
  %v1208 = vpack.c.b16 %v1162, %v1161
  %v1209 = vpack.c.b16 %v1164, %v1163
  %v1210 = vpack.c.b16 %v1166, %v1165
  %v1211 = vpack.c.b16 %v1168, %v1167
  %v1212 = vpack.c.b16 %v1170, %v1169
  %v1213 = vpack.c.b16 %v1172, %v1171
  %v1214 = vpack.c.b16 %v1174, %v1173
  %v1215 = vpack.c.b16 %v1176, %v1175
  %v1216 = vpack.c.b16 %v1178, %v1177
  %v1217 = vpack.c.b16 %v1180, %v1179
  %v1218 = vpack.c.b16 %v1182, %v1181
  %v1219 = vpack.c.b16 %v1184, %v1183
  %v1220 = vpack.c.b16 %v1186, %v1185
  %v1221 = vpack.c.b16 %v1188, %v1187
  %v1222 = vpack.c.b16 %v1190, %v1189
  %v1223 = vpack.c.b16 %v1192, %v1191
  %v1224 = vpack.c.b16 %v1194, %v1193
  %v1225 = vpack.c.b16 %v1196, %v1195
  %v1226 = vpack.c.b16 %v1198, %v1197
  %v1227 = vpack.c.b16 %v1200, %v1199
  %v1228 = vpack.c.b16 %v1202, %v1201
  %v1229 = vpack.c.b16 %v1204, %v1203
  %v1231 = vsel %vm206, %v1205, 0
  %v1234 = vsel %vm206, %v1206, 0
  %v1237 = vsel %vm206, %v1207, 0
  %v1240 = vsel %vm206, %v1208, 0
  %v1243 = vsel %vm206, %v1209, 0
  %v1246 = vsel %vm206, %v1210, 0
  %v1249 = vsel %vm206, %v1211, 0
  %v1252 = vsel %vm206, %v1212, 0
  %v1255 = vsel %vm206, %v1213, 0
  %v1258 = vsel %vm206, %v1214, 0
  %v1261 = vsel %vm206, %v1215, 0
  %v1264 = vsel %vm206, %v1216, 0
  %v1267 = vsel %vm206, %v1217, 0
  %v1270 = vsel %vm206, %v1218, 0
  %v1273 = vsel %vm206, %v1219, 0
  %v1276 = vsel %vm206, %v1220, 0
  %v1279 = vsel %vm206, %v1221, 0
  %v1282 = vsel %vm206, %v1222, 0
  %v1285 = vsel %vm206, %v1223, 0
  %v1288 = vsel %vm206, %v1224, 0
  %v1291 = vsel %vm206, %v1225, 0
  %v1294 = vsel %vm206, %v1226, 0
  %v1297 = vsel %vm206, %v1227, 0
  %v1300 = vsel %vm206, %v1228, 0
  %v1303 = vsel %vm206, %v1229, 0
  %1305 = vmatprep.subr.bf16.mxu0 0
  %1306 = vmatpush1.bf16.msra.mxu0 %v287
  %1307 = vmatprep.subr.bf16.mxu0 0
  %1308 = vmatpush1.bf16.msra.mxu0 0
  %1309 = vmatprep.subr.bf16.mxu0 0
  %1310 = vmatpush1.bf16.msra.mxu0 0
  %1311 = vmatprep.subr.bf16.mxu0 0
  %1312 = vmatpush1.bf16.msra.mxu0 0
  %1313 = vmatprep.subr.bf16.mxu0 0
  %1314 = vmatpush1.bf16.msra.mxu0 0
  %1315 = vmatprep.subr.bf16.mxu0 0
  %1316 = vmatpush1.bf16.msra.mxu0 0
  %1317 = vmatprep.subr.bf16.mxu0 0
  %1318 = vmatpush1.bf16.msra.mxu0 0
  %1319 = vmatprep.subr.bf16.mxu0 0
  %1320 = vmatpush1.bf16.msra.mxu0 0
  %1321 = vmatprep.subr.bf16.mxu0 0
  %1322 = vmatpush1.bf16.msra.mxu0 0
  %1323 = vmatprep.subr.bf16.mxu0 0
  %1324 = vmatpush1.bf16.msra.mxu0 0
  %1325 = vmatprep.subr.bf16.mxu0 0
  %1326 = vmatpush1.bf16.msra.mxu0 0
  %1327 = vmatprep.subr.bf16.mxu0 0
  %1328 = vmatpush1.bf16.msra.mxu0 0
  %1329 = vmatprep.subr.bf16.mxu0 0
  %1330 = vmatpush1.bf16.msra.mxu0 0
  %1331 = vmatprep.subr.bf16.mxu0 0
  %1332 = vmatpush1.bf16.msra.mxu0 0
  %1333 = vmatprep.subr.bf16.mxu0 0
  %1334 = vmatpush1.bf16.msra.mxu0 0
  %1335 = vmatprep.subr.bf16.mxu0 0
  %1336 = vmatpush1.bf16.msra.mxu0 0
  %1337 = vmatprep.mubr.bf16.mxu0 0
  %1338 = vmatmul.mubr.bf16.gmra.mrb[0].mxu0 %v1231
  %v1339 = vpop.f32.mrb[0].mxu0
  %v1340 = vadd.f32 0.0, %v1339
  %v1341 = vpop.f32.mrb[0].mxu0
  %v1342 = vpop.f32.mrb[0].mxu0
  %v1343 = vadd.f32 0.0, %v1342
  %v1344 = vpop.f32.mrb[0].mxu0
  %1345 = vmatprep.mubr.bf16.mxu0 0
  %1346 = vmatmul.mubr.bf16.gmra.mrb[0].mxu0 %v1234
  %v1347 = vpop.f32.mrb[0].mxu0
  %v1348 = vadd.f32 0.0, %v1347
  %v1349 = vpop.f32.mrb[0].mxu0
  %v1350 = vpop.f32.mrb[0].mxu0
  %v1351 = vadd.f32 0.0, %v1350
  %v1352 = vpop.f32.mrb[0].mxu0
  %1353 = vmatprep.mubr.bf16.mxu0 0
  %1354 = vmatmul.mubr.bf16.gmra.mrb[0].mxu0 %v1237
  %v1355 = vpop.f32.mrb[0].mxu0
  %v1356 = vadd.f32 0.0, %v1355
  %v1357 = vpop.f32.mrb[0].mxu0
  %v1358 = vpop.f32.mrb[0].mxu0
  %v1359 = vadd.f32 0.0, %v1358
  %v1360 = vpop.f32.mrb[0].mxu0
  %1361 = vmatprep.mubr.bf16.mxu0 0
  %1362 = vmatmul.mubr.bf16.gmra.mrb[0].mxu0 %v1240
  %v1363 = vpop.f32.mrb[0].mxu0
  %v1364 = vadd.f32 0.0, %v1363
  %v1365 = vpop.f32.mrb[0].mxu0
  %v1366 = vpop.f32.mrb[0].mxu0
  %v1367 = vadd.f32 0.0, %v1366
  %v1368 = vpop.f32.mrb[0].mxu0
  %1369 = vmatprep.mubr.bf16.mxu0 0
  %1370 = vmatmul.mubr.bf16.gmra.mrb[0].mxu0 %v1243
  %v1371 = vpop.f32.mrb[0].mxu0
  %v1372 = vadd.f32 0.0, %v1371
  %v1373 = vpop.f32.mrb[0].mxu0
  %v1374 = vpop.f32.mrb[0].mxu0
  %v1375 = vadd.f32 0.0, %v1374
  %v1376 = vpop.f32.mrb[0].mxu0
  %1377 = vmatprep.mubr.bf16.mxu0 0
  %1378 = vmatmul.mubr.bf16.gmra.mrb[0].mxu0 %v1246
  %v1379 = vpop.f32.mrb[0].mxu0
  %v1380 = vadd.f32 0.0, %v1379
  %v1381 = vpop.f32.mrb[0].mxu0
  %v1382 = vpop.f32.mrb[0].mxu0
  %v1383 = vadd.f32 0.0, %v1382
  %v1384 = vpop.f32.mrb[0].mxu0
  %1385 = vmatprep.mubr.bf16.mxu0 0
  %1386 = vmatmul.mubr.bf16.gmra.mrb[0].mxu0 %v1249
  %v1387 = vpop.f32.mrb[0].mxu0
  %v1388 = vadd.f32 0.0, %v1387
  %v1389 = vpop.f32.mrb[0].mxu0
  %v1390 = vpop.f32.mrb[0].mxu0
  %v1391 = vadd.f32 0.0, %v1390
  %v1392 = vpop.f32.mrb[0].mxu0
  %1393 = vmatprep.mubr.bf16.mxu0 0
  %1394 = vmatmul.mubr.bf16.gmra.mrb[0].mxu0 %v1252
  %v1395 = vpop.f32.mrb[0].mxu0
  %v1396 = vadd.f32 0.0, %v1395
  %v1397 = vpop.f32.mrb[0].mxu0
  %v1398 = vpop.f32.mrb[0].mxu0
  %v1399 = vadd.f32 0.0, %v1398
  %v1400 = vpop.f32.mrb[0].mxu0
  %1401 = vmatprep.mubr.bf16.mxu0 0
  %1402 = vmatmul.mubr.bf16.gmra.mrb[0].mxu0 %v1255
  %v1403 = vpop.f32.mrb[0].mxu0
  %v1404 = vadd.f32 0.0, %v1403
  %v1405 = vpop.f32.mrb[0].mxu0
  %v1406 = vpop.f32.mrb[0].mxu0
  %v1407 = vadd.f32 0.0, %v1406
  %v1408 = vpop.f32.mrb[0].mxu0
  %1409 = vmatprep.mubr.bf16.mxu0 0
  %1410 = vmatmul.mubr.bf16.gmra.mrb[0].mxu0 %v1258
  %v1411 = vpop.f32.mrb[0].mxu0
  %v1412 = vadd.f32 0.0, %v1411
  %v1413 = vpop.f32.mrb[0].mxu0
  %v1414 = vpop.f32.mrb[0].mxu0
  %v1415 = vadd.f32 0.0, %v1414
  %v1416 = vpop.f32.mrb[0].mxu0
  %1417 = vmatprep.mubr.bf16.mxu0 0
  %1418 = vmatmul.mubr.bf16.gmra.mrb[0].mxu0 %v1261
  %v1419 = vpop.f32.mrb[0].mxu0
  %v1420 = vadd.f32 0.0, %v1419
  %v1421 = vpop.f32.mrb[0].mxu0
  %v1422 = vpop.f32.mrb[0].mxu0
  %v1423 = vadd.f32 0.0, %v1422
  %v1424 = vpop.f32.mrb[0].mxu0
  %1425 = vmatprep.mubr.bf16.mxu0 0
  %1426 = vmatmul.mubr.bf16.gmra.mrb[0].mxu0 %v1264
  %v1427 = vpop.f32.mrb[0].mxu0
  %v1428 = vadd.f32 0.0, %v1427
  %v1429 = vpop.f32.mrb[0].mxu0
  %v1430 = vpop.f32.mrb[0].mxu0
  %v1431 = vadd.f32 0.0, %v1430
  %v1432 = vpop.f32.mrb[0].mxu0
  %1433 = vmatprep.mubr.bf16.mxu0 0
  %1434 = vmatmul.mubr.bf16.gmra.mrb[0].mxu0 %v1267
  %v1435 = vpop.f32.mrb[0].mxu0
  %v1436 = vadd.f32 0.0, %v1435
  %v1437 = vpop.f32.mrb[0].mxu0
  %v1438 = vpop.f32.mrb[0].mxu0
  %v1439 = vadd.f32 0.0, %v1438
  %v1440 = vpop.f32.mrb[0].mxu0
  %1441 = vmatprep.mubr.bf16.mxu0 0
  %1442 = vmatmul.mubr.bf16.gmra.mrb[0].mxu0 %v1270
  %v1443 = vpop.f32.mrb[0].mxu0
  %v1444 = vadd.f32 0.0, %v1443
  %v1445 = vpop.f32.mrb[0].mxu0
  %v1446 = vpop.f32.mrb[0].mxu0
  %v1447 = vadd.f32 0.0, %v1446
  %v1448 = vpop.f32.mrb[0].mxu0
  %1449 = vmatprep.mubr.bf16.mxu0 0
  %1450 = vmatmul.mubr.bf16.gmra.mrb[0].mxu0 %v1273
  %v1451 = vpop.f32.mrb[0].mxu0
  %v1452 = vadd.f32 0.0, %v1451
  %v1453 = vpop.f32.mrb[0].mxu0
  %v1454 = vpop.f32.mrb[0].mxu0
  %v1455 = vadd.f32 0.0, %v1454
  %v1456 = vpop.f32.mrb[0].mxu0
  %1457 = vmatprep.mubr.bf16.mxu0 0
  %1458 = vmatmul.mubr.bf16.gmra.mrb[0].mxu0 %v1276
  %v1459 = vpop.f32.mrb[0].mxu0
  %v1460 = vadd.f32 0.0, %v1459
  %v1461 = vpop.f32.mrb[0].mxu0
  %v1462 = vpop.f32.mrb[0].mxu0
  %v1463 = vadd.f32 0.0, %v1462
  %v1464 = vpop.f32.mrb[0].mxu0
  %1465 = vmatprep.mubr.bf16.mxu0 0
  %1466 = vmatmul.mubr.bf16.gmra.mrb[0].mxu0 %v1279
  %v1467 = vpop.f32.mrb[0].mxu0
  %v1468 = vadd.f32 0.0, %v1467
  %v1469 = vpop.f32.mrb[0].mxu0
  %v1470 = vpop.f32.mrb[0].mxu0
  %v1471 = vadd.f32 0.0, %v1470
  %v1472 = vpop.f32.mrb[0].mxu0
  %1473 = vmatprep.mubr.bf16.mxu0 0
  %1474 = vmatmul.mubr.bf16.gmra.mrb[0].mxu0 %v1282
  %v1475 = vpop.f32.mrb[0].mxu0
  %v1476 = vadd.f32 0.0, %v1475
  %v1477 = vpop.f32.mrb[0].mxu0
  %v1478 = vpop.f32.mrb[0].mxu0
  %v1479 = vadd.f32 0.0, %v1478
  %v1480 = vpop.f32.mrb[0].mxu0
  %1481 = vmatprep.mubr.bf16.mxu0 0
  %1482 = vmatmul.mubr.bf16.gmra.mrb[0].mxu0 %v1285
  %v1483 = vpop.f32.mrb[0].mxu0
  %v1484 = vadd.f32 0.0, %v1483
  %v1485 = vpop.f32.mrb[0].mxu0
  %v1486 = vpop.f32.mrb[0].mxu0
  %v1487 = vadd.f32 0.0, %v1486
  %v1488 = vpop.f32.mrb[0].mxu0
  %1489 = vmatprep.mubr.bf16.mxu0 0
  %1490 = vmatmul.mubr.bf16.gmra.mrb[0].mxu0 %v1288
  %v1491 = vpop.f32.mrb[0].mxu0
  %v1492 = vadd.f32 0.0, %v1491
  %v1493 = vpop.f32.mrb[0].mxu0
  %v1494 = vpop.f32.mrb[0].mxu0
  %v1495 = vadd.f32 0.0, %v1494
  %v1496 = vpop.f32.mrb[0].mxu0
  %1497 = vmatprep.mubr.bf16.mxu0 0
  %1498 = vmatmul.mubr.bf16.gmra.mrb[0].mxu0 %v1291
  %v1499 = vpop.f32.mrb[0].mxu0
  %v1500 = vadd.f32 0.0, %v1499
  %v1501 = vpop.f32.mrb[0].mxu0
  %v1502 = vpop.f32.mrb[0].mxu0
  %v1503 = vadd.f32 0.0, %v1502
  %v1504 = vpop.f32.mrb[0].mxu0
  %1505 = vmatprep.mubr.bf16.mxu0 0
  %1506 = vmatmul.mubr.bf16.gmra.mrb[0].mxu0 %v1294
  %v1507 = vpop.f32.mrb[0].mxu0
  %v1508 = vadd.f32 0.0, %v1507
  %v1509 = vpop.f32.mrb[0].mxu0
  %v1510 = vpop.f32.mrb[0].mxu0
  %v1511 = vadd.f32 0.0, %v1510
  %v1512 = vpop.f32.mrb[0].mxu0
  %1513 = vmatprep.mubr.bf16.mxu0 0
  %1514 = vmatmul.mubr.bf16.gmra.mrb[0].mxu0 %v1297
  %v1515 = vpop.f32.mrb[0].mxu0
  %v1516 = vadd.f32 0.0, %v1515
  %v1517 = vpop.f32.mrb[0].mxu0
  %v1518 = vpop.f32.mrb[0].mxu0
  %v1519 = vadd.f32 0.0, %v1518
  %v1520 = vpop.f32.mrb[0].mxu0
  %1521 = vmatprep.mubr.bf16.mxu0 0
  %1522 = vmatmul.mubr.bf16.gmra.mrb[0].mxu0 %v1300
  %v1523 = vpop.f32.mrb[0].mxu0
  %v1524 = vadd.f32 0.0, %v1523
  %v1525 = vpop.f32.mrb[0].mxu0
  %v1526 = vpop.f32.mrb[0].mxu0
  %v1527 = vadd.f32 0.0, %v1526
  %v1528 = vpop.f32.mrb[0].mxu0
  %1529 = vmatprep.mubr.bf16.mxu0 0
  %1530 = vmatmul.mubr.bf16.gmra.mrb[0].mxu0 %v1303
  %v1531 = vpop.f32.mrb[0].mxu0
  %v1532 = vadd.f32 0.0, %v1531
  %v1533 = vpop.f32.mrb[0].mxu0
  %v1534 = vpop.f32.mrb[0].mxu0
  %v1535 = vadd.f32 0.0, %v1534
  %v1536 = vpop.f32.mrb[0].mxu0
  %1537 = vdwg.mxu0
  %v1538 = vmax.f32 %v1005, %v1340
  %v1539 = vmax.f32 %v1006, %v1343
  %v1540 = vmax.f32 %v1007, %v1348
  %v1541 = vmax.f32 %v1008, %v1351
  %v1542 = vmax.f32 %v1009, %v1356
  %v1543 = vmax.f32 %v1010, %v1359
  %v1544 = vmax.f32 %v1011, %v1364
  %v1545 = vmax.f32 %v1012, %v1367
  %v1546 = vmax.f32 %v1013, %v1372
  %v1547 = vmax.f32 %v1014, %v1375
  %v1548 = vmax.f32 %v1015, %v1380
  %v1549 = vmax.f32 %v1016, %v1383
  %v1550 = vmax.f32 %v1017, %v1388
  %v1551 = vmax.f32 %v1018, %v1391
  %v1552 = vmax.f32 %v1019, %v1396
  %v1553 = vmax.f32 %v1020, %v1399
  %v1554 = vmax.f32 %v1021, %v1404
  %v1555 = vmax.f32 %v1022, %v1407
  %v1556 = vmax.f32 %v1023, %v1412
  %v1557 = vmax.f32 %v1024, %v1415
  %v1558 = vmax.f32 %v1025, %v1420
  %v1559 = vmax.f32 %v1026, %v1423
  %v1560 = vmax.f32 %v1027, %v1428
  %v1561 = vmax.f32 %v1028, %v1431
  %v1562 = vmax.f32 %v1029, %v1436
  %v1563 = vmax.f32 %v1030, %v1439
  %v1564 = vmax.f32 %v1031, %v1444
  %v1565 = vmax.f32 %v1032, %v1447
  %v1566 = vmax.f32 %v1033, %v1452
  %v1567 = vmax.f32 %v1034, %v1455
  %v1568 = vmax.f32 %v1035, %v1460
  %v1569 = vmax.f32 %v1036, %v1463
  %v1570 = vmax.f32 %v1037, %v1468
  %v1571 = vmax.f32 %v1038, %v1471
  %v1572 = vmax.f32 %v1039, %v1476
  %v1573 = vmax.f32 %v1040, %v1479
  %v1574 = vmax.f32 %v1041, %v1484
  %v1575 = vmax.f32 %v1042, %v1487
  %v1576 = vmax.f32 %v1043, %v1492
  %v1577 = vmax.f32 %v1044, %v1495
  %v1578 = vmax.f32 %v1045, %v1500
  %v1579 = vmax.f32 %v1046, %v1503
  %v1580 = vmax.f32 %v1047, %v1508
  %v1581 = vmax.f32 %v1048, %v1511
  %v1582 = vmax.f32 %v1049, %v1516
  %v1583 = vmax.f32 %v1050, %v1519
  %v1584 = vmax.f32 %v1051, %v1524
  %v1585 = vmax.f32 %v1052, %v1527
  %v1586 = vmax.f32 %v1053, %v1532
  %v1587 = vmax.f32 %v1054, %v1535
  %v1588 = vld [vmem:[%s3] sm:$0xf]
  %v1589 = vld [vmem:[%s3 + $0x4] sm:$0xf]
  %v1590 = vld [vmem:[%s3 + $0x8] sm:$0xf]
  %v1591 = vld [vmem:[%s3 + $0xc] sm:$0xf]
  %v1592 = vld [vmem:[%s3 + $0x10] sm:$0xf]
  %v1593 = vld [vmem:[%s3 + $0x14] sm:$0xf]
  %v1594 = vld [vmem:[%s3 + $0x18] sm:$0xf]
  %v1595 = vld [vmem:[%s3 + $0x1c] sm:$0xf]
  %v1596 = vld [vmem:[%s3 + $0x20] sm:$0xf]
  %v1597 = vld [vmem:[%s3 + $0x24] sm:$0xf]
  %v1598 = vld [vmem:[%s3 + $0x28] sm:$0xf]
  %v1599 = vld [vmem:[%s3 + $0x2c] sm:$0xf]
  %v1600 = vld [vmem:[%s3 + $0x30] sm:$0xf]
  %v1601 = vld [vmem:[%s3 + $0x34] sm:$0xf]
  %v1602 = vld [vmem:[%s3 + $0x38] sm:$0xf]
  %v1603 = vld [vmem:[%s3 + $0x3c] sm:$0xf]
  %v1604 = vld [vmem:[%s3 + $0x40] sm:$0xf]
  %v1605 = vld [vmem:[%s3 + $0x44] sm:$0xf]
  %v1606 = vld [vmem:[%s3 + $0x48] sm:$0xf]
  %v1607 = vld [vmem:[%s3 + $0x4c] sm:$0xf]
  %v1608 = vld [vmem:[%s3 + $0x50] sm:$0xf]
  %v1609 = vld [vmem:[%s3 + $0x54] sm:$0xf]
  %v1610 = vld [vmem:[%s3 + $0x58] sm:$0xf]
  %v1611 = vld [vmem:[%s3 + $0x5c] sm:$0xf]
  %v1612 = vld [vmem:[%s3 + $0x60] sm:$0xf]
  %v1613 = vld [vmem:[%s3 + $0x64] sm:$0xf]
  %v1614 = vld [vmem:[%s3 + $0x68] sm:$0xf]
  %v1615 = vld [vmem:[%s3 + $0x6c] sm:$0xf]
  %v1616 = vld [vmem:[%s3 + $0x70] sm:$0xf]
  %v1617 = vld [vmem:[%s3 + $0x74] sm:$0xf]
  %v1618 = vld [vmem:[%s3 + $0x78] sm:$0xf]
  %v1619 = vld [vmem:[%s3 + $0x7c] sm:$0xf]
  %v1620 = vld [vmem:[%s3 + $0x80] sm:$0xf]
  %v1621 = vld [vmem:[%s3 + $0x84] sm:$0xf]
  %v1622 = vld [vmem:[%s3 + $0x88] sm:$0xf]
  %v1623 = vld [vmem:[%s3 + $0x8c] sm:$0xf]
  %v1624 = vld [vmem:[%s3 + $0x90] sm:$0xf]
  %v1625 = vld [vmem:[%s3 + $0x94] sm:$0xf]
  %v1626 = vld [vmem:[%s3 + $0x98] sm:$0xf]
  %v1627 = vld [vmem:[%s3 + $0x9c] sm:$0xf]
  %v1628 = vld [vmem:[%s3 + $0xa0] sm:$0xf]
  %v1629 = vld [vmem:[%s3 + $0xa4] sm:$0xf]
  %v1630 = vld [vmem:[%s3 + $0xa8] sm:$0xf]
  %v1631 = vld [vmem:[%s3 + $0xac] sm:$0xf]
  %v1632 = vld [vmem:[%s3 + $0xb0] sm:$0xf]
  %v1633 = vld [vmem:[%s3 + $0xb4] sm:$0xf]
  %v1634 = vld [vmem:[%s3 + $0xb8] sm:$0xf]
  %v1635 = vld [vmem:[%s3 + $0xbc] sm:$0xf]
  %v1636 = vld [vmem:[%s3 + $0xc0] sm:$0xf]
  %v1637 = vld [vmem:[%s3 + $0xc4] sm:$0xf]
  %v1688 = vunpack.c.l.b16 %v1588
  %v1689 = vunpack.c.l.b16 %v1589
  %v1690 = vunpack.c.l.b16 %v1590
  %v1691 = vunpack.c.l.b16 %v1591
  %v1692 = vunpack.c.l.b16 %v1592
  %v1693 = vunpack.c.l.b16 %v1593
  %v1694 = vunpack.c.l.b16 %v1594
  %v1695 = vunpack.c.l.b16 %v1595
  %v1696 = vunpack.c.l.b16 %v1596
  %v1697 = vunpack.c.l.b16 %v1597
  %v1698 = vunpack.c.l.b16 %v1598
  %v1699 = vunpack.c.l.b16 %v1599
  %v1700 = vunpack.c.l.b16 %v1600
  %v1701 = vunpack.c.l.b16 %v1601
  %v1702 = vunpack.c.l.b16 %v1602
  %v1703 = vunpack.c.l.b16 %v1603
  %v1704 = vunpack.c.l.b16 %v1604
  %v1705 = vunpack.c.l.b16 %v1605
  %v1706 = vunpack.c.l.b16 %v1606
  %v1707 = vunpack.c.l.b16 %v1607
  %v1708 = vunpack.c.l.b16 %v1608
  %v1709 = vunpack.c.l.b16 %v1609
  %v1710 = vunpack.c.l.b16 %v1610
  %v1711 = vunpack.c.l.b16 %v1611
  %v1712 = vunpack.c.l.b16 %v1612
  %v1713 = vunpack.c.l.b16 %v1613
  %v1714 = vunpack.c.l.b16 %v1614
  %v1715 = vunpack.c.l.b16 %v1615
  %v1716 = vunpack.c.l.b16 %v1616
  %v1717 = vunpack.c.l.b16 %v1617
  %v1718 = vunpack.c.l.b16 %v1618
  %v1719 = vunpack.c.l.b16 %v1619
  %v1720 = vunpack.c.l.b16 %v1620
  %v1721 = vunpack.c.l.b16 %v1621
  %v1722 = vunpack.c.l.b16 %v1622
  %v1723 = vunpack.c.l.b16 %v1623
  %v1724 = vunpack.c.l.b16 %v1624
  %v1725 = vunpack.c.l.b16 %v1625
  %v1726 = vunpack.c.l.b16 %v1626
  %v1727 = vunpack.c.l.b16 %v1627
  %v1728 = vunpack.c.l.b16 %v1628
  %v1729 = vunpack.c.l.b16 %v1629
  %v1730 = vunpack.c.l.b16 %v1630
  %v1731 = vunpack.c.l.b16 %v1631
  %v1732 = vunpack.c.l.b16 %v1632
  %v1733 = vunpack.c.l.b16 %v1633
  %v1734 = vunpack.c.l.b16 %v1634
  %v1735 = vunpack.c.l.b16 %v1635
  %v1736 = vunpack.c.l.b16 %v1636
  %v1737 = vunpack.c.l.b16 %v1637
  %v1738 = vpack.c.b16 %v1689, %v1688
  %v1739 = vpack.c.b16 %v1691, %v1690
  %v1740 = vpack.c.b16 %v1693, %v1692
  %v1741 = vpack.c.b16 %v1695, %v1694
  %v1742 = vpack.c.b16 %v1697, %v1696
  %v1743 = vpack.c.b16 %v1699, %v1698
  %v1744 = vpack.c.b16 %v1701, %v1700
  %v1745 = vpack.c.b16 %v1703, %v1702
  %v1746 = vpack.c.b16 %v1705, %v1704
  %v1747 = vpack.c.b16 %v1707, %v1706
  %v1748 = vpack.c.b16 %v1709, %v1708
  %v1749 = vpack.c.b16 %v1711, %v1710
  %v1750 = vpack.c.b16 %v1713, %v1712
  %v1751 = vpack.c.b16 %v1715, %v1714
  %v1752 = vpack.c.b16 %v1717, %v1716
  %v1753 = vpack.c.b16 %v1719, %v1718
  %v1754 = vpack.c.b16 %v1721, %v1720
  %v1755 = vpack.c.b16 %v1723, %v1722
  %v1756 = vpack.c.b16 %v1725, %v1724
  %v1757 = vpack.c.b16 %v1727, %v1726
  %v1758 = vpack.c.b16 %v1729, %v1728
  %v1759 = vpack.c.b16 %v1731, %v1730
  %v1760 = vpack.c.b16 %v1733, %v1732
  %v1761 = vpack.c.b16 %v1735, %v1734
  %v1762 = vpack.c.b16 %v1737, %v1736
  %v1764 = vsel %vm206, %v1738, 0
  %v1767 = vsel %vm206, %v1739, 0
  %v1770 = vsel %vm206, %v1740, 0
  %v1773 = vsel %vm206, %v1741, 0
  %v1776 = vsel %vm206, %v1742, 0
  %v1779 = vsel %vm206, %v1743, 0
  %v1782 = vsel %vm206, %v1744, 0
  %v1785 = vsel %vm206, %v1745, 0
  %v1788 = vsel %vm206, %v1746, 0
  %v1791 = vsel %vm206, %v1747, 0
  %v1794 = vsel %vm206, %v1748, 0
  %v1797 = vsel %vm206, %v1749, 0
  %v1800 = vsel %vm206, %v1750, 0
  %v1803 = vsel %vm206, %v1751, 0
  %v1806 = vsel %vm206, %v1752, 0
  %v1809 = vsel %vm206, %v1753, 0
  %v1812 = vsel %vm206, %v1754, 0
  %v1815 = vsel %vm206, %v1755, 0
  %v1818 = vsel %vm206, %v1756, 0
  %v1821 = vsel %vm206, %v1757, 0
  %v1824 = vsel %vm206, %v1758, 0
  %v1827 = vsel %vm206, %v1759, 0
  %v1830 = vsel %vm206, %v1760, 0
  %v1833 = vsel %vm206, %v1761, 0
  %v1836 = vsel %vm206, %v1762, 0
  %1838 = vmatprep.subr.bf16.mxu0 0
  %1839 = vmatpush1.bf16.msra.mxu0 %v287
  %1840 = vmatprep.subr.bf16.mxu0 0
  %1841 = vmatpush1.bf16.msra.mxu0 0
  %1842 = vmatprep.subr.bf16.mxu0 0
  %1843 = vmatpush1.bf16.msra.mxu0 0
  %1844 = vmatprep.subr.bf16.mxu0 0
  %1845 = vmatpush1.bf16.msra.mxu0 0
  %1846 = vmatprep.subr.bf16.mxu0 0
  %1847 = vmatpush1.bf16.msra.mxu0 0
  %1848 = vmatprep.subr.bf16.mxu0 0
  %1849 = vmatpush1.bf16.msra.mxu0 0
  %1850 = vmatprep.subr.bf16.mxu0 0
  %1851 = vmatpush1.bf16.msra.mxu0 0
  %1852 = vmatprep.subr.bf16.mxu0 0
  %1853 = vmatpush1.bf16.msra.mxu0 0
  %1854 = vmatprep.subr.bf16.mxu0 0
  %1855 = vmatpush1.bf16.msra.mxu0 0
  %1856 = vmatprep.subr.bf16.mxu0 0
  %1857 = vmatpush1.bf16.msra.mxu0 0
  %1858 = vmatprep.subr.bf16.mxu0 0
  %1859 = vmatpush1.bf16.msra.mxu0 0
  %1860 = vmatprep.subr.bf16.mxu0 0
  %1861 = vmatpush1.bf16.msra.mxu0 0
  %1862 = vmatprep.subr.bf16.mxu0 0
  %1863 = vmatpush1.bf16.msra.mxu0 0
  %1864 = vmatprep.subr.bf16.mxu0 0
  %1865 = vmatpush1.bf16.msra.mxu0 0
  %1866 = vmatprep.subr.bf16.mxu0 0
  %1867 = vmatpush1.bf16.msra.mxu0 0
  %1868 = vmatprep.subr.bf16.mxu0 0
  %1869 = vmatpush1.bf16.msra.mxu0 0
  %1870 = vmatprep.mubr.bf16.mxu0 0
  %1871 = vmatmul.mubr.bf16.gmra.mrb[0].mxu0 %v1764
  %v1872 = vpop.f32.mrb[0].mxu0
  %v1873 = vadd.f32 0.0, %v1872
  %v1874 = vpop.f32.mrb[0].mxu0
  %v1875 = vpop.f32.mrb[0].mxu0
  %v1876 = vadd.f32 0.0, %v1875
  %v1877 = vpop.f32.mrb[0].mxu0
  %1878 = vmatprep.mubr.bf16.mxu0 0
  %1879 = vmatmul.mubr.bf16.gmra.mrb[0].mxu0 %v1767
  %v1880 = vpop.f32.mrb[0].mxu0
  %v1881 = vadd.f32 0.0, %v1880
  %v1882 = vpop.f32.mrb[0].mxu0
  %v1883 = vpop.f32.mrb[0].mxu0
  %v1884 = vadd.f32 0.0, %v1883
  %v1885 = vpop.f32.mrb[0].mxu0
  %1886 = vmatprep.mubr.bf16.mxu0 0
  %1887 = vmatmul.mubr.bf16.gmra.mrb[0].mxu0 %v1770
  %v1888 = vpop.f32.mrb[0].mxu0
  %v1889 = vadd.f32 0.0, %v1888
  %v1890 = vpop.f32.mrb[0].mxu0
  %v1891 = vpop.f32.mrb[0].mxu0
  %v1892 = vadd.f32 0.0, %v1891
  %v1893 = vpop.f32.mrb[0].mxu0
  %1894 = vmatprep.mubr.bf16.mxu0 0
  %1895 = vmatmul.mubr.bf16.gmra.mrb[0].mxu0 %v1773
  %v1896 = vpop.f32.mrb[0].mxu0
  %v1897 = vadd.f32 0.0, %v1896
  %v1898 = vpop.f32.mrb[0].mxu0
  %v1899 = vpop.f32.mrb[0].mxu0
  %v1900 = vadd.f32 0.0, %v1899
  %v1901 = vpop.f32.mrb[0].mxu0
  %1902 = vmatprep.mubr.bf16.mxu0 0
  %1903 = vmatmul.mubr.bf16.gmra.mrb[0].mxu0 %v1776
  %v1904 = vpop.f32.mrb[0].mxu0
  %v1905 = vadd.f32 0.0, %v1904
  %v1906 = vpop.f32.mrb[0].mxu0
  %v1907 = vpop.f32.mrb[0].mxu0
  %v1908 = vadd.f32 0.0, %v1907
  %v1909 = vpop.f32.mrb[0].mxu0
  %1910 = vmatprep.mubr.bf16.mxu0 0
  %1911 = vmatmul.mubr.bf16.gmra.mrb[0].mxu0 %v1779
  %v1912 = vpop.f32.mrb[0].mxu0
  %v1913 = vadd.f32 0.0, %v1912
  %v1914 = vpop.f32.mrb[0].mxu0
  %v1915 = vpop.f32.mrb[0].mxu0
  %v1916 = vadd.f32 0.0, %v1915
  %v1917 = vpop.f32.mrb[0].mxu0
  %1918 = vmatprep.mubr.bf16.mxu0 0
  %1919 = vmatmul.mubr.bf16.gmra.mrb[0].mxu0 %v1782
  %v1920 = vpop.f32.mrb[0].mxu0
  %v1921 = vadd.f32 0.0, %v1920
  %v1922 = vpop.f32.mrb[0].mxu0
  %v1923 = vpop.f32.mrb[0].mxu0
  %v1924 = vadd.f32 0.0, %v1923
  %v1925 = vpop.f32.mrb[0].mxu0
  %1926 = vmatprep.mubr.bf16.mxu0 0
  %1927 = vmatmul.mubr.bf16.gmra.mrb[0].mxu0 %v1785
  %v1928 = vpop.f32.mrb[0].mxu0
  %v1929 = vadd.f32 0.0, %v1928
  %v1930 = vpop.f32.mrb[0].mxu0
  %v1931 = vpop.f32.mrb[0].mxu0
  %v1932 = vadd.f32 0.0, %v1931
  %v1933 = vpop.f32.mrb[0].mxu0
  %1934 = vmatprep.mubr.bf16.mxu0 0
  %1935 = vmatmul.mubr.bf16.gmra.mrb[0].mxu0 %v1788
  %v1936 = vpop.f32.mrb[0].mxu0
  %v1937 = vadd.f32 0.0, %v1936
  %v1938 = vpop.f32.mrb[0].mxu0
  %v1939 = vpop.f32.mrb[0].mxu0
  %v1940 = vadd.f32 0.0, %v1939
  %v1941 = vpop.f32.mrb[0].mxu0
  %1942 = vmatprep.mubr.bf16.mxu0 0
  %1943 = vmatmul.mubr.bf16.gmra.mrb[0].mxu0 %v1791
  %v1944 = vpop.f32.mrb[0].mxu0
  %v1945 = vadd.f32 0.0, %v1944
  %v1946 = vpop.f32.mrb[0].mxu0
  %v1947 = vpop.f32.mrb[0].mxu0
  %v1948 = vadd.f32 0.0, %v1947
  %v1949 = vpop.f32.mrb[0].mxu0
  %1950 = vmatprep.mubr.bf16.mxu0 0
  %1951 = vmatmul.mubr.bf16.gmra.mrb[0].mxu0 %v1794
  %v1952 = vpop.f32.mrb[0].mxu0
  %v1953 = vadd.f32 0.0, %v1952
  %v1954 = vpop.f32.mrb[0].mxu0
  %v1955 = vpop.f32.mrb[0].mxu0
  %v1956 = vadd.f32 0.0, %v1955
  %v1957 = vpop.f32.mrb[0].mxu0
  %1958 = vmatprep.mubr.bf16.mxu0 0
  %1959 = vmatmul.mubr.bf16.gmra.mrb[0].mxu0 %v1797
  %v1960 = vpop.f32.mrb[0].mxu0
  %v1961 = vadd.f32 0.0, %v1960
  %v1962 = vpop.f32.mrb[0].mxu0
  %v1963 = vpop.f32.mrb[0].mxu0
  %v1964 = vadd.f32 0.0, %v1963
  %v1965 = vpop.f32.mrb[0].mxu0
  %1966 = vmatprep.mubr.bf16.mxu0 0
  %1967 = vmatmul.mubr.bf16.gmra.mrb[0].mxu0 %v1800
  %v1968 = vpop.f32.mrb[0].mxu0
  %v1969 = vadd.f32 0.0, %v1968
  %v1970 = vpop.f32.mrb[0].mxu0
  %v1971 = vpop.f32.mrb[0].mxu0
  %v1972 = vadd.f32 0.0, %v1971
  %v1973 = vpop.f32.mrb[0].mxu0
  %1974 = vmatprep.mubr.bf16.mxu0 0
  %1975 = vmatmul.mubr.bf16.gmra.mrb[0].mxu0 %v1803
  %v1976 = vpop.f32.mrb[0].mxu0
  %v1977 = vadd.f32 0.0, %v1976
  %v1978 = vpop.f32.mrb[0].mxu0
  %v1979 = vpop.f32.mrb[0].mxu0
  %v1980 = vadd.f32 0.0, %v1979
  %v1981 = vpop.f32.mrb[0].mxu0
  %1982 = vmatprep.mubr.bf16.mxu0 0
  %1983 = vmatmul.mubr.bf16.gmra.mrb[0].mxu0 %v1806
  %v1984 = vpop.f32.mrb[0].mxu0
  %v1985 = vadd.f32 0.0, %v1984
  %v1986 = vpop.f32.mrb[0].mxu0
  %v1987 = vpop.f32.mrb[0].mxu0
  %v1988 = vadd.f32 0.0, %v1987
  %v1989 = vpop.f32.mrb[0].mxu0
  %1990 = vmatprep.mubr.bf16.mxu0 0
  %1991 = vmatmul.mubr.bf16.gmra.mrb[0].mxu0 %v1809
  %v1992 = vpop.f32.mrb[0].mxu0
  %v1993 = vadd.f32 0.0, %v1992
  %v1994 = vpop.f32.mrb[0].mxu0
  %v1995 = vpop.f32.mrb[0].mxu0
  %v1996 = vadd.f32 0.0, %v1995
  %v1997 = vpop.f32.mrb[0].mxu0
  %1998 = vmatprep.mubr.bf16.mxu0 0
  %1999 = vmatmul.mubr.bf16.gmra.mrb[0].mxu0 %v1812
  %v2000 = vpop.f32.mrb[0].mxu0
  %v2001 = vadd.f32 0.0, %v2000
  %v2002 = vpop.f32.mrb[0].mxu0
  %v2003 = vpop.f32.mrb[0].mxu0
  %v2004 = vadd.f32 0.0, %v2003
  %v2005 = vpop.f32.mrb[0].mxu0
  %2006 = vmatprep.mubr.bf16.mxu0 0
  %2007 = vmatmul.mubr.bf16.gmra.mrb[0].mxu0 %v1815
  %v2008 = vpop.f32.mrb[0].mxu0
  %v2009 = vadd.f32 0.0, %v2008
  %v2010 = vpop.f32.mrb[0].mxu0
  %v2011 = vpop.f32.mrb[0].mxu0
  %v2012 = vadd.f32 0.0, %v2011
  %v2013 = vpop.f32.mrb[0].mxu0
  %2014 = vmatprep.mubr.bf16.mxu0 0
  %2015 = vmatmul.mubr.bf16.gmra.mrb[0].mxu0 %v1818
  %v2016 = vpop.f32.mrb[0].mxu0
  %v2017 = vadd.f32 0.0, %v2016
  %v2018 = vpop.f32.mrb[0].mxu0
  %v2019 = vpop.f32.mrb[0].mxu0
  %v2020 = vadd.f32 0.0, %v2019
  %v2021 = vpop.f32.mrb[0].mxu0
  %2022 = vmatprep.mubr.bf16.mxu0 0
  %2023 = vmatmul.mubr.bf16.gmra.mrb[0].mxu0 %v1821
  %v2024 = vpop.f32.mrb[0].mxu0
  %v2025 = vadd.f32 0.0, %v2024
  %v2026 = vpop.f32.mrb[0].mxu0
  %v2027 = vpop.f32.mrb[0].mxu0
  %v2028 = vadd.f32 0.0, %v2027
  %v2029 = vpop.f32.mrb[0].mxu0
  %2030 = vmatprep.mubr.bf16.mxu0 0
  %2031 = vmatmul.mubr.bf16.gmra.mrb[0].mxu0 %v1824
  %v2032 = vpop.f32.mrb[0].mxu0
  %v2033 = vadd.f32 0.0, %v2032
  %v2034 = vpop.f32.mrb[0].mxu0
  %v2035 = vpop.f32.mrb[0].mxu0
  %v2036 = vadd.f32 0.0, %v2035
  %v2037 = vpop.f32.mrb[0].mxu0
  %2038 = vmatprep.mubr.bf16.mxu0 0
  %2039 = vmatmul.mubr.bf16.gmra.mrb[0].mxu0 %v1827
  %v2040 = vpop.f32.mrb[0].mxu0
  %v2041 = vadd.f32 0.0, %v2040
  %v2042 = vpop.f32.mrb[0].mxu0
  %v2043 = vpop.f32.mrb[0].mxu0
  %v2044 = vadd.f32 0.0, %v2043
  %v2045 = vpop.f32.mrb[0].mxu0
  %2046 = vmatprep.mubr.bf16.mxu0 0
  %2047 = vmatmul.mubr.bf16.gmra.mrb[0].mxu0 %v1830
  %v2048 = vpop.f32.mrb[0].mxu0
  %v2049 = vadd.f32 0.0, %v2048
  %v2050 = vpop.f32.mrb[0].mxu0
  %v2051 = vpop.f32.mrb[0].mxu0
  %v2052 = vadd.f32 0.0, %v2051
  %v2053 = vpop.f32.mrb[0].mxu0
  %2054 = vmatprep.mubr.bf16.mxu0 0
  %2055 = vmatmul.mubr.bf16.gmra.mrb[0].mxu0 %v1833
  %v2056 = vpop.f32.mrb[0].mxu0
  %v2057 = vadd.f32 0.0, %v2056
  %v2058 = vpop.f32.mrb[0].mxu0
  %v2059 = vpop.f32.mrb[0].mxu0
  %v2060 = vadd.f32 0.0, %v2059
  %v2061 = vpop.f32.mrb[0].mxu0
  %2062 = vmatprep.mubr.bf16.mxu0 0
  %2063 = vmatmul.mubr.bf16.gmra.mrb[0].mxu0 %v1836
  %v2064 = vpop.f32.mrb[0].mxu0
  %v2065 = vadd.f32 0.0, %v2064
  %v2066 = vpop.f32.mrb[0].mxu0
  %v2067 = vpop.f32.mrb[0].mxu0
  %v2068 = vadd.f32 0.0, %v2067
  %v2069 = vpop.f32.mrb[0].mxu0
  %2070 = vdwg.mxu0
  %v2071 = vmax.f32 %v1538, %v1873
  %v2072 = vmax.f32 %v1539, %v1876
  %v2073 = vmax.f32 %v1540, %v1881
  %v2074 = vmax.f32 %v1541, %v1884
  %v2075 = vmax.f32 %v1542, %v1889
  %v2076 = vmax.f32 %v1543, %v1892
  %v2077 = vmax.f32 %v1544, %v1897
  %v2078 = vmax.f32 %v1545, %v1900
  %v2079 = vmax.f32 %v1546, %v1905
  %v2080 = vmax.f32 %v1547, %v1908
  %v2081 = vmax.f32 %v1548, %v1913
  %v2082 = vmax.f32 %v1549, %v1916
  %v2083 = vmax.f32 %v1550, %v1921
  %v2084 = vmax.f32 %v1551, %v1924
  %v2085 = vmax.f32 %v1552, %v1929
  %v2086 = vmax.f32 %v1553, %v1932
  %v2087 = vmax.f32 %v1554, %v1937
  %v2088 = vmax.f32 %v1555, %v1940
  %v2089 = vmax.f32 %v1556, %v1945
  %v2090 = vmax.f32 %v1557, %v1948
  %v2091 = vmax.f32 %v1558, %v1953
  %v2092 = vmax.f32 %v1559, %v1956
  %v2093 = vmax.f32 %v1560, %v1961
  %v2094 = vmax.f32 %v1561, %v1964
  %v2095 = vmax.f32 %v1562, %v1969
  %v2096 = vmax.f32 %v1563, %v1972
  %v2097 = vmax.f32 %v1564, %v1977
  %v2098 = vmax.f32 %v1565, %v1980
  %v2099 = vmax.f32 %v1566, %v1985
  %v2100 = vmax.f32 %v1567, %v1988
  %v2101 = vmax.f32 %v1568, %v1993
  %v2102 = vmax.f32 %v1569, %v1996
  %v2103 = vmax.f32 %v1570, %v2001
  %v2104 = vmax.f32 %v1571, %v2004
  %v2105 = vmax.f32 %v1572, %v2009
  %v2106 = vmax.f32 %v1573, %v2012
  %v2107 = vmax.f32 %v1574, %v2017
  %v2108 = vmax.f32 %v1575, %v2020
  %v2109 = vmax.f32 %v1576, %v2025
  %v2110 = vmax.f32 %v1577, %v2028
  %v2111 = vmax.f32 %v1578, %v2033
  %v2112 = vmax.f32 %v1579, %v2036
  %v2113 = vmax.f32 %v1580, %v2041
  %v2114 = vmax.f32 %v1581, %v2044
  %v2115 = vmax.f32 %v1582, %v2049
  %v2116 = vmax.f32 %v1583, %v2052
  %v2117 = vmax.f32 %v1584, %v2057
  %v2118 = vmax.f32 %v1585, %v2060
  %v2119 = vmax.f32 %v1586, %v2065
  %v2120 = vmax.f32 %v1587, %v2068
  %v2121 = vld [vmem:[%s5] sm:$0x1]
  %v2123 = vlaneseq
  %v2124 = vshrl.u32 %v2123, 7
  %v2125 = vsub.s32 0, %v2124
  %v2126 = vrot.slane %v2121, %v2125
  %v2128 = vadd.f32 %v2071, %v2126
  %v2129 = vadd.f32 %v2072, %v2126
  %v2130 = vadd.f32 %v2073, %v2126
  %v2131 = vadd.f32 %v2074, %v2126
  %v2132 = vadd.f32 %v2075, %v2126
  %v2133 = vadd.f32 %v2076, %v2126
  %v2134 = vadd.f32 %v2077, %v2126
  %v2135 = vadd.f32 %v2078, %v2126
  %v2136 = vadd.f32 %v2079, %v2126
  %v2137 = vadd.f32 %v2080, %v2126
  %v2138 = vadd.f32 %v2081, %v2126
  %v2139 = vadd.f32 %v2082, %v2126
  %v2140 = vadd.f32 %v2083, %v2126
  %v2141 = vadd.f32 %v2084, %v2126
  %v2142 = vadd.f32 %v2085, %v2126
  %v2143 = vadd.f32 %v2086, %v2126
  %v2144 = vadd.f32 %v2087, %v2126
  %v2145 = vadd.f32 %v2088, %v2126
  %v2146 = vadd.f32 %v2089, %v2126
  %v2147 = vadd.f32 %v2090, %v2126
  %v2148 = vadd.f32 %v2091, %v2126
  %v2149 = vadd.f32 %v2092, %v2126
  %v2150 = vadd.f32 %v2093, %v2126
  %v2151 = vadd.f32 %v2094, %v2126
  %v2152 = vadd.f32 %v2095, %v2126
  %v2153 = vadd.f32 %v2096, %v2126
  %v2154 = vadd.f32 %v2097, %v2126
  %v2155 = vadd.f32 %v2098, %v2126
  %v2156 = vadd.f32 %v2099, %v2126
  %v2157 = vadd.f32 %v2100, %v2126
  %v2158 = vadd.f32 %v2101, %v2126
  %v2159 = vadd.f32 %v2102, %v2126
  %v2160 = vadd.f32 %v2103, %v2126
  %v2161 = vadd.f32 %v2104, %v2126
  %v2162 = vadd.f32 %v2105, %v2126
  %v2163 = vadd.f32 %v2106, %v2126
  %v2164 = vadd.f32 %v2107, %v2126
  %v2165 = vadd.f32 %v2108, %v2126
  %v2166 = vadd.f32 %v2109, %v2126
  %v2167 = vadd.f32 %v2110, %v2126
  %v2168 = vadd.f32 %v2111, %v2126
  %v2169 = vadd.f32 %v2112, %v2126
  %v2170 = vadd.f32 %v2113, %v2126
  %v2171 = vadd.f32 %v2114, %v2126
  %v2172 = vadd.f32 %v2115, %v2126
  %v2173 = vadd.f32 %v2116, %v2126
  %v2174 = vadd.f32 %v2117, %v2126
  %v2175 = vadd.f32 %v2118, %v2126
  %v2176 = vadd.f32 %v2119, %v2126
  %v2177 = vadd.f32 %v2120, %v2126
  %v2178 = vmax.f32 %v2128, 0.0
  %v2179 = vmax.f32 %v2129, 0.0
  %v2180 = vmax.f32 %v2130, 0.0
  %v2181 = vmax.f32 %v2131, 0.0
  %v2182 = vmax.f32 %v2132, 0.0
  %v2183 = vmax.f32 %v2133, 0.0
  %v2184 = vmax.f32 %v2134, 0.0
  %v2185 = vmax.f32 %v2135, 0.0
  %v2186 = vmax.f32 %v2136, 0.0
  %v2187 = vmax.f32 %v2137, 0.0
  %v2188 = vmax.f32 %v2138, 0.0
  %v2189 = vmax.f32 %v2139, 0.0
  %v2190 = vmax.f32 %v2140, 0.0
  %v2191 = vmax.f32 %v2141, 0.0
  %v2192 = vmax.f32 %v2142, 0.0
  %v2193 = vmax.f32 %v2143, 0.0
  %v2194 = vmax.f32 %v2144, 0.0
  %v2195 = vmax.f32 %v2145, 0.0
  %v2196 = vmax.f32 %v2146, 0.0
  %v2197 = vmax.f32 %v2147, 0.0
  %v2198 = vmax.f32 %v2148, 0.0
  %v2199 = vmax.f32 %v2149, 0.0
  %v2200 = vmax.f32 %v2150, 0.0
  %v2201 = vmax.f32 %v2151, 0.0
  %v2202 = vmax.f32 %v2152, 0.0
  %v2203 = vmax.f32 %v2153, 0.0
  %v2204 = vmax.f32 %v2154, 0.0
  %v2205 = vmax.f32 %v2155, 0.0
  %v2206 = vmax.f32 %v2156, 0.0
  %v2207 = vmax.f32 %v2157, 0.0
  %v2208 = vmax.f32 %v2158, 0.0
  %v2209 = vmax.f32 %v2159, 0.0
  %v2210 = vmax.f32 %v2160, 0.0
  %v2211 = vmax.f32 %v2161, 0.0
  %v2212 = vmax.f32 %v2162, 0.0
  %v2213 = vmax.f32 %v2163, 0.0
  %v2214 = vmax.f32 %v2164, 0.0
  %v2215 = vmax.f32 %v2165, 0.0
  %v2216 = vmax.f32 %v2166, 0.0
  %v2217 = vmax.f32 %v2167, 0.0
  %v2218 = vmax.f32 %v2168, 0.0
  %v2219 = vmax.f32 %v2169, 0.0
  %v2220 = vmax.f32 %v2170, 0.0
  %v2221 = vmax.f32 %v2171, 0.0
  %v2222 = vmax.f32 %v2172, 0.0
  %v2223 = vmax.f32 %v2173, 0.0
  %v2224 = vmax.f32 %v2174, 0.0
  %v2225 = vmax.f32 %v2175, 0.0
  %v2226 = vmax.f32 %v2176, 0.0
  %v2227 = vmax.f32 %v2177, 0.0
  %v2228 = vpack.c.bf16 %v2179, %v2178
  %v2229 = vpack.c.bf16 %v2181, %v2180
  %v2230 = vpack.c.bf16 %v2183, %v2182
  %v2231 = vpack.c.bf16 %v2185, %v2184
  %v2232 = vpack.c.bf16 %v2187, %v2186
  %v2233 = vpack.c.bf16 %v2189, %v2188
  %v2234 = vpack.c.bf16 %v2191, %v2190
  %v2235 = vpack.c.bf16 %v2193, %v2192
  %v2236 = vpack.c.bf16 %v2195, %v2194
  %v2237 = vpack.c.bf16 %v2197, %v2196
  %v2238 = vpack.c.bf16 %v2199, %v2198
  %v2239 = vpack.c.bf16 %v2201, %v2200
  %v2240 = vpack.c.bf16 %v2203, %v2202
  %v2241 = vpack.c.bf16 %v2205, %v2204
  %v2242 = vpack.c.bf16 %v2207, %v2206
  %v2243 = vpack.c.bf16 %v2209, %v2208
  %v2244 = vpack.c.bf16 %v2211, %v2210
  %v2245 = vpack.c.bf16 %v2213, %v2212
  %v2246 = vpack.c.bf16 %v2215, %v2214
  %v2247 = vpack.c.bf16 %v2217, %v2216
  %v2248 = vpack.c.bf16 %v2219, %v2218
  %v2249 = vpack.c.bf16 %v2221, %v2220
  %v2250 = vpack.c.bf16 %v2223, %v2222
  %v2251 = vpack.c.bf16 %v2225, %v2224
  %v2252 = vpack.c.bf16 %v2227, %v2226
  %v2278 = vunpack.c.l.b16 %v2228
  %v2279 = vunpack.c.h.b16 %v2228
  %v2280 = vunpack.c.l.b16 %v2229
  %v2281 = vunpack.c.h.b16 %v2229
  %v2282 = vunpack.c.l.b16 %v2230
  %v2283 = vunpack.c.h.b16 %v2230
  %v2284 = vunpack.c.l.b16 %v2231
  %v2285 = vunpack.c.h.b16 %v2231
  %v2286 = vunpack.c.l.b16 %v2232
  %v2287 = vunpack.c.h.b16 %v2232
  %v2288 = vunpack.c.l.b16 %v2233
  %v2289 = vunpack.c.h.b16 %v2233
  %v2290 = vunpack.c.l.b16 %v2234
  %v2291 = vunpack.c.h.b16 %v2234
  %v2292 = vunpack.c.l.b16 %v2235
  %v2293 = vunpack.c.h.b16 %v2235
  %v2294 = vunpack.c.l.b16 %v2236
  %v2295 = vunpack.c.h.b16 %v2236
  %v2296 = vunpack.c.l.b16 %v2237
  %v2297 = vunpack.c.h.b16 %v2237
  %v2298 = vunpack.c.l.b16 %v2238
  %v2299 = vunpack.c.h.b16 %v2238
  %v2300 = vunpack.c.l.b16 %v2239
  %v2301 = vunpack.c.h.b16 %v2239
  %v2302 = vunpack.c.l.b16 %v2240
  %v2303 = vunpack.c.h.b16 %v2240
  %v2304 = vunpack.c.l.b16 %v2241
  %v2305 = vunpack.c.h.b16 %v2241
  %v2306 = vunpack.c.l.b16 %v2242
  %v2307 = vunpack.c.h.b16 %v2242
  %v2308 = vunpack.c.l.b16 %v2243
  %v2309 = vunpack.c.h.b16 %v2243
  %v2310 = vunpack.c.l.b16 %v2244
  %v2311 = vunpack.c.h.b16 %v2244
  %v2312 = vunpack.c.l.b16 %v2245
  %v2313 = vunpack.c.h.b16 %v2245
  %v2314 = vunpack.c.l.b16 %v2246
  %v2315 = vunpack.c.h.b16 %v2246
  %v2316 = vunpack.c.l.b16 %v2247
  %v2317 = vunpack.c.h.b16 %v2247
  %v2318 = vunpack.c.l.b16 %v2248
  %v2319 = vunpack.c.h.b16 %v2248
  %v2320 = vunpack.c.l.b16 %v2249
  %v2321 = vunpack.c.h.b16 %v2249
  %v2322 = vunpack.c.l.b16 %v2250
  %v2323 = vunpack.c.h.b16 %v2250
  %v2324 = vunpack.c.l.b16 %v2251
  %v2325 = vunpack.c.h.b16 %v2251
  %v2326 = vunpack.c.l.b16 %v2252
  %v2327 = vunpack.c.h.b16 %v2252
  %v2328 = vpack.c.b16 %v2278, %v2278
  %v2329 = vpack.c.b16 %v2279, %v2279
  %v2330 = vpack.c.b16 %v2280, %v2280
  %v2331 = vpack.c.b16 %v2281, %v2281
  %v2332 = vpack.c.b16 %v2282, %v2282
  %v2333 = vpack.c.b16 %v2283, %v2283
  %v2334 = vpack.c.b16 %v2284, %v2284
  %v2335 = vpack.c.b16 %v2285, %v2285
  %v2336 = vpack.c.b16 %v2286, %v2286
  %v2337 = vpack.c.b16 %v2287, %v2287
  %v2338 = vpack.c.b16 %v2288, %v2288
  %v2339 = vpack.c.b16 %v2289, %v2289
  %v2340 = vpack.c.b16 %v2290, %v2290
  %v2341 = vpack.c.b16 %v2291, %v2291
  %v2342 = vpack.c.b16 %v2292, %v2292
  %v2343 = vpack.c.b16 %v2293, %v2293
  %v2344 = vpack.c.b16 %v2294, %v2294
  %v2345 = vpack.c.b16 %v2295, %v2295
  %v2346 = vpack.c.b16 %v2296, %v2296
  %v2347 = vpack.c.b16 %v2297, %v2297
  %v2348 = vpack.c.b16 %v2298, %v2298
  %v2349 = vpack.c.b16 %v2299, %v2299
  %v2350 = vpack.c.b16 %v2300, %v2300
  %v2351 = vpack.c.b16 %v2301, %v2301
  %v2352 = vpack.c.b16 %v2302, %v2302
  %v2353 = vpack.c.b16 %v2303, %v2303
  %v2354 = vpack.c.b16 %v2304, %v2304
  %v2355 = vpack.c.b16 %v2305, %v2305
  %v2356 = vpack.c.b16 %v2306, %v2306
  %v2357 = vpack.c.b16 %v2307, %v2307
  %v2358 = vpack.c.b16 %v2308, %v2308
  %v2359 = vpack.c.b16 %v2309, %v2309
  %v2360 = vpack.c.b16 %v2310, %v2310
  %v2361 = vpack.c.b16 %v2311, %v2311
  %v2362 = vpack.c.b16 %v2312, %v2312
  %v2363 = vpack.c.b16 %v2313, %v2313
  %v2364 = vpack.c.b16 %v2314, %v2314
  %v2365 = vpack.c.b16 %v2315, %v2315
  %v2366 = vpack.c.b16 %v2316, %v2316
  %v2367 = vpack.c.b16 %v2317, %v2317
  %v2368 = vpack.c.b16 %v2318, %v2318
  %v2369 = vpack.c.b16 %v2319, %v2319
  %v2370 = vpack.c.b16 %v2320, %v2320
  %v2371 = vpack.c.b16 %v2321, %v2321
  %v2372 = vpack.c.b16 %v2322, %v2322
  %v2373 = vpack.c.b16 %v2323, %v2323
  %v2374 = vpack.c.b16 %v2324, %v2324
  %v2375 = vpack.c.b16 %v2325, %v2325
  %v2376 = vpack.c.b16 %v2326, %v2326
  %v2377 = vpack.c.b16 %v2327, %v2327
  %vm2428 = vcmask 257024
  %2429 = vst.msk [vmem:[%s6] sm:$0xf] %vm2428, %v2328
  %2430 = vst.msk [vmem:[%s6 + $0x4] sm:$0xf] %vm2428, %v2329
  %2431 = vst.msk [vmem:[%s6 + $0x8] sm:$0xf] %vm2428, %v2330
  %2432 = vst.msk [vmem:[%s6 + $0xc] sm:$0xf] %vm2428, %v2331
  %2433 = vst.msk [vmem:[%s6 + $0x10] sm:$0xf] %vm2428, %v2332
  %2434 = vst.msk [vmem:[%s6 + $0x14] sm:$0xf] %vm2428, %v2333
  %2435 = vst.msk [vmem:[%s6 + $0x18] sm:$0xf] %vm2428, %v2334
  %2436 = vst.msk [vmem:[%s6 + $0x1c] sm:$0xf] %vm2428, %v2335
  %2437 = vst.msk [vmem:[%s6 + $0x20] sm:$0xf] %vm2428, %v2336
  %2438 = vst.msk [vmem:[%s6 + $0x24] sm:$0xf] %vm2428, %v2337
  %2439 = vst.msk [vmem:[%s6 + $0x28] sm:$0xf] %vm2428, %v2338
  %2440 = vst.msk [vmem:[%s6 + $0x2c] sm:$0xf] %vm2428, %v2339
  %2441 = vst.msk [vmem:[%s6 + $0x30] sm:$0xf] %vm2428, %v2340
  %2442 = vst.msk [vmem:[%s6 + $0x34] sm:$0xf] %vm2428, %v2341
  %2443 = vst.msk [vmem:[%s6 + $0x38] sm:$0xf] %vm2428, %v2342
  %2444 = vst.msk [vmem:[%s6 + $0x3c] sm:$0xf] %vm2428, %v2343
  %2445 = vst.msk [vmem:[%s6 + $0x40] sm:$0xf] %vm2428, %v2344
  %2446 = vst.msk [vmem:[%s6 + $0x44] sm:$0xf] %vm2428, %v2345
  %2447 = vst.msk [vmem:[%s6 + $0x48] sm:$0xf] %vm2428, %v2346
  %2448 = vst.msk [vmem:[%s6 + $0x4c] sm:$0xf] %vm2428, %v2347
  %2449 = vst.msk [vmem:[%s6 + $0x50] sm:$0xf] %vm2428, %v2348
  %2450 = vst.msk [vmem:[%s6 + $0x54] sm:$0xf] %vm2428, %v2349
  %2451 = vst.msk [vmem:[%s6 + $0x58] sm:$0xf] %vm2428, %v2350
  %2452 = vst.msk [vmem:[%s6 + $0x5c] sm:$0xf] %vm2428, %v2351
  %2453 = vst.msk [vmem:[%s6 + $0x60] sm:$0xf] %vm2428, %v2352
  %2454 = vst.msk [vmem:[%s6 + $0x64] sm:$0xf] %vm2428, %v2353
  %2455 = vst.msk [vmem:[%s6 + $0x68] sm:$0xf] %vm2428, %v2354
  %2456 = vst.msk [vmem:[%s6 + $0x6c] sm:$0xf] %vm2428, %v2355
  %2457 = vst.msk [vmem:[%s6 + $0x70] sm:$0xf] %vm2428, %v2356
  %2458 = vst.msk [vmem:[%s6 + $0x74] sm:$0xf] %vm2428, %v2357
  %2459 = vst.msk [vmem:[%s6 + $0x78] sm:$0xf] %vm2428, %v2358
  %2460 = vst.msk [vmem:[%s6 + $0x7c] sm:$0xf] %vm2428, %v2359
  %2461 = vst.msk [vmem:[%s6 + $0x80] sm:$0xf] %vm2428, %v2360
  %2462 = vst.msk [vmem:[%s6 + $0x84] sm:$0xf] %vm2428, %v2361
  %2463 = vst.msk [vmem:[%s6 + $0x88] sm:$0xf] %vm2428, %v2362
  %2464 = vst.msk [vmem:[%s6 + $0x8c] sm:$0xf] %vm2428, %v2363
  %2465 = vst.msk [vmem:[%s6 + $0x90] sm:$0xf] %vm2428, %v2364
  %2466 = vst.msk [vmem:[%s6 + $0x94] sm:$0xf] %vm2428, %v2365
  %2467 = vst.msk [vmem:[%s6 + $0x98] sm:$0xf] %vm2428, %v2366
  %2468 = vst.msk [vmem:[%s6 + $0x9c] sm:$0xf] %vm2428, %v2367
  %2469 = vst.msk [vmem:[%s6 + $0xa0] sm:$0xf] %vm2428, %v2368
  %2470 = vst.msk [vmem:[%s6 + $0xa4] sm:$0xf] %vm2428, %v2369
  %2471 = vst.msk [vmem:[%s6 + $0xa8] sm:$0xf] %vm2428, %v2370
  %2472 = vst.msk [vmem:[%s6 + $0xac] sm:$0xf] %vm2428, %v2371
  %2473 = vst.msk [vmem:[%s6 + $0xb0] sm:$0xf] %vm2428, %v2372
  %2474 = vst.msk [vmem:[%s6 + $0xb4] sm:$0xf] %vm2428, %v2373
  %2475 = vst.msk [vmem:[%s6 + $0xb8] sm:$0xf] %vm2428, %v2374
  %2476 = vst.msk [vmem:[%s6 + $0xbc] sm:$0xf] %vm2428, %v2375
  %2477 = vst.msk [vmem:[%s6 + $0xc0] sm:$0xf] %vm2428, %v2376
  %2478 = vst.msk [vmem:[%s6 + $0xc4] sm:$0xf] %vm2428, %v2377
  // Predicated region
  $region26: #{cnn_forward.4} parent=0 // pred_check
    _
  $region27: #{cnn_forward.4} parent=0 // pred_check_branch
    %2480 = sbr.rel (0) target = $region29
  $region28: #{cnn_forward.4} parent=0 // pred_region
    _
  $region29: #{cnn_forward.4} parent=0 // pred_fallthru
    _
  // Predicated region
  $region30: #{cnn_forward.4} parent=0 // pred_check
    _
  $region31: #{cnn_forward.4} parent=0 // pred_check_branch
    %2482 = sbr.rel (0) target = $region33
  $region32: #{cnn_forward.4} parent=0 // pred_region
    _
  $region33: #{cnn_forward.4} parent=0 // pred_fallthru
    _

// kernel: cnn_forward.7
$region0: #{cnn_forward.7}
  #allocation0 [shape = 'u32[]', space=smem, size = 0x4, offset = 0x4, fixed_abs, tag = 'smem constant byte address 0x4 - core index']
  #allocation1 [shape = 'u32[144,128]{1,0:T(1,128)}', space=vmem, size = 0x12000, scoped, tag = 'internal scratch']
  %s0 = inlined_call_operand.vmem [shape: bf16[16,128], index: 0, kind: input, shape index: {}]
  %s1 = inlined_call_operand.vmem [shape: bf16[128,10], index: 1, kind: input, shape index: {}]
  %s2 = inlined_call_operand.vmem [shape: f32[1,10], index: 2, kind: input, shape index: {}]
  %s3 = inlined_call_operand.vmem [shape: f32[16,10], index: 3, kind: output, shape index: {}]
  %s4 = sld [smem:[#allocation0]]
  $region22: #{cnn_forward.7} parent=0
    _
  %s6 = ssub.s32 1, %s4
  %s7 = scalar_select 0, %s6, %s4
  // Predicated region
  $region2: #{cnn_forward.7} parent=0 // pred_check
    _
  $region3: #{cnn_forward.7} parent=0 // pred_check_branch
    %9 = sbr.rel (0) target = $region5
  $region4: #{cnn_forward.7} parent=0 // pred_region
    _
  $region5: #{cnn_forward.7} parent=0 // pred_fallthru
    _
  // Predicated region
  $region6: #{cnn_forward.7} parent=0 // pred_check
    _
  $region7: #{cnn_forward.7} parent=0 // pred_check_branch
    %11 = sbr.rel (0) target = $region9
  $region8: #{cnn_forward.7} parent=0 // pred_region
    _
  $region9: #{cnn_forward.7} parent=0 // pred_fallthru
    _
  // Predicated region
  $region10: #{cnn_forward.7} parent=0 // pred_check
    _
  $region11: #{cnn_forward.7} parent=0 // pred_check_branch
    %13 = sbr.rel (0) target = $region13
  $region12: #{cnn_forward.7} parent=0 // pred_region
    _
  $region13: #{cnn_forward.7} parent=0 // pred_fallthru
    _
  %v15 = vld [vmem:[%s0] sm:$0xf]
  %v16 = vld [vmem:[%s0 + $0x4] sm:$0xf]
  %v17 = vld [vmem:[%s1] sm:$0xf]
  %v18 = vld [vmem:[%s1 + $0x4] sm:$0xf]
  %v19 = vld [vmem:[%s1 + $0x8] sm:$0xf]
  %v20 = vld [vmem:[%s1 + $0xc] sm:$0xf]
  %v21 = vld [vmem:[%s1 + $0x10] sm:$0xf]
  %v22 = vld [vmem:[%s1 + $0x14] sm:$0xf]
  %v23 = vld [vmem:[%s1 + $0x18] sm:$0xf]
  %v24 = vld [vmem:[%s1 + $0x1c] sm:$0xf]
  %v25 = vld [vmem:[%s1 + $0x20] sm:$0xf]
  %v26 = vld [vmem:[%s1 + $0x24] sm:$0xf]
  %v27 = vld [vmem:[%s1 + $0x28] sm:$0xf]
  %v28 = vld [vmem:[%s1 + $0x2c] sm:$0xf]
  %v29 = vld [vmem:[%s1 + $0x30] sm:$0xf]
  %v30 = vld [vmem:[%s1 + $0x34] sm:$0xf]
  %v31 = vld [vmem:[%s1 + $0x38] sm:$0xf]
  %v32 = vld [vmem:[%s1 + $0x3c] sm:$0xf]
  %v33 = vld [vmem:[%s2] sm:$0x1]
  %v35 = vlaneseq
  %v36 = vshrl.u32 %v35, 7
  %v37 = vsub.s32 0, %v36
  %v38 = vrot.slane %v33, %v37
  %v42 = vunpack.c.l.b16 %v15
  %v43 = vunpack.c.l.b16 %v16
  %v44 = vpack.c.b16 %v43, %v42
  %v62 = vunpack.c.l.b16 %v17
  %v63 = vunpack.c.l.b16 %v18
  %v64 = vunpack.c.l.b16 %v19
  %v65 = vunpack.c.l.b16 %v20
  %v66 = vunpack.c.l.b16 %v21
  %v67 = vunpack.c.l.b16 %v22
  %v68 = vunpack.c.l.b16 %v23
  %v69 = vunpack.c.l.b16 %v24
  %v70 = vunpack.c.l.b16 %v25
  %v71 = vunpack.c.l.b16 %v26
  %v72 = vunpack.c.l.b16 %v27
  %v73 = vunpack.c.l.b16 %v28
  %v74 = vunpack.c.l.b16 %v29
  %v75 = vunpack.c.l.b16 %v30
  %v76 = vunpack.c.l.b16 %v31
  %v77 = vunpack.c.l.b16 %v32
  %v78 = vpack.c.b16 %v63, %v62
  %v79 = vpack.c.b16 %v65, %v64
  %v80 = vpack.c.b16 %v67, %v66
  %v81 = vpack.c.b16 %v69, %v68
  %v82 = vpack.c.b16 %v71, %v70
  %v83 = vpack.c.b16 %v73, %v72
  %v84 = vpack.c.b16 %v75, %v74
  %v85 = vpack.c.b16 %v77, %v76
  %94 = vmatprep.subr.bf16.mxu0 0
  %95 = vmatpush1.bf16.msra.mxu0 %v78
  %96 = vmatprep.subr.bf16.mxu0 0
  %97 = vmatpush1.bf16.msra.mxu0 %v79
  %98 = vmatprep.subr.bf16.mxu0 0
  %99 = vmatpush1.bf16.msra.mxu0 %v80
  %100 = vmatprep.subr.bf16.mxu0 0
  %101 = vmatpush1.bf16.msra.mxu0 %v81
  %102 = vmatprep.subr.bf16.mxu0 0
  %103 = vmatpush1.bf16.msra.mxu0 %v82
  %104 = vmatprep.subr.bf16.mxu0 0
  %105 = vmatpush1.bf16.msra.mxu0 %v83
  %106 = vmatprep.subr.bf16.mxu0 0
  %107 = vmatpush1.bf16.msra.mxu0 %v84
  %108 = vmatprep.subr.bf16.mxu0 0
  %109 = vmatpush1.bf16.msra.mxu0 %v85
  %110 = vmatprep.subr.bf16.mxu0 0
  %111 = vmatpush1.bf16.msra.mxu0 0
  %112 = vmatprep.subr.bf16.mxu0 0
  %113 = vmatpush1.bf16.msra.mxu0 0
  %114 = vmatprep.subr.bf16.mxu0 0
  %115 = vmatpush1.bf16.msra.mxu0 0
  %116 = vmatprep.subr.bf16.mxu0 0
  %117 = vmatpush1.bf16.msra.mxu0 0
  %118 = vmatprep.subr.bf16.mxu0 0
  %119 = vmatpush1.bf16.msra.mxu0 0
  %120 = vmatprep.subr.bf16.mxu0 0
  %121 = vmatpush1.bf16.msra.mxu0 0
  %122 = vmatprep.subr.bf16.mxu0 0
  %123 = vmatpush1.bf16.msra.mxu0 0
  %124 = vmatprep.subr.bf16.mxu0 0
  %125 = vmatpush1.bf16.msra.mxu0 0
  %126 = vmatprep.mubr.bf16.mxu0 0
  %127 = vmatmul.mubr.bf16.gmra.mrb[0].mxu0 %v44
  %v128 = vpop.f32.mrb[0].mxu0
  %v129 = vadd.f32 %v38, %v128
  %v130 = vpop.f32.mrb[0].mxu0
  %v131 = vpop.f32.mrb[0].mxu0
  %v132 = vadd.f32 %v38, %v131
  %v133 = vpop.f32.mrb[0].mxu0
  %134 = vdwg.mxu0
  %vm135 = vcmask 80896
  %136 = vst.msk [vmem:[%s3] sm:$0xff] %vm135, %v129
  %137 = vst.msk [vmem:[%s3 + $0x8] sm:$0xff] %vm135, %v132
  // Predicated region
  $region14: #{cnn_forward.7} parent=0 // pred_check
    _
  $region15: #{cnn_forward.7} parent=0 // pred_check_branch
    %139 = sbr.rel (0) target = $region17
  $region16: #{cnn_forward.7} parent=0 // pred_region
    _
  $region17: #{cnn_forward.7} parent=0 // pred_fallthru
    _
  // Predicated region
  $region18: #{cnn_forward.7} parent=0 // pred_check
    _
  $region19: #{cnn_forward.7} parent=0 // pred_check_branch
    %141 = sbr.rel (0) target = $region21
  $region20: #{cnn_forward.7} parent=0 // pred_region
    _
  $region21: #{cnn_forward.7} parent=0 // pred_fallthru
    _

// kernel: cnn_forward.5
$region0: #{cnn_forward.5}
  #allocation0 [shape = 'u32[]', space=smem, size = 0x4, offset = 0x4, fixed_abs, tag = 'smem constant byte address 0x4 - core index']
  #allocation1 [shape = 'u32[144,128]{1,0:T(1,128)}', space=vmem, size = 0x12000, scoped, tag = 'internal scratch']
  %s0 = inlined_call_operand.vmem [shape: bf16[112,288], index: 0, kind: input, shape index: {}]
  %s1 = inlined_call_operand.vmem [shape: bf16[112,288], index: 1, kind: input, shape index: {}]
  %s2 = inlined_call_operand.vmem [shape: bf16[112,288], index: 2, kind: input, shape index: {}]
  %s3 = inlined_call_operand.vmem [shape: bf16[112,288], index: 3, kind: input, shape index: {}]
  %s4 = inlined_call_operand.vmem [shape: bf16[288,64], index: 4, kind: input, shape index: {}]
  %s5 = inlined_call_operand.vmem [shape: f32[1,64], index: 5, kind: input, shape index: {}]
  %s6 = inlined_call_operand.vmem [shape: bf16[112,64], index: 6, kind: output, shape index: {}]
  %s7 = sld [smem:[#allocation0]]
  $region34: #{cnn_forward.5} parent=0
    _
  %s9 = ssub.s32 1, %s7
  %s10 = scalar_select 0, %s9, %s7
  // Predicated region
  $region2: #{cnn_forward.5} parent=0 // pred_check
    _
  $region3: #{cnn_forward.5} parent=0 // pred_check_branch
    %12 = sbr.rel (0) target = $region5
  $region4: #{cnn_forward.5} parent=0 // pred_region
    _
  $region5: #{cnn_forward.5} parent=0 // pred_fallthru
    _
  // Predicated region
  $region6: #{cnn_forward.5} parent=0 // pred_check
    _
  $region7: #{cnn_forward.5} parent=0 // pred_check_branch
    %14 = sbr.rel (0) target = $region9
  $region8: #{cnn_forward.5} parent=0 // pred_region
    _
  $region9: #{cnn_forward.5} parent=0 // pred_fallthru
    _
  // Predicated region
  $region10: #{cnn_forward.5} parent=0 // pred_check
    _
  $region11: #{cnn_forward.5} parent=0 // pred_check_branch
    %16 = sbr.rel (0) target = $region13
  $region12: #{cnn_forward.5} parent=0 // pred_region
    _
  $region13: #{cnn_forward.5} parent=0 // pred_fallthru
    _
  // Predicated region
  $region14: #{cnn_forward.5} parent=0 // pred_check
    _
  $region15: #{cnn_forward.5} parent=0 // pred_check_branch
    %18 = sbr.rel (0) target = $region17
  $region16: #{cnn_forward.5} parent=0 // pred_region
    _
  $region17: #{cnn_forward.5} parent=0 // pred_fallthru
    _
  // Predicated region
  $region18: #{cnn_forward.5} parent=0 // pred_check
    _
  $region19: #{cnn_forward.5} parent=0 // pred_check_branch
    %20 = sbr.rel (0) target = $region21
  $region20: #{cnn_forward.5} parent=0 // pred_region
    _
  $region21: #{cnn_forward.5} parent=0 // pred_fallthru
    _
  // Predicated region
  $region22: #{cnn_forward.5} parent=0 // pred_check
    _
  $region23: #{cnn_forward.5} parent=0 // pred_check_branch
    %22 = sbr.rel (0) target = $region25
  $region24: #{cnn_forward.5} parent=0 // pred_region
    _
  $region25: #{cnn_forward.5} parent=0 // pred_fallthru
    _
  %v24 = vld [vmem:[%s4] sm:$0xf]
  %v25 = vld [vmem:[%s4 + $0x4] sm:$0xf]
  %v26 = vld [vmem:[%s4 + $0x8] sm:$0xf]
  %v27 = vld [vmem:[%s4 + $0xc] sm:$0xf]
  %v28 = vld [vmem:[%s4 + $0x10] sm:$0xf]
  %v29 = vld [vmem:[%s4 + $0x14] sm:$0xf]
  %v30 = vld [vmem:[%s4 + $0x18] sm:$0xf]
  %v31 = vld [vmem:[%s4 + $0x1c] sm:$0xf]
  %v32 = vld [vmem:[%s4 + $0x20] sm:$0xf]
  %v33 = vld [vmem:[%s4 + $0x24] sm:$0xf]
  %v34 = vld [vmem:[%s4 + $0x28] sm:$0xf]
  %v35 = vld [vmem:[%s4 + $0x2c] sm:$0xf]
  %v36 = vld [vmem:[%s4 + $0x30] sm:$0xf]
  %v37 = vld [vmem:[%s4 + $0x34] sm:$0xf]
  %v38 = vld [vmem:[%s4 + $0x38] sm:$0xf]
  %v39 = vld [vmem:[%s4 + $0x3c] sm:$0xf]
  %v40 = vld [vmem:[%s4 + $0x40] sm:$0xf]
  %v41 = vld [vmem:[%s4 + $0x44] sm:$0xf]
  %v42 = vld [vmem:[%s4 + $0x48] sm:$0xf]
  %v43 = vld [vmem:[%s4 + $0x4c] sm:$0xf]
  %v44 = vld [vmem:[%s4 + $0x50] sm:$0xf]
  %v45 = vld [vmem:[%s4 + $0x54] sm:$0xf]
  %v46 = vld [vmem:[%s4 + $0x58] sm:$0xf]
  %v47 = vld [vmem:[%s4 + $0x5c] sm:$0xf]
  %v48 = vld [vmem:[%s4 + $0x60] sm:$0xf]
  %v49 = vld [vmem:[%s4 + $0x64] sm:$0xf]
  %v50 = vld [vmem:[%s4 + $0x68] sm:$0xf]
  %v51 = vld [vmem:[%s4 + $0x6c] sm:$0xf]
  %v52 = vld [vmem:[%s4 + $0x70] sm:$0xf]
  %v53 = vld [vmem:[%s4 + $0x74] sm:$0xf]
  %v54 = vld [vmem:[%s4 + $0x78] sm:$0xf]
  %v55 = vld [vmem:[%s4 + $0x7c] sm:$0xf]
  %v56 = vld [vmem:[%s4 + $0x80] sm:$0xf]
  %v57 = vld [vmem:[%s4 + $0x84] sm:$0xf]
  %v58 = vld [vmem:[%s4 + $0x88] sm:$0xf]
  %v59 = vld [vmem:[%s4 + $0x8c] sm:$0xf]
  %v60 = vld [vmem:[%s0] sm:$0xff]
  %v61 = vld [vmem:[%s0 + $0x8] sm:$0xf]
  %v62 = vld [vmem:[%s0 + $0xc] sm:$0xff]
  %v63 = vld [vmem:[%s0 + $0x14] sm:$0xf]
  %v64 = vld [vmem:[%s0 + $0x18] sm:$0xff]
  %v65 = vld [vmem:[%s0 + $0x20] sm:$0xf]
  %v66 = vld [vmem:[%s0 + $0x24] sm:$0xff]
  %v67 = vld [vmem:[%s0 + $0x2c] sm:$0xf]
  %v68 = vld [vmem:[%s0 + $0x30] sm:$0xff]
  %v69 = vld [vmem:[%s0 + $0x38] sm:$0xf]
  %v70 = vld [vmem:[%s0 + $0x3c] sm:$0xff]
  %v71 = vld [vmem:[%s0 + $0x44] sm:$0xf]
  %v72 = vld [vmem:[%s0 + $0x48] sm:$0xff]
  %v73 = vld [vmem:[%s0 + $0x50] sm:$0xf]
  %v74 = vld [vmem:[%s0 + $0x54] sm:$0xff]
  %v75 = vld [vmem:[%s0 + $0x5c] sm:$0xf]
  %v76 = vld [vmem:[%s0 + $0x60] sm:$0xff]
  %v77 = vld [vmem:[%s0 + $0x68] sm:$0xf]
  %v78 = vld [vmem:[%s0 + $0x6c] sm:$0xff]
  %v79 = vld [vmem:[%s0 + $0x74] sm:$0xf]
  %v80 = vld [vmem:[%s0 + $0x78] sm:$0xff]
  %v81 = vld [vmem:[%s0 + $0x80] sm:$0xf]
  %v82 = vld [vmem:[%s0 + $0x84] sm:$0xff]
  %v83 = vld [vmem:[%s0 + $0x8c] sm:$0xf]
  %v84 = vld [vmem:[%s0 + $0x90] sm:$0xff]
  %v85 = vld [vmem:[%s0 + $0x98] sm:$0xf]
  %v86 = vld [vmem:[%s0 + $0x9c] sm:$0xff]
  %v87 = vld [vmem:[%s0 + $0xa4] sm:$0xf]
  %v116 = vunpack.c.l.b16 %v60
  %v117 = vunpack.c.h.b16 %v60
  %v118 = vunpack.c.l.b16 %v61
  %v119 = vunpack.c.l.b16 %v62
  %v120 = vunpack.c.h.b16 %v62
  %v121 = vunpack.c.l.b16 %v63
  %v122 = vunpack.c.l.b16 %v64
  %v123 = vunpack.c.h.b16 %v64
  %v124 = vunpack.c.l.b16 %v65
  %v125 = vunpack.c.l.b16 %v66
  %v126 = vunpack.c.h.b16 %v66
  %v127 = vunpack.c.l.b16 %v67
  %v128 = vunpack.c.l.b16 %v68
  %v129 = vunpack.c.h.b16 %v68
  %v130 = vunpack.c.l.b16 %v69
  %v131 = vunpack.c.l.b16 %v70
  %v132 = vunpack.c.h.b16 %v70
  %v133 = vunpack.c.l.b16 %v71
  %v134 = vunpack.c.l.b16 %v72
  %v135 = vunpack.c.h.b16 %v72
  %v136 = vunpack.c.l.b16 %v73
  %v137 = vunpack.c.l.b16 %v74
  %v138 = vunpack.c.h.b16 %v74
  %v139 = vunpack.c.l.b16 %v75
  %v140 = vunpack.c.l.b16 %v76
  %v141 = vunpack.c.h.b16 %v76
  %v142 = vunpack.c.l.b16 %v77
  %v143 = vunpack.c.l.b16 %v78
  %v144 = vunpack.c.h.b16 %v78
  %v145 = vunpack.c.l.b16 %v79
  %v146 = vunpack.c.l.b16 %v80
  %v147 = vunpack.c.h.b16 %v80
  %v148 = vunpack.c.l.b16 %v81
  %v149 = vunpack.c.l.b16 %v82
  %v150 = vunpack.c.h.b16 %v82
  %v151 = vunpack.c.l.b16 %v83
  %v152 = vunpack.c.l.b16 %v84
  %v153 = vunpack.c.h.b16 %v84
  %v154 = vunpack.c.l.b16 %v85
  %v155 = vunpack.c.l.b16 %v86
  %v156 = vunpack.c.h.b16 %v86
  %v157 = vunpack.c.l.b16 %v87
  %v158 = vpack.c.b16 %v119, %v116
  %v159 = vpack.c.b16 %v120, %v117
  %v160 = vpack.c.b16 %v121, %v118
  %v161 = vpack.c.b16 %v125, %v122
  %v162 = vpack.c.b16 %v126, %v123
  %v163 = vpack.c.b16 %v127, %v124
  %v164 = vpack.c.b16 %v131, %v128
  %v165 = vpack.c.b16 %v132, %v129
  %v166 = vpack.c.b16 %v133, %v130
  %v167 = vpack.c.b16 %v137, %v134
  %v168 = vpack.c.b16 %v138, %v135
  %v169 = vpack.c.b16 %v139, %v136
  %v170 = vpack.c.b16 %v143, %v140
  %v171 = vpack.c.b16 %v144, %v141
  %v172 = vpack.c.b16 %v145, %v142
  %v173 = vpack.c.b16 %v149, %v146
  %v174 = vpack.c.b16 %v150, %v147
  %v175 = vpack.c.b16 %v151, %v148
  %v176 = vpack.c.b16 %v155, %v152
  %v177 = vpack.c.b16 %v156, %v153
  %v178 = vpack.c.b16 %v157, %v154
  %v229 = vunpack.c.l.b16 %v24
  %v230 = vunpack.c.l.b16 %v25
  %v231 = vunpack.c.l.b16 %v26
  %v232 = vunpack.c.l.b16 %v27
  %v233 = vunpack.c.l.b16 %v28
  %v234 = vunpack.c.l.b16 %v29
  %v235 = vunpack.c.l.b16 %v30
  %v236 = vunpack.c.l.b16 %v31
  %v237 = vunpack.c.l.b16 %v32
  %v238 = vunpack.c.l.b16 %v33
  %v239 = vunpack.c.l.b16 %v34
  %v240 = vunpack.c.l.b16 %v35
  %v241 = vunpack.c.l.b16 %v36
  %v242 = vunpack.c.l.b16 %v37
  %v243 = vunpack.c.l.b16 %v38
  %v244 = vunpack.c.l.b16 %v39
  %v245 = vunpack.c.l.b16 %v40
  %v246 = vunpack.c.l.b16 %v41
  %v247 = vunpack.c.l.b16 %v42
  %v248 = vunpack.c.l.b16 %v43
  %v249 = vunpack.c.l.b16 %v44
  %v250 = vunpack.c.l.b16 %v45
  %v251 = vunpack.c.l.b16 %v46
  %v252 = vunpack.c.l.b16 %v47
  %v253 = vunpack.c.l.b16 %v48
  %v254 = vunpack.c.l.b16 %v49
  %v255 = vunpack.c.l.b16 %v50
  %v256 = vunpack.c.l.b16 %v51
  %v257 = vunpack.c.l.b16 %v52
  %v258 = vunpack.c.l.b16 %v53
  %v259 = vunpack.c.l.b16 %v54
  %v260 = vunpack.c.l.b16 %v55
  %v261 = vunpack.c.l.b16 %v56
  %v262 = vunpack.c.l.b16 %v57
  %v263 = vunpack.c.l.b16 %v58
  %v264 = vunpack.c.l.b16 %v59
  %v265 = vpack.c.b16 %v230, %v229
  %v266 = vpack.c.b16 %v232, %v231
  %v267 = vpack.c.b16 %v234, %v233
  %v268 = vpack.c.b16 %v236, %v235
  %v269 = vpack.c.b16 %v238, %v237
  %v270 = vpack.c.b16 %v240, %v239
  %v271 = vpack.c.b16 %v242, %v241
  %v272 = vpack.c.b16 %v244, %v243
  %v273 = vpack.c.b16 %v246, %v245
  %v274 = vpack.c.b16 %v248, %v247
  %v275 = vpack.c.b16 %v250, %v249
  %v276 = vpack.c.b16 %v252, %v251
  %v277 = vpack.c.b16 %v254, %v253
  %v278 = vpack.c.b16 %v256, %v255
  %v279 = vpack.c.b16 %v258, %v257
  %v280 = vpack.c.b16 %v260, %v259
  %v281 = vpack.c.b16 %v262, %v261
  %v282 = vpack.c.b16 %v264, %v263
  %vm301 = vcmask 261120
  %v303 = vsel %vm301, %v160, 0
  %v306 = vsel %vm301, %v163, 0
  %v309 = vsel %vm301, %v166, 0
  %v312 = vsel %vm301, %v169, 0
  %v315 = vsel %vm301, %v172, 0
  %v318 = vsel %vm301, %v175, 0
  %v321 = vsel %vm301, %v178, 0
  %323 = vmatprep.subr.bf16.mxu0 0
  %324 = vmatpush1.bf16.msra.mxu0 %v265
  %325 = vmatprep.subr.bf16.mxu0 0
  %326 = vmatpush1.bf16.msra.mxu0 %v266
  %327 = vmatprep.subr.bf16.mxu0 0
  %328 = vmatpush1.bf16.msra.mxu0 %v267
  %329 = vmatprep.subr.bf16.mxu0 0
  %330 = vmatpush1.bf16.msra.mxu0 %v268
  %331 = vmatprep.subr.bf16.mxu0 0
  %332 = vmatpush1.bf16.msra.mxu0 %v269
  %333 = vmatprep.subr.bf16.mxu0 0
  %334 = vmatpush1.bf16.msra.mxu0 %v270
  %335 = vmatprep.subr.bf16.mxu0 0
  %336 = vmatpush1.bf16.msra.mxu0 %v271
  %337 = vmatprep.subr.bf16.mxu0 0
  %338 = vmatpush1.bf16.msra.mxu0 %v272
  %339 = vmatprep.subr.bf16.mxu0 0
  %340 = vmatpush1.bf16.msra.mxu0 %v273
  %341 = vmatprep.subr.bf16.mxu0 0
  %342 = vmatpush1.bf16.msra.mxu0 %v274
  %343 = vmatprep.subr.bf16.mxu0 0
  %344 = vmatpush1.bf16.msra.mxu0 %v275
  %345 = vmatprep.subr.bf16.mxu0 0
  %346 = vmatpush1.bf16.msra.mxu0 %v276
  %347 = vmatprep.subr.bf16.mxu0 0
  %348 = vmatpush1.bf16.msra.mxu0 %v277
  %349 = vmatprep.subr.bf16.mxu0 0
  %350 = vmatpush1.bf16.msra.mxu0 %v278
  %351 = vmatprep.subr.bf16.mxu0 0
  %352 = vmatpush1.bf16.msra.mxu0 %v279
  %353 = vmatprep.subr.bf16.mxu0 0
  %354 = vmatpush1.bf16.msra.mxu0 %v280
  %355 = vmatprep.mubr.bf16.mxu0 %v159
  %356 = vmatmul.mubr.bf16.gmra.mrb[0].mxu0 %v158
  %v357 = vpop.f32.mrb[0].mxu0
  %v358 = vadd.f32 0.0, %v357
  %v359 = vpop.f32.mrb[0].mxu0
  %v360 = vpop.f32.mrb[0].mxu0
  %v361 = vadd.f32 0.0, %v360
  %v362 = vpop.f32.mrb[0].mxu0
  %363 = vmatprep.mubr.bf16.mxu0 %v162
  %364 = vmatmul.mubr.bf16.gmra.mrb[0].mxu0 %v161
  %v365 = vpop.f32.mrb[0].mxu0
  %v366 = vadd.f32 0.0, %v365
  %v367 = vpop.f32.mrb[0].mxu0
  %v368 = vpop.f32.mrb[0].mxu0
  %v369 = vadd.f32 0.0, %v368
  %v370 = vpop.f32.mrb[0].mxu0
  %371 = vmatprep.mubr.bf16.mxu0 %v165
  %372 = vmatmul.mubr.bf16.gmra.mrb[0].mxu0 %v164
  %v373 = vpop.f32.mrb[0].mxu0
  %v374 = vadd.f32 0.0, %v373
  %v375 = vpop.f32.mrb[0].mxu0
  %v376 = vpop.f32.mrb[0].mxu0
  %v377 = vadd.f32 0.0, %v376
  %v378 = vpop.f32.mrb[0].mxu0
  %379 = vmatprep.mubr.bf16.mxu0 %v168
  %380 = vmatmul.mubr.bf16.gmra.mrb[0].mxu0 %v167
  %v381 = vpop.f32.mrb[0].mxu0
  %v382 = vadd.f32 0.0, %v381
  %v383 = vpop.f32.mrb[0].mxu0
  %v384 = vpop.f32.mrb[0].mxu0
  %v385 = vadd.f32 0.0, %v384
  %v386 = vpop.f32.mrb[0].mxu0
  %387 = vmatprep.mubr.bf16.mxu0 %v171
  %388 = vmatmul.mubr.bf16.gmra.mrb[0].mxu0 %v170
  %v389 = vpop.f32.mrb[0].mxu0
  %v390 = vadd.f32 0.0, %v389
  %v391 = vpop.f32.mrb[0].mxu0
  %v392 = vpop.f32.mrb[0].mxu0
  %v393 = vadd.f32 0.0, %v392
  %v394 = vpop.f32.mrb[0].mxu0
  %395 = vmatprep.mubr.bf16.mxu0 %v174
  %396 = vmatmul.mubr.bf16.gmra.mrb[0].mxu0 %v173
  %v397 = vpop.f32.mrb[0].mxu0
  %v398 = vadd.f32 0.0, %v397
  %v399 = vpop.f32.mrb[0].mxu0
  %v400 = vpop.f32.mrb[0].mxu0
  %v401 = vadd.f32 0.0, %v400
  %v402 = vpop.f32.mrb[0].mxu0
  %403 = vmatprep.mubr.bf16.mxu0 %v177
  %404 = vmatmul.mubr.bf16.gmra.mrb[0].mxu0 %v176
  %v405 = vpop.f32.mrb[0].mxu0
  %v406 = vadd.f32 0.0, %v405
  %v407 = vpop.f32.mrb[0].mxu0
  %v408 = vpop.f32.mrb[0].mxu0
  %v409 = vadd.f32 0.0, %v408
  %v410 = vpop.f32.mrb[0].mxu0
  %411 = vdwg.mxu0
  %412 = vmatprep.subr.bf16.mxu0 0
  %413 = vmatpush1.bf16.msra.mxu0 %v281
  %414 = vmatprep.subr.bf16.mxu0 0
  %415 = vmatpush1.bf16.msra.mxu0 %v282
  %416 = vmatprep.subr.bf16.mxu0 0
  %417 = vmatpush1.bf16.msra.mxu0 0
  %418 = vmatprep.subr.bf16.mxu0 0
  %419 = vmatpush1.bf16.msra.mxu0 0
  %420 = vmatprep.subr.bf16.mxu0 0
  %421 = vmatpush1.bf16.msra.mxu0 0
  %422 = vmatprep.subr.bf16.mxu0 0
  %423 = vmatpush1.bf16.msra.mxu0 0
  %424 = vmatprep.subr.bf16.mxu0 0
  %425 = vmatpush1.bf16.msra.mxu0 0
  %426 = vmatprep.subr.bf16.mxu0 0
  %427 = vmatpush1.bf16.msra.mxu0 0
  %428 = vmatprep.subr.bf16.mxu0 0
  %429 = vmatpush1.bf16.msra.mxu0 0
  %430 = vmatprep.subr.bf16.mxu0 0
  %431 = vmatpush1.bf16.msra.mxu0 0
  %432 = vmatprep.subr.bf16.mxu0 0
  %433 = vmatpush1.bf16.msra.mxu0 0
  %434 = vmatprep.subr.bf16.mxu0 0
  %435 = vmatpush1.bf16.msra.mxu0 0
  %436 = vmatprep.subr.bf16.mxu0 0
  %437 = vmatpush1.bf16.msra.mxu0 0
  %438 = vmatprep.subr.bf16.mxu0 0
  %439 = vmatpush1.bf16.msra.mxu0 0
  %440 = vmatprep.subr.bf16.mxu0 0
  %441 = vmatpush1.bf16.msra.mxu0 0
  %442 = vmatprep.subr.bf16.mxu0 0
  %443 = vmatpush1.bf16.msra.mxu0 0
  %444 = vmatprep.mubr.bf16.mxu0 0
  %445 = vmatmul.mubr.bf16.gmra.mrb[0].mxu0 %v303
  %v446 = vpop.f32.mrb[0].mxu0
  %v447 = vadd.f32 %v358, %v446
  %v448 = vpop.f32.mrb[0].mxu0
  %v449 = vpop.f32.mrb[0].mxu0
  %v450 = vadd.f32 %v361, %v449
  %v451 = vpop.f32.mrb[0].mxu0
  %452 = vmatprep.mubr.bf16.mxu0 0
  %453 = vmatmul.mubr.bf16.gmra.mrb[0].mxu0 %v306
  %v454 = vpop.f32.mrb[0].mxu0
  %v455 = vadd.f32 %v366, %v454
  %v456 = vpop.f32.mrb[0].mxu0
  %v457 = vpop.f32.mrb[0].mxu0
  %v458 = vadd.f32 %v369, %v457
  %v459 = vpop.f32.mrb[0].mxu0
  %460 = vmatprep.mubr.bf16.mxu0 0
  %461 = vmatmul.mubr.bf16.gmra.mrb[0].mxu0 %v309
  %v462 = vpop.f32.mrb[0].mxu0
  %v463 = vadd.f32 %v374, %v462
  %v464 = vpop.f32.mrb[0].mxu0
  %v465 = vpop.f32.mrb[0].mxu0
  %v466 = vadd.f32 %v377, %v465
  %v467 = vpop.f32.mrb[0].mxu0
  %468 = vmatprep.mubr.bf16.mxu0 0
  %469 = vmatmul.mubr.bf16.gmra.mrb[0].mxu0 %v312
  %v470 = vpop.f32.mrb[0].mxu0
  %v471 = vadd.f32 %v382, %v470
  %v472 = vpop.f32.mrb[0].mxu0
  %v473 = vpop.f32.mrb[0].mxu0
  %v474 = vadd.f32 %v385, %v473
  %v475 = vpop.f32.mrb[0].mxu0
  %476 = vmatprep.mubr.bf16.mxu0 0
  %477 = vmatmul.mubr.bf16.gmra.mrb[0].mxu0 %v315
  %v478 = vpop.f32.mrb[0].mxu0
  %v479 = vadd.f32 %v390, %v478
  %v480 = vpop.f32.mrb[0].mxu0
  %v481 = vpop.f32.mrb[0].mxu0
  %v482 = vadd.f32 %v393, %v481
  %v483 = vpop.f32.mrb[0].mxu0
  %484 = vmatprep.mubr.bf16.mxu0 0
  %485 = vmatmul.mubr.bf16.gmra.mrb[0].mxu0 %v318
  %v486 = vpop.f32.mrb[0].mxu0
  %v487 = vadd.f32 %v398, %v486
  %v488 = vpop.f32.mrb[0].mxu0
  %v489 = vpop.f32.mrb[0].mxu0
  %v490 = vadd.f32 %v401, %v489
  %v491 = vpop.f32.mrb[0].mxu0
  %492 = vmatprep.mubr.bf16.mxu0 0
  %493 = vmatmul.mubr.bf16.gmra.mrb[0].mxu0 %v321
  %v494 = vpop.f32.mrb[0].mxu0
  %v495 = vadd.f32 %v406, %v494
  %v496 = vpop.f32.mrb[0].mxu0
  %v497 = vpop.f32.mrb[0].mxu0
  %v498 = vadd.f32 %v409, %v497
  %v499 = vpop.f32.mrb[0].mxu0
  %500 = vdwg.mxu0
  %v501 = vld [vmem:[%s1] sm:$0xff]
  %v502 = vld [vmem:[%s1 + $0x8] sm:$0xf]
  %v503 = vld [vmem:[%s1 + $0xc] sm:$0xff]
  %v504 = vld [vmem:[%s1 + $0x14] sm:$0xf]
  %v505 = vld [vmem:[%s1 + $0x18] sm:$0xff]
  %v506 = vld [vmem:[%s1 + $0x20] sm:$0xf]
  %v507 = vld [vmem:[%s1 + $0x24] sm:$0xff]
  %v508 = vld [vmem:[%s1 + $0x2c] sm:$0xf]
  %v509 = vld [vmem:[%s1 + $0x30] sm:$0xff]
  %v510 = vld [vmem:[%s1 + $0x38] sm:$0xf]
  %v511 = vld [vmem:[%s1 + $0x3c] sm:$0xff]
  %v512 = vld [vmem:[%s1 + $0x44] sm:$0xf]
  %v513 = vld [vmem:[%s1 + $0x48] sm:$0xff]
  %v514 = vld [vmem:[%s1 + $0x50] sm:$0xf]
  %v515 = vld [vmem:[%s1 + $0x54] sm:$0xff]
  %v516 = vld [vmem:[%s1 + $0x5c] sm:$0xf]
  %v517 = vld [vmem:[%s1 + $0x60] sm:$0xff]
  %v518 = vld [vmem:[%s1 + $0x68] sm:$0xf]
  %v519 = vld [vmem:[%s1 + $0x6c] sm:$0xff]
  %v520 = vld [vmem:[%s1 + $0x74] sm:$0xf]
  %v521 = vld [vmem:[%s1 + $0x78] sm:$0xff]
  %v522 = vld [vmem:[%s1 + $0x80] sm:$0xf]
  %v523 = vld [vmem:[%s1 + $0x84] sm:$0xff]
  %v524 = vld [vmem:[%s1 + $0x8c] sm:$0xf]
  %v525 = vld [vmem:[%s1 + $0x90] sm:$0xff]
  %v526 = vld [vmem:[%s1 + $0x98] sm:$0xf]
  %v527 = vld [vmem:[%s1 + $0x9c] sm:$0xff]
  %v528 = vld [vmem:[%s1 + $0xa4] sm:$0xf]
  %v557 = vunpack.c.l.b16 %v501
  %v558 = vunpack.c.h.b16 %v501
  %v559 = vunpack.c.l.b16 %v502
  %v560 = vunpack.c.l.b16 %v503
  %v561 = vunpack.c.h.b16 %v503
  %v562 = vunpack.c.l.b16 %v504
  %v563 = vunpack.c.l.b16 %v505
  %v564 = vunpack.c.h.b16 %v505
  %v565 = vunpack.c.l.b16 %v506
  %v566 = vunpack.c.l.b16 %v507
  %v567 = vunpack.c.h.b16 %v507
  %v568 = vunpack.c.l.b16 %v508
  %v569 = vunpack.c.l.b16 %v509
  %v570 = vunpack.c.h.b16 %v509
  %v571 = vunpack.c.l.b16 %v510
  %v572 = vunpack.c.l.b16 %v511
  %v573 = vunpack.c.h.b16 %v511
  %v574 = vunpack.c.l.b16 %v512
  %v575 = vunpack.c.l.b16 %v513
  %v576 = vunpack.c.h.b16 %v513
  %v577 = vunpack.c.l.b16 %v514
  %v578 = vunpack.c.l.b16 %v515
  %v579 = vunpack.c.h.b16 %v515
  %v580 = vunpack.c.l.b16 %v516
  %v581 = vunpack.c.l.b16 %v517
  %v582 = vunpack.c.h.b16 %v517
  %v583 = vunpack.c.l.b16 %v518
  %v584 = vunpack.c.l.b16 %v519
  %v585 = vunpack.c.h.b16 %v519
  %v586 = vunpack.c.l.b16 %v520
  %v587 = vunpack.c.l.b16 %v521
  %v588 = vunpack.c.h.b16 %v521
  %v589 = vunpack.c.l.b16 %v522
  %v590 = vunpack.c.l.b16 %v523
  %v591 = vunpack.c.h.b16 %v523
  %v592 = vunpack.c.l.b16 %v524
  %v593 = vunpack.c.l.b16 %v525
  %v594 = vunpack.c.h.b16 %v525
  %v595 = vunpack.c.l.b16 %v526
  %v596 = vunpack.c.l.b16 %v527
  %v597 = vunpack.c.h.b16 %v527
  %v598 = vunpack.c.l.b16 %v528
  %v599 = vpack.c.b16 %v560, %v557
  %v600 = vpack.c.b16 %v561, %v558
  %v601 = vpack.c.b16 %v562, %v559
  %v602 = vpack.c.b16 %v566, %v563
  %v603 = vpack.c.b16 %v567, %v564
  %v604 = vpack.c.b16 %v568, %v565
  %v605 = vpack.c.b16 %v572, %v569
  %v606 = vpack.c.b16 %v573, %v570
  %v607 = vpack.c.b16 %v574, %v571
  %v608 = vpack.c.b16 %v578, %v575
  %v609 = vpack.c.b16 %v579, %v576
  %v610 = vpack.c.b16 %v580, %v577
  %v611 = vpack.c.b16 %v584, %v581
  %v612 = vpack.c.b16 %v585, %v582
  %v613 = vpack.c.b16 %v586, %v583
  %v614 = vpack.c.b16 %v590, %v587
  %v615 = vpack.c.b16 %v591, %v588
  %v616 = vpack.c.b16 %v592, %v589
  %v617 = vpack.c.b16 %v596, %v593
  %v618 = vpack.c.b16 %v597, %v594
  %v619 = vpack.c.b16 %v598, %v595
  %v635 = vsel %vm301, %v601, 0
  %v638 = vsel %vm301, %v604, 0
  %v641 = vsel %vm301, %v607, 0
  %v644 = vsel %vm301, %v610, 0
  %v647 = vsel %vm301, %v613, 0
  %v650 = vsel %vm301, %v616, 0
  %v653 = vsel %vm301, %v619, 0
  %655 = vmatprep.subr.bf16.mxu0 0
  %656 = vmatpush1.bf16.msra.mxu0 %v265
  %657 = vmatprep.subr.bf16.mxu0 0
  %658 = vmatpush1.bf16.msra.mxu0 %v266
  %659 = vmatprep.subr.bf16.mxu0 0
  %660 = vmatpush1.bf16.msra.mxu0 %v267
  %661 = vmatprep.subr.bf16.mxu0 0
  %662 = vmatpush1.bf16.msra.mxu0 %v268
  %663 = vmatprep.subr.bf16.mxu0 0
  %664 = vmatpush1.bf16.msra.mxu0 %v269
  %665 = vmatprep.subr.bf16.mxu0 0
  %666 = vmatpush1.bf16.msra.mxu0 %v270
  %667 = vmatprep.subr.bf16.mxu0 0
  %668 = vmatpush1.bf16.msra.mxu0 %v271
  %669 = vmatprep.subr.bf16.mxu0 0
  %670 = vmatpush1.bf16.msra.mxu0 %v272
  %671 = vmatprep.subr.bf16.mxu0 0
  %672 = vmatpush1.bf16.msra.mxu0 %v273
  %673 = vmatprep.subr.bf16.mxu0 0
  %674 = vmatpush1.bf16.msra.mxu0 %v274
  %675 = vmatprep.subr.bf16.mxu0 0
  %676 = vmatpush1.bf16.msra.mxu0 %v275
  %677 = vmatprep.subr.bf16.mxu0 0
  %678 = vmatpush1.bf16.msra.mxu0 %v276
  %679 = vmatprep.subr.bf16.mxu0 0
  %680 = vmatpush1.bf16.msra.mxu0 %v277
  %681 = vmatprep.subr.bf16.mxu0 0
  %682 = vmatpush1.bf16.msra.mxu0 %v278
  %683 = vmatprep.subr.bf16.mxu0 0
  %684 = vmatpush1.bf16.msra.mxu0 %v279
  %685 = vmatprep.subr.bf16.mxu0 0
  %686 = vmatpush1.bf16.msra.mxu0 %v280
  %687 = vmatprep.mubr.bf16.mxu0 %v600
  %688 = vmatmul.mubr.bf16.gmra.mrb[0].mxu0 %v599
  %v689 = vpop.f32.mrb[0].mxu0
  %v690 = vadd.f32 0.0, %v689
  %v691 = vpop.f32.mrb[0].mxu0
  %v692 = vpop.f32.mrb[0].mxu0
  %v693 = vadd.f32 0.0, %v692
  %v694 = vpop.f32.mrb[0].mxu0
  %695 = vmatprep.mubr.bf16.mxu0 %v603
  %696 = vmatmul.mubr.bf16.gmra.mrb[0].mxu0 %v602
  %v697 = vpop.f32.mrb[0].mxu0
  %v698 = vadd.f32 0.0, %v697
  %v699 = vpop.f32.mrb[0].mxu0
  %v700 = vpop.f32.mrb[0].mxu0
  %v701 = vadd.f32 0.0, %v700
  %v702 = vpop.f32.mrb[0].mxu0
  %703 = vmatprep.mubr.bf16.mxu0 %v606
  %704 = vmatmul.mubr.bf16.gmra.mrb[0].mxu0 %v605
  %v705 = vpop.f32.mrb[0].mxu0
  %v706 = vadd.f32 0.0, %v705
  %v707 = vpop.f32.mrb[0].mxu0
  %v708 = vpop.f32.mrb[0].mxu0
  %v709 = vadd.f32 0.0, %v708
  %v710 = vpop.f32.mrb[0].mxu0
  %711 = vmatprep.mubr.bf16.mxu0 %v609
  %712 = vmatmul.mubr.bf16.gmra.mrb[0].mxu0 %v608
  %v713 = vpop.f32.mrb[0].mxu0
  %v714 = vadd.f32 0.0, %v713
  %v715 = vpop.f32.mrb[0].mxu0
  %v716 = vpop.f32.mrb[0].mxu0
  %v717 = vadd.f32 0.0, %v716
  %v718 = vpop.f32.mrb[0].mxu0
  %719 = vmatprep.mubr.bf16.mxu0 %v612
  %720 = vmatmul.mubr.bf16.gmra.mrb[0].mxu0 %v611
  %v721 = vpop.f32.mrb[0].mxu0
  %v722 = vadd.f32 0.0, %v721
  %v723 = vpop.f32.mrb[0].mxu0
  %v724 = vpop.f32.mrb[0].mxu0
  %v725 = vadd.f32 0.0, %v724
  %v726 = vpop.f32.mrb[0].mxu0
  %727 = vmatprep.mubr.bf16.mxu0 %v615
  %728 = vmatmul.mubr.bf16.gmra.mrb[0].mxu0 %v614
  %v729 = vpop.f32.mrb[0].mxu0
  %v730 = vadd.f32 0.0, %v729
  %v731 = vpop.f32.mrb[0].mxu0
  %v732 = vpop.f32.mrb[0].mxu0
  %v733 = vadd.f32 0.0, %v732
  %v734 = vpop.f32.mrb[0].mxu0
  %735 = vmatprep.mubr.bf16.mxu0 %v618
  %736 = vmatmul.mubr.bf16.gmra.mrb[0].mxu0 %v617
  %v737 = vpop.f32.mrb[0].mxu0
  %v738 = vadd.f32 0.0, %v737
  %v739 = vpop.f32.mrb[0].mxu0
  %v740 = vpop.f32.mrb[0].mxu0
  %v741 = vadd.f32 0.0, %v740
  %v742 = vpop.f32.mrb[0].mxu0
  %743 = vdwg.mxu0
  %744 = vmatprep.subr.bf16.mxu0 0
  %745 = vmatpush1.bf16.msra.mxu0 %v281
  %746 = vmatprep.subr.bf16.mxu0 0
  %747 = vmatpush1.bf16.msra.mxu0 %v282
  %748 = vmatprep.subr.bf16.mxu0 0
  %749 = vmatpush1.bf16.msra.mxu0 0
  %750 = vmatprep.subr.bf16.mxu0 0
  %751 = vmatpush1.bf16.msra.mxu0 0
  %752 = vmatprep.subr.bf16.mxu0 0
  %753 = vmatpush1.bf16.msra.mxu0 0
  %754 = vmatprep.subr.bf16.mxu0 0
  %755 = vmatpush1.bf16.msra.mxu0 0
  %756 = vmatprep.subr.bf16.mxu0 0
  %757 = vmatpush1.bf16.msra.mxu0 0
  %758 = vmatprep.subr.bf16.mxu0 0
  %759 = vmatpush1.bf16.msra.mxu0 0
  %760 = vmatprep.subr.bf16.mxu0 0
  %761 = vmatpush1.bf16.msra.mxu0 0
  %762 = vmatprep.subr.bf16.mxu0 0
  %763 = vmatpush1.bf16.msra.mxu0 0
  %764 = vmatprep.subr.bf16.mxu0 0
  %765 = vmatpush1.bf16.msra.mxu0 0
  %766 = vmatprep.subr.bf16.mxu0 0
  %767 = vmatpush1.bf16.msra.mxu0 0
  %768 = vmatprep.subr.bf16.mxu0 0
  %769 = vmatpush1.bf16.msra.mxu0 0
  %770 = vmatprep.subr.bf16.mxu0 0
  %771 = vmatpush1.bf16.msra.mxu0 0
  %772 = vmatprep.subr.bf16.mxu0 0
  %773 = vmatpush1.bf16.msra.mxu0 0
  %774 = vmatprep.subr.bf16.mxu0 0
  %775 = vmatpush1.bf16.msra.mxu0 0
  %776 = vmatprep.mubr.bf16.mxu0 0
  %777 = vmatmul.mubr.bf16.gmra.mrb[0].mxu0 %v635
  %v778 = vpop.f32.mrb[0].mxu0
  %v779 = vadd.f32 %v690, %v778
  %v780 = vpop.f32.mrb[0].mxu0
  %v781 = vpop.f32.mrb[0].mxu0
  %v782 = vadd.f32 %v693, %v781
  %v783 = vpop.f32.mrb[0].mxu0
  %784 = vmatprep.mubr.bf16.mxu0 0
  %785 = vmatmul.mubr.bf16.gmra.mrb[0].mxu0 %v638
  %v786 = vpop.f32.mrb[0].mxu0
  %v787 = vadd.f32 %v698, %v786
  %v788 = vpop.f32.mrb[0].mxu0
  %v789 = vpop.f32.mrb[0].mxu0
  %v790 = vadd.f32 %v701, %v789
  %v791 = vpop.f32.mrb[0].mxu0
  %792 = vmatprep.mubr.bf16.mxu0 0
  %793 = vmatmul.mubr.bf16.gmra.mrb[0].mxu0 %v641
  %v794 = vpop.f32.mrb[0].mxu0
  %v795 = vadd.f32 %v706, %v794
  %v796 = vpop.f32.mrb[0].mxu0
  %v797 = vpop.f32.mrb[0].mxu0
  %v798 = vadd.f32 %v709, %v797
  %v799 = vpop.f32.mrb[0].mxu0
  %800 = vmatprep.mubr.bf16.mxu0 0
  %801 = vmatmul.mubr.bf16.gmra.mrb[0].mxu0 %v644
  %v802 = vpop.f32.mrb[0].mxu0
  %v803 = vadd.f32 %v714, %v802
  %v804 = vpop.f32.mrb[0].mxu0
  %v805 = vpop.f32.mrb[0].mxu0
  %v806 = vadd.f32 %v717, %v805
  %v807 = vpop.f32.mrb[0].mxu0
  %808 = vmatprep.mubr.bf16.mxu0 0
  %809 = vmatmul.mubr.bf16.gmra.mrb[0].mxu0 %v647
  %v810 = vpop.f32.mrb[0].mxu0
  %v811 = vadd.f32 %v722, %v810
  %v812 = vpop.f32.mrb[0].mxu0
  %v813 = vpop.f32.mrb[0].mxu0
  %v814 = vadd.f32 %v725, %v813
  %v815 = vpop.f32.mrb[0].mxu0
  %816 = vmatprep.mubr.bf16.mxu0 0
  %817 = vmatmul.mubr.bf16.gmra.mrb[0].mxu0 %v650
  %v818 = vpop.f32.mrb[0].mxu0
  %v819 = vadd.f32 %v730, %v818
  %v820 = vpop.f32.mrb[0].mxu0
  %v821 = vpop.f32.mrb[0].mxu0
  %v822 = vadd.f32 %v733, %v821
  %v823 = vpop.f32.mrb[0].mxu0
  %824 = vmatprep.mubr.bf16.mxu0 0
  %825 = vmatmul.mubr.bf16.gmra.mrb[0].mxu0 %v653
  %v826 = vpop.f32.mrb[0].mxu0
  %v827 = vadd.f32 %v738, %v826
  %v828 = vpop.f32.mrb[0].mxu0
  %v829 = vpop.f32.mrb[0].mxu0
  %v830 = vadd.f32 %v741, %v829
  %v831 = vpop.f32.mrb[0].mxu0
  %832 = vdwg.mxu0
  %v833 = vmax.f32 %v447, %v779
  %v834 = vmax.f32 %v450, %v782
  %v835 = vmax.f32 %v455, %v787
  %v836 = vmax.f32 %v458, %v790
  %v837 = vmax.f32 %v463, %v795
  %v838 = vmax.f32 %v466, %v798
  %v839 = vmax.f32 %v471, %v803
  %v840 = vmax.f32 %v474, %v806
  %v841 = vmax.f32 %v479, %v811
  %v842 = vmax.f32 %v482, %v814
  %v843 = vmax.f32 %v487, %v819
  %v844 = vmax.f32 %v490, %v822
  %v845 = vmax.f32 %v495, %v827
  %v846 = vmax.f32 %v498, %v830
  %v847 = vld [vmem:[%s2] sm:$0xff]
  %v848 = vld [vmem:[%s2 + $0x8] sm:$0xf]
  %v849 = vld [vmem:[%s2 + $0xc] sm:$0xff]
  %v850 = vld [vmem:[%s2 + $0x14] sm:$0xf]
  %v851 = vld [vmem:[%s2 + $0x18] sm:$0xff]
  %v852 = vld [vmem:[%s2 + $0x20] sm:$0xf]
  %v853 = vld [vmem:[%s2 + $0x24] sm:$0xff]
  %v854 = vld [vmem:[%s2 + $0x2c] sm:$0xf]
  %v855 = vld [vmem:[%s2 + $0x30] sm:$0xff]
  %v856 = vld [vmem:[%s2 + $0x38] sm:$0xf]
  %v857 = vld [vmem:[%s2 + $0x3c] sm:$0xff]
  %v858 = vld [vmem:[%s2 + $0x44] sm:$0xf]
  %v859 = vld [vmem:[%s2 + $0x48] sm:$0xff]
  %v860 = vld [vmem:[%s2 + $0x50] sm:$0xf]
  %v861 = vld [vmem:[%s2 + $0x54] sm:$0xff]
  %v862 = vld [vmem:[%s2 + $0x5c] sm:$0xf]
  %v863 = vld [vmem:[%s2 + $0x60] sm:$0xff]
  %v864 = vld [vmem:[%s2 + $0x68] sm:$0xf]
  %v865 = vld [vmem:[%s2 + $0x6c] sm:$0xff]
  %v866 = vld [vmem:[%s2 + $0x74] sm:$0xf]
  %v867 = vld [vmem:[%s2 + $0x78] sm:$0xff]
  %v868 = vld [vmem:[%s2 + $0x80] sm:$0xf]
  %v869 = vld [vmem:[%s2 + $0x84] sm:$0xff]
  %v870 = vld [vmem:[%s2 + $0x8c] sm:$0xf]
  %v871 = vld [vmem:[%s2 + $0x90] sm:$0xff]
  %v872 = vld [vmem:[%s2 + $0x98] sm:$0xf]
  %v873 = vld [vmem:[%s2 + $0x9c] sm:$0xff]
  %v874 = vld [vmem:[%s2 + $0xa4] sm:$0xf]
  %v903 = vunpack.c.l.b16 %v847
  %v904 = vunpack.c.h.b16 %v847
  %v905 = vunpack.c.l.b16 %v848
  %v906 = vunpack.c.l.b16 %v849
  %v907 = vunpack.c.h.b16 %v849
  %v908 = vunpack.c.l.b16 %v850
  %v909 = vunpack.c.l.b16 %v851
  %v910 = vunpack.c.h.b16 %v851
  %v911 = vunpack.c.l.b16 %v852
  %v912 = vunpack.c.l.b16 %v853
  %v913 = vunpack.c.h.b16 %v853
  %v914 = vunpack.c.l.b16 %v854
  %v915 = vunpack.c.l.b16 %v855
  %v916 = vunpack.c.h.b16 %v855
  %v917 = vunpack.c.l.b16 %v856
  %v918 = vunpack.c.l.b16 %v857
  %v919 = vunpack.c.h.b16 %v857
  %v920 = vunpack.c.l.b16 %v858
  %v921 = vunpack.c.l.b16 %v859
  %v922 = vunpack.c.h.b16 %v859
  %v923 = vunpack.c.l.b16 %v860
  %v924 = vunpack.c.l.b16 %v861
  %v925 = vunpack.c.h.b16 %v861
  %v926 = vunpack.c.l.b16 %v862
  %v927 = vunpack.c.l.b16 %v863
  %v928 = vunpack.c.h.b16 %v863
  %v929 = vunpack.c.l.b16 %v864
  %v930 = vunpack.c.l.b16 %v865
  %v931 = vunpack.c.h.b16 %v865
  %v932 = vunpack.c.l.b16 %v866
  %v933 = vunpack.c.l.b16 %v867
  %v934 = vunpack.c.h.b16 %v867
  %v935 = vunpack.c.l.b16 %v868
  %v936 = vunpack.c.l.b16 %v869
  %v937 = vunpack.c.h.b16 %v869
  %v938 = vunpack.c.l.b16 %v870
  %v939 = vunpack.c.l.b16 %v871
  %v940 = vunpack.c.h.b16 %v871
  %v941 = vunpack.c.l.b16 %v872
  %v942 = vunpack.c.l.b16 %v873
  %v943 = vunpack.c.h.b16 %v873
  %v944 = vunpack.c.l.b16 %v874
  %v945 = vpack.c.b16 %v906, %v903
  %v946 = vpack.c.b16 %v907, %v904
  %v947 = vpack.c.b16 %v908, %v905
  %v948 = vpack.c.b16 %v912, %v909
  %v949 = vpack.c.b16 %v913, %v910
  %v950 = vpack.c.b16 %v914, %v911
  %v951 = vpack.c.b16 %v918, %v915
  %v952 = vpack.c.b16 %v919, %v916
  %v953 = vpack.c.b16 %v920, %v917
  %v954 = vpack.c.b16 %v924, %v921
  %v955 = vpack.c.b16 %v925, %v922
  %v956 = vpack.c.b16 %v926, %v923
  %v957 = vpack.c.b16 %v930, %v927
  %v958 = vpack.c.b16 %v931, %v928
  %v959 = vpack.c.b16 %v932, %v929
  %v960 = vpack.c.b16 %v936, %v933
  %v961 = vpack.c.b16 %v937, %v934
  %v962 = vpack.c.b16 %v938, %v935
  %v963 = vpack.c.b16 %v942, %v939
  %v964 = vpack.c.b16 %v943, %v940
  %v965 = vpack.c.b16 %v944, %v941
  %v981 = vsel %vm301, %v947, 0
  %v984 = vsel %vm301, %v950, 0
  %v987 = vsel %vm301, %v953, 0
  %v990 = vsel %vm301, %v956, 0
  %v993 = vsel %vm301, %v959, 0
  %v996 = vsel %vm301, %v962, 0
  %v999 = vsel %vm301, %v965, 0
  %1001 = vmatprep.subr.bf16.mxu0 0
  %1002 = vmatpush1.bf16.msra.mxu0 %v265
  %1003 = vmatprep.subr.bf16.mxu0 0
  %1004 = vmatpush1.bf16.msra.mxu0 %v266
  %1005 = vmatprep.subr.bf16.mxu0 0
  %1006 = vmatpush1.bf16.msra.mxu0 %v267
  %1007 = vmatprep.subr.bf16.mxu0 0
  %1008 = vmatpush1.bf16.msra.mxu0 %v268
  %1009 = vmatprep.subr.bf16.mxu0 0
  %1010 = vmatpush1.bf16.msra.mxu0 %v269
  %1011 = vmatprep.subr.bf16.mxu0 0
  %1012 = vmatpush1.bf16.msra.mxu0 %v270
  %1013 = vmatprep.subr.bf16.mxu0 0
  %1014 = vmatpush1.bf16.msra.mxu0 %v271
  %1015 = vmatprep.subr.bf16.mxu0 0
  %1016 = vmatpush1.bf16.msra.mxu0 %v272
  %1017 = vmatprep.subr.bf16.mxu0 0
  %1018 = vmatpush1.bf16.msra.mxu0 %v273
  %1019 = vmatprep.subr.bf16.mxu0 0
  %1020 = vmatpush1.bf16.msra.mxu0 %v274
  %1021 = vmatprep.subr.bf16.mxu0 0
  %1022 = vmatpush1.bf16.msra.mxu0 %v275
  %1023 = vmatprep.subr.bf16.mxu0 0
  %1024 = vmatpush1.bf16.msra.mxu0 %v276
  %1025 = vmatprep.subr.bf16.mxu0 0
  %1026 = vmatpush1.bf16.msra.mxu0 %v277
  %1027 = vmatprep.subr.bf16.mxu0 0
  %1028 = vmatpush1.bf16.msra.mxu0 %v278
  %1029 = vmatprep.subr.bf16.mxu0 0
  %1030 = vmatpush1.bf16.msra.mxu0 %v279
  %1031 = vmatprep.subr.bf16.mxu0 0
  %1032 = vmatpush1.bf16.msra.mxu0 %v280
  %1033 = vmatprep.mubr.bf16.mxu0 %v946
  %1034 = vmatmul.mubr.bf16.gmra.mrb[0].mxu0 %v945
  %v1035 = vpop.f32.mrb[0].mxu0
  %v1036 = vadd.f32 0.0, %v1035
  %v1037 = vpop.f32.mrb[0].mxu0
  %v1038 = vpop.f32.mrb[0].mxu0
  %v1039 = vadd.f32 0.0, %v1038
  %v1040 = vpop.f32.mrb[0].mxu0
  %1041 = vmatprep.mubr.bf16.mxu0 %v949
  %1042 = vmatmul.mubr.bf16.gmra.mrb[0].mxu0 %v948
  %v1043 = vpop.f32.mrb[0].mxu0
  %v1044 = vadd.f32 0.0, %v1043
  %v1045 = vpop.f32.mrb[0].mxu0
  %v1046 = vpop.f32.mrb[0].mxu0
  %v1047 = vadd.f32 0.0, %v1046
  %v1048 = vpop.f32.mrb[0].mxu0
  %1049 = vmatprep.mubr.bf16.mxu0 %v952
  %1050 = vmatmul.mubr.bf16.gmra.mrb[0].mxu0 %v951
  %v1051 = vpop.f32.mrb[0].mxu0
  %v1052 = vadd.f32 0.0, %v1051
  %v1053 = vpop.f32.mrb[0].mxu0
  %v1054 = vpop.f32.mrb[0].mxu0
  %v1055 = vadd.f32 0.0, %v1054
  %v1056 = vpop.f32.mrb[0].mxu0
  %1057 = vmatprep.mubr.bf16.mxu0 %v955
  %1058 = vmatmul.mubr.bf16.gmra.mrb[0].mxu0 %v954
  %v1059 = vpop.f32.mrb[0].mxu0
  %v1060 = vadd.f32 0.0, %v1059
  %v1061 = vpop.f32.mrb[0].mxu0
  %v1062 = vpop.f32.mrb[0].mxu0
  %v1063 = vadd.f32 0.0, %v1062
  %v1064 = vpop.f32.mrb[0].mxu0
  %1065 = vmatprep.mubr.bf16.mxu0 %v958
  %1066 = vmatmul.mubr.bf16.gmra.mrb[0].mxu0 %v957
  %v1067 = vpop.f32.mrb[0].mxu0
  %v1068 = vadd.f32 0.0, %v1067
  %v1069 = vpop.f32.mrb[0].mxu0
  %v1070 = vpop.f32.mrb[0].mxu0
  %v1071 = vadd.f32 0.0, %v1070
  %v1072 = vpop.f32.mrb[0].mxu0
  %1073 = vmatprep.mubr.bf16.mxu0 %v961
  %1074 = vmatmul.mubr.bf16.gmra.mrb[0].mxu0 %v960
  %v1075 = vpop.f32.mrb[0].mxu0
  %v1076 = vadd.f32 0.0, %v1075
  %v1077 = vpop.f32.mrb[0].mxu0
  %v1078 = vpop.f32.mrb[0].mxu0
  %v1079 = vadd.f32 0.0, %v1078
  %v1080 = vpop.f32.mrb[0].mxu0
  %1081 = vmatprep.mubr.bf16.mxu0 %v964
  %1082 = vmatmul.mubr.bf16.gmra.mrb[0].mxu0 %v963
  %v1083 = vpop.f32.mrb[0].mxu0
  %v1084 = vadd.f32 0.0, %v1083
  %v1085 = vpop.f32.mrb[0].mxu0
  %v1086 = vpop.f32.mrb[0].mxu0
  %v1087 = vadd.f32 0.0, %v1086
  %v1088 = vpop.f32.mrb[0].mxu0
  %1089 = vdwg.mxu0
  %1090 = vmatprep.subr.bf16.mxu0 0
  %1091 = vmatpush1.bf16.msra.mxu0 %v281
  %1092 = vmatprep.subr.bf16.mxu0 0
  %1093 = vmatpush1.bf16.msra.mxu0 %v282
  %1094 = vmatprep.subr.bf16.mxu0 0
  %1095 = vmatpush1.bf16.msra.mxu0 0
  %1096 = vmatprep.subr.bf16.mxu0 0
  %1097 = vmatpush1.bf16.msra.mxu0 0
  %1098 = vmatprep.subr.bf16.mxu0 0
  %1099 = vmatpush1.bf16.msra.mxu0 0
  %1100 = vmatprep.subr.bf16.mxu0 0
  %1101 = vmatpush1.bf16.msra.mxu0 0
  %1102 = vmatprep.subr.bf16.mxu0 0
  %1103 = vmatpush1.bf16.msra.mxu0 0
  %1104 = vmatprep.subr.bf16.mxu0 0
  %1105 = vmatpush1.bf16.msra.mxu0 0
  %1106 = vmatprep.subr.bf16.mxu0 0
  %1107 = vmatpush1.bf16.msra.mxu0 0
  %1108 = vmatprep.subr.bf16.mxu0 0
  %1109 = vmatpush1.bf16.msra.mxu0 0
  %1110 = vmatprep.subr.bf16.mxu0 0
  %1111 = vmatpush1.bf16.msra.mxu0 0
  %1112 = vmatprep.subr.bf16.mxu0 0
  %1113 = vmatpush1.bf16.msra.mxu0 0
  %1114 = vmatprep.subr.bf16.mxu0 0
  %1115 = vmatpush1.bf16.msra.mxu0 0
  %1116 = vmatprep.subr.bf16.mxu0 0
  %1117 = vmatpush1.bf16.msra.mxu0 0
  %1118 = vmatprep.subr.bf16.mxu0 0
  %1119 = vmatpush1.bf16.msra.mxu0 0
  %1120 = vmatprep.subr.bf16.mxu0 0
  %1121 = vmatpush1.bf16.msra.mxu0 0
  %1122 = vmatprep.mubr.bf16.mxu0 0
  %1123 = vmatmul.mubr.bf16.gmra.mrb[0].mxu0 %v981
  %v1124 = vpop.f32.mrb[0].mxu0
  %v1125 = vadd.f32 %v1036, %v1124
  %v1126 = vpop.f32.mrb[0].mxu0
  %v1127 = vpop.f32.mrb[0].mxu0
  %v1128 = vadd.f32 %v1039, %v1127
  %v1129 = vpop.f32.mrb[0].mxu0
  %1130 = vmatprep.mubr.bf16.mxu0 0
  %1131 = vmatmul.mubr.bf16.gmra.mrb[0].mxu0 %v984
  %v1132 = vpop.f32.mrb[0].mxu0
  %v1133 = vadd.f32 %v1044, %v1132
  %v1134 = vpop.f32.mrb[0].mxu0
  %v1135 = vpop.f32.mrb[0].mxu0
  %v1136 = vadd.f32 %v1047, %v1135
  %v1137 = vpop.f32.mrb[0].mxu0
  %1138 = vmatprep.mubr.bf16.mxu0 0
  %1139 = vmatmul.mubr.bf16.gmra.mrb[0].mxu0 %v987
  %v1140 = vpop.f32.mrb[0].mxu0
  %v1141 = vadd.f32 %v1052, %v1140
  %v1142 = vpop.f32.mrb[0].mxu0
  %v1143 = vpop.f32.mrb[0].mxu0
  %v1144 = vadd.f32 %v1055, %v1143
  %v1145 = vpop.f32.mrb[0].mxu0
  %1146 = vmatprep.mubr.bf16.mxu0 0
  %1147 = vmatmul.mubr.bf16.gmra.mrb[0].mxu0 %v990
  %v1148 = vpop.f32.mrb[0].mxu0
  %v1149 = vadd.f32 %v1060, %v1148
  %v1150 = vpop.f32.mrb[0].mxu0
  %v1151 = vpop.f32.mrb[0].mxu0
  %v1152 = vadd.f32 %v1063, %v1151
  %v1153 = vpop.f32.mrb[0].mxu0
  %1154 = vmatprep.mubr.bf16.mxu0 0
  %1155 = vmatmul.mubr.bf16.gmra.mrb[0].mxu0 %v993
  %v1156 = vpop.f32.mrb[0].mxu0
  %v1157 = vadd.f32 %v1068, %v1156
  %v1158 = vpop.f32.mrb[0].mxu0
  %v1159 = vpop.f32.mrb[0].mxu0
  %v1160 = vadd.f32 %v1071, %v1159
  %v1161 = vpop.f32.mrb[0].mxu0
  %1162 = vmatprep.mubr.bf16.mxu0 0
  %1163 = vmatmul.mubr.bf16.gmra.mrb[0].mxu0 %v996
  %v1164 = vpop.f32.mrb[0].mxu0
  %v1165 = vadd.f32 %v1076, %v1164
  %v1166 = vpop.f32.mrb[0].mxu0
  %v1167 = vpop.f32.mrb[0].mxu0
  %v1168 = vadd.f32 %v1079, %v1167
  %v1169 = vpop.f32.mrb[0].mxu0
  %1170 = vmatprep.mubr.bf16.mxu0 0
  %1171 = vmatmul.mubr.bf16.gmra.mrb[0].mxu0 %v999
  %v1172 = vpop.f32.mrb[0].mxu0
  %v1173 = vadd.f32 %v1084, %v1172
  %v1174 = vpop.f32.mrb[0].mxu0
  %v1175 = vpop.f32.mrb[0].mxu0
  %v1176 = vadd.f32 %v1087, %v1175
  %v1177 = vpop.f32.mrb[0].mxu0
  %1178 = vdwg.mxu0
  %v1179 = vmax.f32 %v833, %v1125
  %v1180 = vmax.f32 %v834, %v1128
  %v1181 = vmax.f32 %v835, %v1133
  %v1182 = vmax.f32 %v836, %v1136
  %v1183 = vmax.f32 %v837, %v1141
  %v1184 = vmax.f32 %v838, %v1144
  %v1185 = vmax.f32 %v839, %v1149
  %v1186 = vmax.f32 %v840, %v1152
  %v1187 = vmax.f32 %v841, %v1157
  %v1188 = vmax.f32 %v842, %v1160
  %v1189 = vmax.f32 %v843, %v1165
  %v1190 = vmax.f32 %v844, %v1168
  %v1191 = vmax.f32 %v845, %v1173
  %v1192 = vmax.f32 %v846, %v1176
  %v1193 = vld [vmem:[%s3] sm:$0xff]
  %v1194 = vld [vmem:[%s3 + $0x8] sm:$0xf]
  %v1195 = vld [vmem:[%s3 + $0xc] sm:$0xff]
  %v1196 = vld [vmem:[%s3 + $0x14] sm:$0xf]
  %v1197 = vld [vmem:[%s3 + $0x18] sm:$0xff]
  %v1198 = vld [vmem:[%s3 + $0x20] sm:$0xf]
  %v1199 = vld [vmem:[%s3 + $0x24] sm:$0xff]
  %v1200 = vld [vmem:[%s3 + $0x2c] sm:$0xf]
  %v1201 = vld [vmem:[%s3 + $0x30] sm:$0xff]
  %v1202 = vld [vmem:[%s3 + $0x38] sm:$0xf]
  %v1203 = vld [vmem:[%s3 + $0x3c] sm:$0xff]
  %v1204 = vld [vmem:[%s3 + $0x44] sm:$0xf]
  %v1205 = vld [vmem:[%s3 + $0x48] sm:$0xff]
  %v1206 = vld [vmem:[%s3 + $0x50] sm:$0xf]
  %v1207 = vld [vmem:[%s3 + $0x54] sm:$0xff]
  %v1208 = vld [vmem:[%s3 + $0x5c] sm:$0xf]
  %v1209 = vld [vmem:[%s3 + $0x60] sm:$0xff]
  %v1210 = vld [vmem:[%s3 + $0x68] sm:$0xf]
  %v1211 = vld [vmem:[%s3 + $0x6c] sm:$0xff]
  %v1212 = vld [vmem:[%s3 + $0x74] sm:$0xf]
  %v1213 = vld [vmem:[%s3 + $0x78] sm:$0xff]
  %v1214 = vld [vmem:[%s3 + $0x80] sm:$0xf]
  %v1215 = vld [vmem:[%s3 + $0x84] sm:$0xff]
  %v1216 = vld [vmem:[%s3 + $0x8c] sm:$0xf]
  %v1217 = vld [vmem:[%s3 + $0x90] sm:$0xff]
  %v1218 = vld [vmem:[%s3 + $0x98] sm:$0xf]
  %v1219 = vld [vmem:[%s3 + $0x9c] sm:$0xff]
  %v1220 = vld [vmem:[%s3 + $0xa4] sm:$0xf]
  %v1249 = vunpack.c.l.b16 %v1193
  %v1250 = vunpack.c.h.b16 %v1193
  %v1251 = vunpack.c.l.b16 %v1194
  %v1252 = vunpack.c.l.b16 %v1195
  %v1253 = vunpack.c.h.b16 %v1195
  %v1254 = vunpack.c.l.b16 %v1196
  %v1255 = vunpack.c.l.b16 %v1197
  %v1256 = vunpack.c.h.b16 %v1197
  %v1257 = vunpack.c.l.b16 %v1198
  %v1258 = vunpack.c.l.b16 %v1199
  %v1259 = vunpack.c.h.b16 %v1199
  %v1260 = vunpack.c.l.b16 %v1200
  %v1261 = vunpack.c.l.b16 %v1201
  %v1262 = vunpack.c.h.b16 %v1201
  %v1263 = vunpack.c.l.b16 %v1202
  %v1264 = vunpack.c.l.b16 %v1203
  %v1265 = vunpack.c.h.b16 %v1203
  %v1266 = vunpack.c.l.b16 %v1204
  %v1267 = vunpack.c.l.b16 %v1205
  %v1268 = vunpack.c.h.b16 %v1205
  %v1269 = vunpack.c.l.b16 %v1206
  %v1270 = vunpack.c.l.b16 %v1207
  %v1271 = vunpack.c.h.b16 %v1207
  %v1272 = vunpack.c.l.b16 %v1208
  %v1273 = vunpack.c.l.b16 %v1209
  %v1274 = vunpack.c.h.b16 %v1209
  %v1275 = vunpack.c.l.b16 %v1210
  %v1276 = vunpack.c.l.b16 %v1211
  %v1277 = vunpack.c.h.b16 %v1211
  %v1278 = vunpack.c.l.b16 %v1212
  %v1279 = vunpack.c.l.b16 %v1213
  %v1280 = vunpack.c.h.b16 %v1213
  %v1281 = vunpack.c.l.b16 %v1214
  %v1282 = vunpack.c.l.b16 %v1215
  %v1283 = vunpack.c.h.b16 %v1215
  %v1284 = vunpack.c.l.b16 %v1216
  %v1285 = vunpack.c.l.b16 %v1217
  %v1286 = vunpack.c.h.b16 %v1217
  %v1287 = vunpack.c.l.b16 %v1218
  %v1288 = vunpack.c.l.b16 %v1219
  %v1289 = vunpack.c.h.b16 %v1219
  %v1290 = vunpack.c.l.b16 %v1220
  %v1291 = vpack.c.b16 %v1252, %v1249
  %v1292 = vpack.c.b16 %v1253, %v1250
  %v1293 = vpack.c.b16 %v1254, %v1251
  %v1294 = vpack.c.b16 %v1258, %v1255
  %v1295 = vpack.c.b16 %v1259, %v1256
  %v1296 = vpack.c.b16 %v1260, %v1257
  %v1297 = vpack.c.b16 %v1264, %v1261
  %v1298 = vpack.c.b16 %v1265, %v1262
  %v1299 = vpack.c.b16 %v1266, %v1263
  %v1300 = vpack.c.b16 %v1270, %v1267
  %v1301 = vpack.c.b16 %v1271, %v1268
  %v1302 = vpack.c.b16 %v1272, %v1269
  %v1303 = vpack.c.b16 %v1276, %v1273
  %v1304 = vpack.c.b16 %v1277, %v1274
  %v1305 = vpack.c.b16 %v1278, %v1275
  %v1306 = vpack.c.b16 %v1282, %v1279
  %v1307 = vpack.c.b16 %v1283, %v1280
  %v1308 = vpack.c.b16 %v1284, %v1281
  %v1309 = vpack.c.b16 %v1288, %v1285
  %v1310 = vpack.c.b16 %v1289, %v1286
  %v1311 = vpack.c.b16 %v1290, %v1287
  %v1327 = vsel %vm301, %v1293, 0
  %v1330 = vsel %vm301, %v1296, 0
  %v1333 = vsel %vm301, %v1299, 0
  %v1336 = vsel %vm301, %v1302, 0
  %v1339 = vsel %vm301, %v1305, 0
  %v1342 = vsel %vm301, %v1308, 0
  %v1345 = vsel %vm301, %v1311, 0
  %1347 = vmatprep.subr.bf16.mxu0 0
  %1348 = vmatpush1.bf16.msra.mxu0 %v265
  %1349 = vmatprep.subr.bf16.mxu0 0
  %1350 = vmatpush1.bf16.msra.mxu0 %v266
  %1351 = vmatprep.subr.bf16.mxu0 0
  %1352 = vmatpush1.bf16.msra.mxu0 %v267
  %1353 = vmatprep.subr.bf16.mxu0 0
  %1354 = vmatpush1.bf16.msra.mxu0 %v268
  %1355 = vmatprep.subr.bf16.mxu0 0
  %1356 = vmatpush1.bf16.msra.mxu0 %v269
  %1357 = vmatprep.subr.bf16.mxu0 0
  %1358 = vmatpush1.bf16.msra.mxu0 %v270
  %1359 = vmatprep.subr.bf16.mxu0 0
  %1360 = vmatpush1.bf16.msra.mxu0 %v271
  %1361 = vmatprep.subr.bf16.mxu0 0
  %1362 = vmatpush1.bf16.msra.mxu0 %v272
  %1363 = vmatprep.subr.bf16.mxu0 0
  %1364 = vmatpush1.bf16.msra.mxu0 %v273
  %1365 = vmatprep.subr.bf16.mxu0 0
  %1366 = vmatpush1.bf16.msra.mxu0 %v274
  %1367 = vmatprep.subr.bf16.mxu0 0
  %1368 = vmatpush1.bf16.msra.mxu0 %v275
  %1369 = vmatprep.subr.bf16.mxu0 0
  %1370 = vmatpush1.bf16.msra.mxu0 %v276
  %1371 = vmatprep.subr.bf16.mxu0 0
  %1372 = vmatpush1.bf16.msra.mxu0 %v277
  %1373 = vmatprep.subr.bf16.mxu0 0
  %1374 = vmatpush1.bf16.msra.mxu0 %v278
  %1375 = vmatprep.subr.bf16.mxu0 0
  %1376 = vmatpush1.bf16.msra.mxu0 %v279
  %1377 = vmatprep.subr.bf16.mxu0 0
  %1378 = vmatpush1.bf16.msra.mxu0 %v280
  %1379 = vmatprep.mubr.bf16.mxu0 %v1292
  %1380 = vmatmul.mubr.bf16.gmra.mrb[0].mxu0 %v1291
  %v1381 = vpop.f32.mrb[0].mxu0
  %v1382 = vadd.f32 0.0, %v1381
  %v1383 = vpop.f32.mrb[0].mxu0
  %v1384 = vpop.f32.mrb[0].mxu0
  %v1385 = vadd.f32 0.0, %v1384
  %v1386 = vpop.f32.mrb[0].mxu0
  %1387 = vmatprep.mubr.bf16.mxu0 %v1295
  %1388 = vmatmul.mubr.bf16.gmra.mrb[0].mxu0 %v1294
  %v1389 = vpop.f32.mrb[0].mxu0
  %v1390 = vadd.f32 0.0, %v1389
  %v1391 = vpop.f32.mrb[0].mxu0
  %v1392 = vpop.f32.mrb[0].mxu0
  %v1393 = vadd.f32 0.0, %v1392
  %v1394 = vpop.f32.mrb[0].mxu0
  %1395 = vmatprep.mubr.bf16.mxu0 %v1298
  %1396 = vmatmul.mubr.bf16.gmra.mrb[0].mxu0 %v1297
  %v1397 = vpop.f32.mrb[0].mxu0
  %v1398 = vadd.f32 0.0, %v1397
  %v1399 = vpop.f32.mrb[0].mxu0
  %v1400 = vpop.f32.mrb[0].mxu0
  %v1401 = vadd.f32 0.0, %v1400
  %v1402 = vpop.f32.mrb[0].mxu0
  %1403 = vmatprep.mubr.bf16.mxu0 %v1301
  %1404 = vmatmul.mubr.bf16.gmra.mrb[0].mxu0 %v1300
  %v1405 = vpop.f32.mrb[0].mxu0
  %v1406 = vadd.f32 0.0, %v1405
  %v1407 = vpop.f32.mrb[0].mxu0
  %v1408 = vpop.f32.mrb[0].mxu0
  %v1409 = vadd.f32 0.0, %v1408
  %v1410 = vpop.f32.mrb[0].mxu0
  %1411 = vmatprep.mubr.bf16.mxu0 %v1304
  %1412 = vmatmul.mubr.bf16.gmra.mrb[0].mxu0 %v1303
  %v1413 = vpop.f32.mrb[0].mxu0
  %v1414 = vadd.f32 0.0, %v1413
  %v1415 = vpop.f32.mrb[0].mxu0
  %v1416 = vpop.f32.mrb[0].mxu0
  %v1417 = vadd.f32 0.0, %v1416
  %v1418 = vpop.f32.mrb[0].mxu0
  %1419 = vmatprep.mubr.bf16.mxu0 %v1307
  %1420 = vmatmul.mubr.bf16.gmra.mrb[0].mxu0 %v1306
  %v1421 = vpop.f32.mrb[0].mxu0
  %v1422 = vadd.f32 0.0, %v1421
  %v1423 = vpop.f32.mrb[0].mxu0
  %v1424 = vpop.f32.mrb[0].mxu0
  %v1425 = vadd.f32 0.0, %v1424
  %v1426 = vpop.f32.mrb[0].mxu0
  %1427 = vmatprep.mubr.bf16.mxu0 %v1310
  %1428 = vmatmul.mubr.bf16.gmra.mrb[0].mxu0 %v1309
  %v1429 = vpop.f32.mrb[0].mxu0
  %v1430 = vadd.f32 0.0, %v1429
  %v1431 = vpop.f32.mrb[0].mxu0
  %v1432 = vpop.f32.mrb[0].mxu0
  %v1433 = vadd.f32 0.0, %v1432
  %v1434 = vpop.f32.mrb[0].mxu0
  %1435 = vdwg.mxu0
  %1436 = vmatprep.subr.bf16.mxu0 0
  %1437 = vmatpush1.bf16.msra.mxu0 %v281
  %1438 = vmatprep.subr.bf16.mxu0 0
  %1439 = vmatpush1.bf16.msra.mxu0 %v282
  %1440 = vmatprep.subr.bf16.mxu0 0
  %1441 = vmatpush1.bf16.msra.mxu0 0
  %1442 = vmatprep.subr.bf16.mxu0 0
  %1443 = vmatpush1.bf16.msra.mxu0 0
  %1444 = vmatprep.subr.bf16.mxu0 0
  %1445 = vmatpush1.bf16.msra.mxu0 0
  %1446 = vmatprep.subr.bf16.mxu0 0
  %1447 = vmatpush1.bf16.msra.mxu0 0
  %1448 = vmatprep.subr.bf16.mxu0 0
  %1449 = vmatpush1.bf16.msra.mxu0 0
  %1450 = vmatprep.subr.bf16.mxu0 0
  %1451 = vmatpush1.bf16.msra.mxu0 0
  %1452 = vmatprep.subr.bf16.mxu0 0
  %1453 = vmatpush1.bf16.msra.mxu0 0
  %1454 = vmatprep.subr.bf16.mxu0 0
  %1455 = vmatpush1.bf16.msra.mxu0 0
  %1456 = vmatprep.subr.bf16.mxu0 0
  %1457 = vmatpush1.bf16.msra.mxu0 0
  %1458 = vmatprep.subr.bf16.mxu0 0
  %1459 = vmatpush1.bf16.msra.mxu0 0
  %1460 = vmatprep.subr.bf16.mxu0 0
  %1461 = vmatpush1.bf16.msra.mxu0 0
  %1462 = vmatprep.subr.bf16.mxu0 0
  %1463 = vmatpush1.bf16.msra.mxu0 0
  %1464 = vmatprep.subr.bf16.mxu0 0
  %1465 = vmatpush1.bf16.msra.mxu0 0
  %1466 = vmatprep.subr.bf16.mxu0 0
  %1467 = vmatpush1.bf16.msra.mxu0 0
  %1468 = vmatprep.mubr.bf16.mxu0 0
  %1469 = vmatmul.mubr.bf16.gmra.mrb[0].mxu0 %v1327
  %v1470 = vpop.f32.mrb[0].mxu0
  %v1471 = vadd.f32 %v1382, %v1470
  %v1472 = vpop.f32.mrb[0].mxu0
  %v1473 = vpop.f32.mrb[0].mxu0
  %v1474 = vadd.f32 %v1385, %v1473
  %v1475 = vpop.f32.mrb[0].mxu0
  %1476 = vmatprep.mubr.bf16.mxu0 0
  %1477 = vmatmul.mubr.bf16.gmra.mrb[0].mxu0 %v1330
  %v1478 = vpop.f32.mrb[0].mxu0
  %v1479 = vadd.f32 %v1390, %v1478
  %v1480 = vpop.f32.mrb[0].mxu0
  %v1481 = vpop.f32.mrb[0].mxu0
  %v1482 = vadd.f32 %v1393, %v1481
  %v1483 = vpop.f32.mrb[0].mxu0
  %1484 = vmatprep.mubr.bf16.mxu0 0
  %1485 = vmatmul.mubr.bf16.gmra.mrb[0].mxu0 %v1333
  %v1486 = vpop.f32.mrb[0].mxu0
  %v1487 = vadd.f32 %v1398, %v1486
  %v1488 = vpop.f32.mrb[0].mxu0
  %v1489 = vpop.f32.mrb[0].mxu0
  %v1490 = vadd.f32 %v1401, %v1489
  %v1491 = vpop.f32.mrb[0].mxu0
  %1492 = vmatprep.mubr.bf16.mxu0 0
  %1493 = vmatmul.mubr.bf16.gmra.mrb[0].mxu0 %v1336
  %v1494 = vpop.f32.mrb[0].mxu0
  %v1495 = vadd.f32 %v1406, %v1494
  %v1496 = vpop.f32.mrb[0].mxu0
  %v1497 = vpop.f32.mrb[0].mxu0
  %v1498 = vadd.f32 %v1409, %v1497
  %v1499 = vpop.f32.mrb[0].mxu0
  %1500 = vmatprep.mubr.bf16.mxu0 0
  %1501 = vmatmul.mubr.bf16.gmra.mrb[0].mxu0 %v1339
  %v1502 = vpop.f32.mrb[0].mxu0
  %v1503 = vadd.f32 %v1414, %v1502
  %v1504 = vpop.f32.mrb[0].mxu0
  %v1505 = vpop.f32.mrb[0].mxu0
  %v1506 = vadd.f32 %v1417, %v1505
  %v1507 = vpop.f32.mrb[0].mxu0
  %1508 = vmatprep.mubr.bf16.mxu0 0
  %1509 = vmatmul.mubr.bf16.gmra.mrb[0].mxu0 %v1342
  %v1510 = vpop.f32.mrb[0].mxu0
  %v1511 = vadd.f32 %v1422, %v1510
  %v1512 = vpop.f32.mrb[0].mxu0
  %v1513 = vpop.f32.mrb[0].mxu0
  %v1514 = vadd.f32 %v1425, %v1513
  %v1515 = vpop.f32.mrb[0].mxu0
  %1516 = vmatprep.mubr.bf16.mxu0 0
  %1517 = vmatmul.mubr.bf16.gmra.mrb[0].mxu0 %v1345
  %v1518 = vpop.f32.mrb[0].mxu0
  %v1519 = vadd.f32 %v1430, %v1518
  %v1520 = vpop.f32.mrb[0].mxu0
  %v1521 = vpop.f32.mrb[0].mxu0
  %v1522 = vadd.f32 %v1433, %v1521
  %v1523 = vpop.f32.mrb[0].mxu0
  %1524 = vdwg.mxu0
  %v1525 = vmax.f32 %v1179, %v1471
  %v1526 = vmax.f32 %v1180, %v1474
  %v1527 = vmax.f32 %v1181, %v1479
  %v1528 = vmax.f32 %v1182, %v1482
  %v1529 = vmax.f32 %v1183, %v1487
  %v1530 = vmax.f32 %v1184, %v1490
  %v1531 = vmax.f32 %v1185, %v1495
  %v1532 = vmax.f32 %v1186, %v1498
  %v1533 = vmax.f32 %v1187, %v1503
  %v1534 = vmax.f32 %v1188, %v1506
  %v1535 = vmax.f32 %v1189, %v1511
  %v1536 = vmax.f32 %v1190, %v1514
  %v1537 = vmax.f32 %v1191, %v1519
  %v1538 = vmax.f32 %v1192, %v1522
  %v1539 = vld [vmem:[%s5] sm:$0x1]
  %v1541 = vlaneseq
  %v1542 = vshrl.u32 %v1541, 7
  %v1543 = vsub.s32 0, %v1542
  %v1544 = vrot.slane %v1539, %v1543
  %v1546 = vadd.f32 %v1525, %v1544
  %v1547 = vadd.f32 %v1526, %v1544
  %v1548 = vadd.f32 %v1527, %v1544
  %v1549 = vadd.f32 %v1528, %v1544
  %v1550 = vadd.f32 %v1529, %v1544
  %v1551 = vadd.f32 %v1530, %v1544
  %v1552 = vadd.f32 %v1531, %v1544
  %v1553 = vadd.f32 %v1532, %v1544
  %v1554 = vadd.f32 %v1533, %v1544
  %v1555 = vadd.f32 %v1534, %v1544
  %v1556 = vadd.f32 %v1535, %v1544
  %v1557 = vadd.f32 %v1536, %v1544
  %v1558 = vadd.f32 %v1537, %v1544
  %v1559 = vadd.f32 %v1538, %v1544
  %v1560 = vmax.f32 %v1546, 0.0
  %v1561 = vmax.f32 %v1547, 0.0
  %v1562 = vmax.f32 %v1548, 0.0
  %v1563 = vmax.f32 %v1549, 0.0
  %v1564 = vmax.f32 %v1550, 0.0
  %v1565 = vmax.f32 %v1551, 0.0
  %v1566 = vmax.f32 %v1552, 0.0
  %v1567 = vmax.f32 %v1553, 0.0
  %v1568 = vmax.f32 %v1554, 0.0
  %v1569 = vmax.f32 %v1555, 0.0
  %v1570 = vmax.f32 %v1556, 0.0
  %v1571 = vmax.f32 %v1557, 0.0
  %v1572 = vmax.f32 %v1558, 0.0
  %v1573 = vmax.f32 %v1559, 0.0
  %v1574 = vpack.c.bf16 %v1561, %v1560
  %v1575 = vpack.c.bf16 %v1563, %v1562
  %v1576 = vpack.c.bf16 %v1565, %v1564
  %v1577 = vpack.c.bf16 %v1567, %v1566
  %v1578 = vpack.c.bf16 %v1569, %v1568
  %v1579 = vpack.c.bf16 %v1571, %v1570
  %v1580 = vpack.c.bf16 %v1573, %v1572
  %v1588 = vunpack.c.l.b16 %v1574
  %v1589 = vunpack.c.h.b16 %v1574
  %v1590 = vunpack.c.l.b16 %v1575
  %v1591 = vunpack.c.h.b16 %v1575
  %v1592 = vunpack.c.l.b16 %v1576
  %v1593 = vunpack.c.h.b16 %v1576
  %v1594 = vunpack.c.l.b16 %v1577
  %v1595 = vunpack.c.h.b16 %v1577
  %v1596 = vunpack.c.l.b16 %v1578
  %v1597 = vunpack.c.h.b16 %v1578
  %v1598 = vunpack.c.l.b16 %v1579
  %v1599 = vunpack.c.h.b16 %v1579
  %v1600 = vunpack.c.l.b16 %v1580
  %v1601 = vunpack.c.h.b16 %v1580
  %v1602 = vpack.c.b16 %v1588, %v1588
  %v1603 = vpack.c.b16 %v1589, %v1589
  %v1604 = vpack.c.b16 %v1590, %v1590
  %v1605 = vpack.c.b16 %v1591, %v1591
  %v1606 = vpack.c.b16 %v1592, %v1592
  %v1607 = vpack.c.b16 %v1593, %v1593
  %v1608 = vpack.c.b16 %v1594, %v1594
  %v1609 = vpack.c.b16 %v1595, %v1595
  %v1610 = vpack.c.b16 %v1596, %v1596
  %v1611 = vpack.c.b16 %v1597, %v1597
  %v1612 = vpack.c.b16 %v1598, %v1598
  %v1613 = vpack.c.b16 %v1599, %v1599
  %v1614 = vpack.c.b16 %v1600, %v1600
  %v1615 = vpack.c.b16 %v1601, %v1601
  %vm1630 = vcmask 519168
  %1631 = vst.msk [vmem:[%s6] sm:$0xf] %vm1630, %v1602
  %1632 = vst.msk [vmem:[%s6 + $0x4] sm:$0xf] %vm1630, %v1603
  %1633 = vst.msk [vmem:[%s6 + $0x8] sm:$0xf] %vm1630, %v1604
  %1634 = vst.msk [vmem:[%s6 + $0xc] sm:$0xf] %vm1630, %v1605
  %1635 = vst.msk [vmem:[%s6 + $0x10] sm:$0xf] %vm1630, %v1606
  %1636 = vst.msk [vmem:[%s6 + $0x14] sm:$0xf] %vm1630, %v1607
  %1637 = vst.msk [vmem:[%s6 + $0x18] sm:$0xf] %vm1630, %v1608
  %1638 = vst.msk [vmem:[%s6 + $0x1c] sm:$0xf] %vm1630, %v1609
  %1639 = vst.msk [vmem:[%s6 + $0x20] sm:$0xf] %vm1630, %v1610
  %1640 = vst.msk [vmem:[%s6 + $0x24] sm:$0xf] %vm1630, %v1611
  %1641 = vst.msk [vmem:[%s6 + $0x28] sm:$0xf] %vm1630, %v1612
  %1642 = vst.msk [vmem:[%s6 + $0x2c] sm:$0xf] %vm1630, %v1613
  %1643 = vst.msk [vmem:[%s6 + $0x30] sm:$0xf] %vm1630, %v1614
  %1644 = vst.msk [vmem:[%s6 + $0x34] sm:$0xf] %vm1630, %v1615
  // Predicated region
  $region26: #{cnn_forward.5} parent=0 // pred_check
    _
  $region27: #{cnn_forward.5} parent=0 // pred_check_branch
    %1646 = sbr.rel (0) target = $region29
  $region28: #{cnn_forward.5} parent=0 // pred_region
    _
  $region29: #{cnn_forward.5} parent=0 // pred_fallthru
    _
  // Predicated region
  $region30: #{cnn_forward.5} parent=0 // pred_check
    _
  $region31: #{cnn_forward.5} parent=0 // pred_check_branch
    %1648 = sbr.rel (0) target = $region33
  $region32: #{cnn_forward.5} parent=0 // pred_region
    _
  $region33: #{cnn_forward.5} parent=0 // pred_fallthru
    _

// kernel: cnn_forward.6
$region0: #{cnn_forward.6}
  #allocation0 [shape = 'u32[]', space=smem, size = 0x4, offset = 0x4, fixed_abs, tag = 'smem constant byte address 0x4 - core index']
  #allocation1 [shape = 'u32[144,128]{1,0:T(1,128)}', space=vmem, size = 0x12000, scoped, tag = 'internal scratch']
  %s0 = inlined_call_operand.vmem [shape: bf16[16,3136], index: 0, kind: input, shape index: {}]
  %s1 = inlined_call_operand.vmem [shape: bf16[3136,128], index: 1, kind: input, shape index: {}]
  %s2 = inlined_call_operand.vmem [shape: f32[1,128], index: 2, kind: input, shape index: {}]
  %s3 = inlined_call_operand.vmem [shape: bf16[16,128], index: 3, kind: output, shape index: {}]
  %s4 = sld [smem:[#allocation0]]
  $region22: #{cnn_forward.6} parent=0
    _
  %s6 = ssub.s32 1, %s4
  %s7 = scalar_select 0, %s6, %s4
  // Predicated region
  $region2: #{cnn_forward.6} parent=0 // pred_check
    _
  $region3: #{cnn_forward.6} parent=0 // pred_check_branch
    %9 = sbr.rel (0) target = $region5
  $region4: #{cnn_forward.6} parent=0 // pred_region
    _
  $region5: #{cnn_forward.6} parent=0 // pred_fallthru
    _
  // Predicated region
  $region6: #{cnn_forward.6} parent=0 // pred_check
    _
  $region7: #{cnn_forward.6} parent=0 // pred_check_branch
    %11 = sbr.rel (0) target = $region9
  $region8: #{cnn_forward.6} parent=0 // pred_region
    _
  $region9: #{cnn_forward.6} parent=0 // pred_fallthru
    _
  // Predicated region
  $region10: #{cnn_forward.6} parent=0 // pred_check
    _
  $region11: #{cnn_forward.6} parent=0 // pred_check_branch
    %13 = sbr.rel (0) target = $region13
  $region12: #{cnn_forward.6} parent=0 // pred_region
    _
  $region13: #{cnn_forward.6} parent=0 // pred_fallthru
    _
  %v15 = vld [vmem:[%s0] sm:$0xff]
  %v16 = vld [vmem:[%s0 + $0x8] sm:$0xff]
  %v17 = vld [vmem:[%s0 + $0x10] sm:$0xff]
  %v18 = vld [vmem:[%s0 + $0x18] sm:$0xff]
  %v19 = vld [vmem:[%s0 + $0x20] sm:$0xff]
  %v20 = vld [vmem:[%s0 + $0x28] sm:$0xff]
  %v21 = vld [vmem:[%s0 + $0x30] sm:$0xff]
  %v22 = vld [vmem:[%s0 + $0x38] sm:$0xff]
  %v23 = vld [vmem:[%s0 + $0x40] sm:$0xff]
  %v24 = vld [vmem:[%s0 + $0x48] sm:$0xff]
  %v25 = vld [vmem:[%s0 + $0x50] sm:$0xff]
  %v26 = vld [vmem:[%s0 + $0x58] sm:$0xff]
  %v27 = vld [vmem:[%s0 + $0x60] sm:$0xf]
  %v28 = vld [vmem:[%s0 + $0x64] sm:$0xff]
  %v29 = vld [vmem:[%s0 + $0x6c] sm:$0xff]
  %v30 = vld [vmem:[%s0 + $0x74] sm:$0xff]
  %v31 = vld [vmem:[%s0 + $0x7c] sm:$0xff]
  %v32 = vld [vmem:[%s0 + $0x84] sm:$0xff]
  %v33 = vld [vmem:[%s0 + $0x8c] sm:$0xff]
  %v34 = vld [vmem:[%s0 + $0x94] sm:$0xff]
  %v35 = vld [vmem:[%s0 + $0x9c] sm:$0xff]
  %v36 = vld [vmem:[%s0 + $0xa4] sm:$0xff]
  %v37 = vld [vmem:[%s0 + $0xac] sm:$0xff]
  %v38 = vld [vmem:[%s0 + $0xb4] sm:$0xff]
  %v39 = vld [vmem:[%s0 + $0xbc] sm:$0xff]
  %v40 = vld [vmem:[%s0 + $0xc4] sm:$0xf]
  %v41 = vld [vmem:[%s1] sm:$0xf]
  %v42 = vld [vmem:[%s1 + $0x4] sm:$0xf]
  %v43 = vld [vmem:[%s1 + $0x8] sm:$0xf]
  %v44 = vld [vmem:[%s1 + $0xc] sm:$0xf]
  %v45 = vld [vmem:[%s1 + $0x10] sm:$0xf]
  %v46 = vld [vmem:[%s1 + $0x14] sm:$0xf]
  %v47 = vld [vmem:[%s1 + $0x18] sm:$0xf]
  %v48 = vld [vmem:[%s1 + $0x1c] sm:$0xf]
  %v49 = vld [vmem:[%s1 + $0x20] sm:$0xf]
  %v50 = vld [vmem:[%s1 + $0x24] sm:$0xf]
  %v51 = vld [vmem:[%s1 + $0x28] sm:$0xf]
  %v52 = vld [vmem:[%s1 + $0x2c] sm:$0xf]
  %v53 = vld [vmem:[%s1 + $0x30] sm:$0xf]
  %v54 = vld [vmem:[%s1 + $0x34] sm:$0xf]
  %v55 = vld [vmem:[%s1 + $0x38] sm:$0xf]
  %v56 = vld [vmem:[%s1 + $0x3c] sm:$0xf]
  %v57 = vld [vmem:[%s1 + $0x40] sm:$0xf]
  %v58 = vld [vmem:[%s1 + $0x44] sm:$0xf]
  %v59 = vld [vmem:[%s1 + $0x48] sm:$0xf]
  %v60 = vld [vmem:[%s1 + $0x4c] sm:$0xf]
  %v61 = vld [vmem:[%s1 + $0x50] sm:$0xf]
  %v62 = vld [vmem:[%s1 + $0x54] sm:$0xf]
  %v63 = vld [vmem:[%s1 + $0x58] sm:$0xf]
  %v64 = vld [vmem:[%s1 + $0x5c] sm:$0xf]
  %v65 = vld [vmem:[%s1 + $0x60] sm:$0xf]
  %v66 = vld [vmem:[%s1 + $0x64] sm:$0xf]
  %v67 = vld [vmem:[%s1 + $0x68] sm:$0xf]
  %v68 = vld [vmem:[%s1 + $0x6c] sm:$0xf]
  %v69 = vld [vmem:[%s1 + $0x70] sm:$0xf]
  %v70 = vld [vmem:[%s1 + $0x74] sm:$0xf]
  %v71 = vld [vmem:[%s1 + $0x78] sm:$0xf]
  %v72 = vld [vmem:[%s1 + $0x7c] sm:$0xf]
  %v73 = vld [vmem:[%s1 + $0x80] sm:$0xf]
  %v74 = vld [vmem:[%s1 + $0x84] sm:$0xf]
  %v75 = vld [vmem:[%s1 + $0x88] sm:$0xf]
  %v76 = vld [vmem:[%s1 + $0x8c] sm:$0xf]
  %v77 = vld [vmem:[%s1 + $0x90] sm:$0xf]
  %v78 = vld [vmem:[%s1 + $0x94] sm:$0xf]
  %v79 = vld [vmem:[%s1 + $0x98] sm:$0xf]
  %v80 = vld [vmem:[%s1 + $0x9c] sm:$0xf]
  %v81 = vld [vmem:[%s1 + $0xa0] sm:$0xf]
  %v82 = vld [vmem:[%s1 + $0xa4] sm:$0xf]
  %v83 = vld [vmem:[%s1 + $0xa8] sm:$0xf]
  %v84 = vld [vmem:[%s1 + $0xac] sm:$0xf]
  %v85 = vld [vmem:[%s1 + $0xb0] sm:$0xf]
  %v86 = vld [vmem:[%s1 + $0xb4] sm:$0xf]
  %v87 = vld [vmem:[%s1 + $0xb8] sm:$0xf]
  %v88 = vld [vmem:[%s1 + $0xbc] sm:$0xf]
  %v89 = vld [vmem:[%s1 + $0xc0] sm:$0xf]
  %v90 = vld [vmem:[%s1 + $0xc4] sm:$0xf]
  %v91 = vld [vmem:[%s1 + $0xc8] sm:$0xf]
  %v92 = vld [vmem:[%s1 + $0xcc] sm:$0xf]
  %v93 = vld [vmem:[%s1 + $0xd0] sm:$0xf]
  %v94 = vld [vmem:[%s1 + $0xd4] sm:$0xf]
  %v95 = vld [vmem:[%s1 + $0xd8] sm:$0xf]
  %v96 = vld [vmem:[%s1 + $0xdc] sm:$0xf]
  %v97 = vld [vmem:[%s1 + $0xe0] sm:$0xf]
  %v98 = vld [vmem:[%s1 + $0xe4] sm:$0xf]
  %v99 = vld [vmem:[%s1 + $0xe8] sm:$0xf]
  %v100 = vld [vmem:[%s1 + $0xec] sm:$0xf]
  %v101 = vld [vmem:[%s1 + $0xf0] sm:$0xf]
  %v102 = vld [vmem:[%s1 + $0xf4] sm:$0xf]
  %v103 = vld [vmem:[%s1 + $0xf8] sm:$0xf]
  %v104 = vld [vmem:[%s1 + $0xfc] sm:$0xf]
  %v105 = vld [vmem:[%s1 + $0x100] sm:$0xf]
  %v106 = vld [vmem:[%s1 + $0x104] sm:$0xf]
  %v107 = vld [vmem:[%s1 + $0x108] sm:$0xf]
  %v108 = vld [vmem:[%s1 + $0x10c] sm:$0xf]
  %v109 = vld [vmem:[%s1 + $0x110] sm:$0xf]
  %v110 = vld [vmem:[%s1 + $0x114] sm:$0xf]
  %v111 = vld [vmem:[%s1 + $0x118] sm:$0xf]
  %v112 = vld [vmem:[%s1 + $0x11c] sm:$0xf]
  %v113 = vld [vmem:[%s1 + $0x120] sm:$0xf]
  %v114 = vld [vmem:[%s1 + $0x124] sm:$0xf]
  %v115 = vld [vmem:[%s1 + $0x128] sm:$0xf]
  %v116 = vld [vmem:[%s1 + $0x12c] sm:$0xf]
  %v117 = vld [vmem:[%s1 + $0x130] sm:$0xf]
  %v118 = vld [vmem:[%s1 + $0x134] sm:$0xf]
  %v119 = vld [vmem:[%s1 + $0x138] sm:$0xf]
  %v120 = vld [vmem:[%s1 + $0x13c] sm:$0xf]
  %v121 = vld [vmem:[%s1 + $0x140] sm:$0xf]
  %v122 = vld [vmem:[%s1 + $0x144] sm:$0xf]
  %v123 = vld [vmem:[%s1 + $0x148] sm:$0xf]
  %v124 = vld [vmem:[%s1 + $0x14c] sm:$0xf]
  %v125 = vld [vmem:[%s1 + $0x150] sm:$0xf]
  %v126 = vld [vmem:[%s1 + $0x154] sm:$0xf]
  %v127 = vld [vmem:[%s1 + $0x158] sm:$0xf]
  %v128 = vld [vmem:[%s1 + $0x15c] sm:$0xf]
  %v129 = vld [vmem:[%s1 + $0x160] sm:$0xf]
  %v130 = vld [vmem:[%s1 + $0x164] sm:$0xf]
  %v131 = vld [vmem:[%s1 + $0x168] sm:$0xf]
  %v132 = vld [vmem:[%s1 + $0x16c] sm:$0xf]
  %v133 = vld [vmem:[%s1 + $0x170] sm:$0xf]
  %v134 = vld [vmem:[%s1 + $0x174] sm:$0xf]
  %v135 = vld [vmem:[%s1 + $0x178] sm:$0xf]
  %v136 = vld [vmem:[%s1 + $0x17c] sm:$0xf]
  %v137 = vld [vmem:[%s1 + $0x180] sm:$0xf]
  %v138 = vld [vmem:[%s1 + $0x184] sm:$0xf]
  %v139 = vld [vmem:[%s1 + $0x188] sm:$0xf]
  %v140 = vld [vmem:[%s1 + $0x18c] sm:$0xf]
  %v141 = vld [vmem:[%s1 + $0x190] sm:$0xf]
  %v142 = vld [vmem:[%s1 + $0x194] sm:$0xf]
  %v143 = vld [vmem:[%s1 + $0x198] sm:$0xf]
  %v144 = vld [vmem:[%s1 + $0x19c] sm:$0xf]
  %v145 = vld [vmem:[%s1 + $0x1a0] sm:$0xf]
  %v146 = vld [vmem:[%s1 + $0x1a4] sm:$0xf]
  %v147 = vld [vmem:[%s1 + $0x1a8] sm:$0xf]
  %v148 = vld [vmem:[%s1 + $0x1ac] sm:$0xf]
  %v149 = vld [vmem:[%s1 + $0x1b0] sm:$0xf]
  %v150 = vld [vmem:[%s1 + $0x1b4] sm:$0xf]
  %v151 = vld [vmem:[%s1 + $0x1b8] sm:$0xf]
  %v152 = vld [vmem:[%s1 + $0x1bc] sm:$0xf]
  %v153 = vld [vmem:[%s1 + $0x1c0] sm:$0xf]
  %v154 = vld [vmem:[%s1 + $0x1c4] sm:$0xf]
  %v155 = vld [vmem:[%s1 + $0x1c8] sm:$0xf]
  %v156 = vld [vmem:[%s1 + $0x1cc] sm:$0xf]
  %v157 = vld [vmem:[%s1 + $0x1d0] sm:$0xf]
  %v158 = vld [vmem:[%s1 + $0x1d4] sm:$0xf]
  %v159 = vld [vmem:[%s1 + $0x1d8] sm:$0xf]
  %v160 = vld [vmem:[%s1 + $0x1dc] sm:$0xf]
  %v161 = vld [vmem:[%s1 + $0x1e0] sm:$0xf]
  %v162 = vld [vmem:[%s1 + $0x1e4] sm:$0xf]
  %v163 = vld [vmem:[%s1 + $0x1e8] sm:$0xf]
  %v164 = vld [vmem:[%s1 + $0x1ec] sm:$0xf]
  %v165 = vld [vmem:[%s1 + $0x1f0] sm:$0xf]
  %v166 = vld [vmem:[%s1 + $0x1f4] sm:$0xf]
  %v167 = vld [vmem:[%s1 + $0x1f8] sm:$0xf]
  %v168 = vld [vmem:[%s1 + $0x1fc] sm:$0xf]
  %v169 = vld [vmem:[%s1 + $0x200] sm:$0xf]
  %v170 = vld [vmem:[%s1 + $0x204] sm:$0xf]
  %v171 = vld [vmem:[%s1 + $0x208] sm:$0xf]
  %v172 = vld [vmem:[%s1 + $0x20c] sm:$0xf]
  %v173 = vld [vmem:[%s1 + $0x210] sm:$0xf]
  %v174 = vld [vmem:[%s1 + $0x214] sm:$0xf]
  %v175 = vld [vmem:[%s1 + $0x218] sm:$0xf]
  %v176 = vld [vmem:[%s1 + $0x21c] sm:$0xf]
  %v177 = vld [vmem:[%s1 + $0x220] sm:$0xf]
  %v178 = vld [vmem:[%s1 + $0x224] sm:$0xf]
  %v179 = vld [vmem:[%s1 + $0x228] sm:$0xf]
  %v180 = vld [vmem:[%s1 + $0x22c] sm:$0xf]
  %v181 = vld [vmem:[%s1 + $0x230] sm:$0xf]
  %v182 = vld [vmem:[%s1 + $0x234] sm:$0xf]
  %v183 = vld [vmem:[%s1 + $0x238] sm:$0xf]
  %v184 = vld [vmem:[%s1 + $0x23c] sm:$0xf]
  %v185 = vld [vmem:[%s1 + $0x240] sm:$0xf]
  %v186 = vld [vmem:[%s1 + $0x244] sm:$0xf]
  %v187 = vld [vmem:[%s1 + $0x248] sm:$0xf]
  %v188 = vld [vmem:[%s1 + $0x24c] sm:$0xf]
  %v189 = vld [vmem:[%s1 + $0x250] sm:$0xf]
  %v190 = vld [vmem:[%s1 + $0x254] sm:$0xf]
  %v191 = vld [vmem:[%s1 + $0x258] sm:$0xf]
  %v192 = vld [vmem:[%s1 + $0x25c] sm:$0xf]
  %v193 = vld [vmem:[%s1 + $0x260] sm:$0xf]
  %v194 = vld [vmem:[%s1 + $0x264] sm:$0xf]
  %v195 = vld [vmem:[%s1 + $0x268] sm:$0xf]
  %v196 = vld [vmem:[%s1 + $0x26c] sm:$0xf]
  %v197 = vld [vmem:[%s1 + $0x270] sm:$0xf]
  %v198 = vld [vmem:[%s1 + $0x274] sm:$0xf]
  %v199 = vld [vmem:[%s1 + $0x278] sm:$0xf]
  %v200 = vld [vmem:[%s1 + $0x27c] sm:$0xf]
  %v201 = vld [vmem:[%s1 + $0x280] sm:$0xf]
  %v202 = vld [vmem:[%s1 + $0x284] sm:$0xf]
  %v203 = vld [vmem:[%s1 + $0x288] sm:$0xf]
  %v204 = vld [vmem:[%s1 + $0x28c] sm:$0xf]
  %v205 = vld [vmem:[%s1 + $0x290] sm:$0xf]
  %v206 = vld [vmem:[%s1 + $0x294] sm:$0xf]
  %v207 = vld [vmem:[%s1 + $0x298] sm:$0xf]
  %v208 = vld [vmem:[%s1 + $0x29c] sm:$0xf]
  %v209 = vld [vmem:[%s1 + $0x2a0] sm:$0xf]
  %v210 = vld [vmem:[%s1 + $0x2a4] sm:$0xf]
  %v211 = vld [vmem:[%s1 + $0x2a8] sm:$0xf]
  %v212 = vld [vmem:[%s1 + $0x2ac] sm:$0xf]
  %v213 = vld [vmem:[%s1 + $0x2b0] sm:$0xf]
  %v214 = vld [vmem:[%s1 + $0x2b4] sm:$0xf]
  %v215 = vld [vmem:[%s1 + $0x2b8] sm:$0xf]
  %v216 = vld [vmem:[%s1 + $0x2bc] sm:$0xf]
  %v217 = vld [vmem:[%s1 + $0x2c0] sm:$0xf]
  %v218 = vld [vmem:[%s1 + $0x2c4] sm:$0xf]
  %v219 = vld [vmem:[%s1 + $0x2c8] sm:$0xf]
  %v220 = vld [vmem:[%s1 + $0x2cc] sm:$0xf]
  %v221 = vld [vmem:[%s1 + $0x2d0] sm:$0xf]
  %v222 = vld [vmem:[%s1 + $0x2d4] sm:$0xf]
  %v223 = vld [vmem:[%s1 + $0x2d8] sm:$0xf]
  %v224 = vld [vmem:[%s1 + $0x2dc] sm:$0xf]
  %v225 = vld [vmem:[%s1 + $0x2e0] sm:$0xf]
  %v226 = vld [vmem:[%s1 + $0x2e4] sm:$0xf]
  %v227 = vld [vmem:[%s1 + $0x2e8] sm:$0xf]
  %v228 = vld [vmem:[%s1 + $0x2ec] sm:$0xf]
  %v229 = vld [vmem:[%s1 + $0x2f0] sm:$0xf]
  %v230 = vld [vmem:[%s1 + $0x2f4] sm:$0xf]
  %v231 = vld [vmem:[%s1 + $0x2f8] sm:$0xf]
  %v232 = vld [vmem:[%s1 + $0x2fc] sm:$0xf]
  %v233 = vld [vmem:[%s1 + $0x300] sm:$0xf]
  %v234 = vld [vmem:[%s1 + $0x304] sm:$0xf]
  %v235 = vld [vmem:[%s1 + $0x308] sm:$0xf]
  %v236 = vld [vmem:[%s1 + $0x30c] sm:$0xf]
  %v237 = vld [vmem:[%s1 + $0x310] sm:$0xf]
  %v238 = vld [vmem:[%s1 + $0x314] sm:$0xf]
  %v239 = vld [vmem:[%s1 + $0x318] sm:$0xf]
  %v240 = vld [vmem:[%s1 + $0x31c] sm:$0xf]
  %v241 = vld [vmem:[%s1 + $0x320] sm:$0xf]
  %v242 = vld [vmem:[%s1 + $0x324] sm:$0xf]
  %v243 = vld [vmem:[%s1 + $0x328] sm:$0xf]
  %v244 = vld [vmem:[%s1 + $0x32c] sm:$0xf]
  %v245 = vld [vmem:[%s1 + $0x330] sm:$0xf]
  %v246 = vld [vmem:[%s1 + $0x334] sm:$0xf]
  %v247 = vld [vmem:[%s1 + $0x338] sm:$0xf]
  %v248 = vld [vmem:[%s1 + $0x33c] sm:$0xf]
  %v249 = vld [vmem:[%s1 + $0x340] sm:$0xf]
  %v250 = vld [vmem:[%s1 + $0x344] sm:$0xf]
  %v251 = vld [vmem:[%s1 + $0x348] sm:$0xf]
  %v252 = vld [vmem:[%s1 + $0x34c] sm:$0xf]
  %v253 = vld [vmem:[%s1 + $0x350] sm:$0xf]
  %v254 = vld [vmem:[%s1 + $0x354] sm:$0xf]
  %v255 = vld [vmem:[%s1 + $0x358] sm:$0xf]
  %v256 = vld [vmem:[%s1 + $0x35c] sm:$0xf]
  %v257 = vld [vmem:[%s1 + $0x360] sm:$0xf]
  %v258 = vld [vmem:[%s1 + $0x364] sm:$0xf]
  %v259 = vld [vmem:[%s1 + $0x368] sm:$0xf]
  %v260 = vld [vmem:[%s1 + $0x36c] sm:$0xf]
  %v261 = vld [vmem:[%s1 + $0x370] sm:$0xf]
  %v262 = vld [vmem:[%s1 + $0x374] sm:$0xf]
  %v263 = vld [vmem:[%s1 + $0x378] sm:$0xf]
  %v264 = vld [vmem:[%s1 + $0x37c] sm:$0xf]
  %v265 = vld [vmem:[%s1 + $0x380] sm:$0xf]
  %v266 = vld [vmem:[%s1 + $0x384] sm:$0xf]
  %v267 = vld [vmem:[%s1 + $0x388] sm:$0xf]
  %v268 = vld [vmem:[%s1 + $0x38c] sm:$0xf]
  %v269 = vld [vmem:[%s1 + $0x390] sm:$0xf]
  %v270 = vld [vmem:[%s1 + $0x394] sm:$0xf]
  %v271 = vld [vmem:[%s1 + $0x398] sm:$0xf]
  %v272 = vld [vmem:[%s1 + $0x39c] sm:$0xf]
  %v273 = vld [vmem:[%s1 + $0x3a0] sm:$0xf]
  %v274 = vld [vmem:[%s1 + $0x3a4] sm:$0xf]
  %v275 = vld [vmem:[%s1 + $0x3a8] sm:$0xf]
  %v276 = vld [vmem:[%s1 + $0x3ac] sm:$0xf]
  %v277 = vld [vmem:[%s1 + $0x3b0] sm:$0xf]
  %v278 = vld [vmem:[%s1 + $0x3b4] sm:$0xf]
  %v279 = vld [vmem:[%s1 + $0x3b8] sm:$0xf]
  %v280 = vld [vmem:[%s1 + $0x3bc] sm:$0xf]
  %v281 = vld [vmem:[%s1 + $0x3c0] sm:$0xf]
  %v282 = vld [vmem:[%s1 + $0x3c4] sm:$0xf]
  %v283 = vld [vmem:[%s1 + $0x3c8] sm:$0xf]
  %v284 = vld [vmem:[%s1 + $0x3cc] sm:$0xf]
  %v285 = vld [vmem:[%s1 + $0x3d0] sm:$0xf]
  %v286 = vld [vmem:[%s1 + $0x3d4] sm:$0xf]
  %v287 = vld [vmem:[%s1 + $0x3d8] sm:$0xf]
  %v288 = vld [vmem:[%s1 + $0x3dc] sm:$0xf]
  %v289 = vld [vmem:[%s1 + $0x3e0] sm:$0xf]
  %v290 = vld [vmem:[%s1 + $0x3e4] sm:$0xf]
  %v291 = vld [vmem:[%s1 + $0x3e8] sm:$0xf]
  %v292 = vld [vmem:[%s1 + $0x3ec] sm:$0xf]
  %v293 = vld [vmem:[%s1 + $0x3f0] sm:$0xf]
  %v294 = vld [vmem:[%s1 + $0x3f4] sm:$0xf]
  %v295 = vld [vmem:[%s1 + $0x3f8] sm:$0xf]
  %v296 = vld [vmem:[%s1 + $0x3fc] sm:$0xf]
  %v297 = vld [vmem:[%s1 + $0x400] sm:$0xf]
  %v298 = vld [vmem:[%s1 + $0x404] sm:$0xf]
  %v299 = vld [vmem:[%s1 + $0x408] sm:$0xf]
  %v300 = vld [vmem:[%s1 + $0x40c] sm:$0xf]
  %v301 = vld [vmem:[%s1 + $0x410] sm:$0xf]
  %v302 = vld [vmem:[%s1 + $0x414] sm:$0xf]
  %v303 = vld [vmem:[%s1 + $0x418] sm:$0xf]
  %v304 = vld [vmem:[%s1 + $0x41c] sm:$0xf]
  %v305 = vld [vmem:[%s1 + $0x420] sm:$0xf]
  %v306 = vld [vmem:[%s1 + $0x424] sm:$0xf]
  %v307 = vld [vmem:[%s1 + $0x428] sm:$0xf]
  %v308 = vld [vmem:[%s1 + $0x42c] sm:$0xf]
  %v309 = vld [vmem:[%s1 + $0x430] sm:$0xf]
  %v310 = vld [vmem:[%s1 + $0x434] sm:$0xf]
  %v311 = vld [vmem:[%s1 + $0x438] sm:$0xf]
  %v312 = vld [vmem:[%s1 + $0x43c] sm:$0xf]
  %v313 = vld [vmem:[%s1 + $0x440] sm:$0xf]
  %v314 = vld [vmem:[%s1 + $0x444] sm:$0xf]
  %v315 = vld [vmem:[%s1 + $0x448] sm:$0xf]
  %v316 = vld [vmem:[%s1 + $0x44c] sm:$0xf]
  %v317 = vld [vmem:[%s1 + $0x450] sm:$0xf]
  %v318 = vld [vmem:[%s1 + $0x454] sm:$0xf]
  %v319 = vld [vmem:[%s1 + $0x458] sm:$0xf]
  %v320 = vld [vmem:[%s1 + $0x45c] sm:$0xf]
  %v321 = vld [vmem:[%s1 + $0x460] sm:$0xf]
  %v322 = vld [vmem:[%s1 + $0x464] sm:$0xf]
  %v323 = vld [vmem:[%s1 + $0x468] sm:$0xf]
  %v324 = vld [vmem:[%s1 + $0x46c] sm:$0xf]
  %v325 = vld [vmem:[%s1 + $0x470] sm:$0xf]
  %v326 = vld [vmem:[%s1 + $0x474] sm:$0xf]
  %v327 = vld [vmem:[%s1 + $0x478] sm:$0xf]
  %v328 = vld [vmem:[%s1 + $0x47c] sm:$0xf]
  %v329 = vld [vmem:[%s1 + $0x480] sm:$0xf]
  %v330 = vld [vmem:[%s1 + $0x484] sm:$0xf]
  %v331 = vld [vmem:[%s1 + $0x488] sm:$0xf]
  %v332 = vld [vmem:[%s1 + $0x48c] sm:$0xf]
  %v333 = vld [vmem:[%s1 + $0x490] sm:$0xf]
  %v334 = vld [vmem:[%s1 + $0x494] sm:$0xf]
  %v335 = vld [vmem:[%s1 + $0x498] sm:$0xf]
  %v336 = vld [vmem:[%s1 + $0x49c] sm:$0xf]
  %v337 = vld [vmem:[%s1 + $0x4a0] sm:$0xf]
  %v338 = vld [vmem:[%s1 + $0x4a4] sm:$0xf]
  %v339 = vld [vmem:[%s1 + $0x4a8] sm:$0xf]
  %v340 = vld [vmem:[%s1 + $0x4ac] sm:$0xf]
  %v341 = vld [vmem:[%s1 + $0x4b0] sm:$0xf]
  %v342 = vld [vmem:[%s1 + $0x4b4] sm:$0xf]
  %v343 = vld [vmem:[%s1 + $0x4b8] sm:$0xf]
  %v344 = vld [vmem:[%s1 + $0x4bc] sm:$0xf]
  %v345 = vld [vmem:[%s1 + $0x4c0] sm:$0xf]
  %v346 = vld [vmem:[%s1 + $0x4c4] sm:$0xf]
  %v347 = vld [vmem:[%s1 + $0x4c8] sm:$0xf]
  %v348 = vld [vmem:[%s1 + $0x4cc] sm:$0xf]
  %v349 = vld [vmem:[%s1 + $0x4d0] sm:$0xf]
  %v350 = vld [vmem:[%s1 + $0x4d4] sm:$0xf]
  %v351 = vld [vmem:[%s1 + $0x4d8] sm:$0xf]
  %v352 = vld [vmem:[%s1 + $0x4dc] sm:$0xf]
  %v353 = vld [vmem:[%s1 + $0x4e0] sm:$0xf]
  %v354 = vld [vmem:[%s1 + $0x4e4] sm:$0xf]
  %v355 = vld [vmem:[%s1 + $0x4e8] sm:$0xf]
  %v356 = vld [vmem:[%s1 + $0x4ec] sm:$0xf]
  %v357 = vld [vmem:[%s1 + $0x4f0] sm:$0xf]
  %v358 = vld [vmem:[%s1 + $0x4f4] sm:$0xf]
  %v359 = vld [vmem:[%s1 + $0x4f8] sm:$0xf]
  %v360 = vld [vmem:[%s1 + $0x4fc] sm:$0xf]
  %v361 = vld [vmem:[%s1 + $0x500] sm:$0xf]
  %v362 = vld [vmem:[%s1 + $0x504] sm:$0xf]
  %v363 = vld [vmem:[%s1 + $0x508] sm:$0xf]
  %v364 = vld [vmem:[%s1 + $0x50c] sm:$0xf]
  %v365 = vld [vmem:[%s1 + $0x510] sm:$0xf]
  %v366 = vld [vmem:[%s1 + $0x514] sm:$0xf]
  %v367 = vld [vmem:[%s1 + $0x518] sm:$0xf]
  %v368 = vld [vmem:[%s1 + $0x51c] sm:$0xf]
  %v369 = vld [vmem:[%s1 + $0x520] sm:$0xf]
  %v370 = vld [vmem:[%s1 + $0x524] sm:$0xf]
  %v371 = vld [vmem:[%s1 + $0x528] sm:$0xf]
  %v372 = vld [vmem:[%s1 + $0x52c] sm:$0xf]
  %v373 = vld [vmem:[%s1 + $0x530] sm:$0xf]
  %v374 = vld [vmem:[%s1 + $0x534] sm:$0xf]
  %v375 = vld [vmem:[%s1 + $0x538] sm:$0xf]
  %v376 = vld [vmem:[%s1 + $0x53c] sm:$0xf]
  %v377 = vld [vmem:[%s1 + $0x540] sm:$0xf]
  %v378 = vld [vmem:[%s1 + $0x544] sm:$0xf]
  %v379 = vld [vmem:[%s1 + $0x548] sm:$0xf]
  %v380 = vld [vmem:[%s1 + $0x54c] sm:$0xf]
  %v381 = vld [vmem:[%s1 + $0x550] sm:$0xf]
  %v382 = vld [vmem:[%s1 + $0x554] sm:$0xf]
  %v383 = vld [vmem:[%s1 + $0x558] sm:$0xf]
  %v384 = vld [vmem:[%s1 + $0x55c] sm:$0xf]
  %v385 = vld [vmem:[%s1 + $0x560] sm:$0xf]
  %v386 = vld [vmem:[%s1 + $0x564] sm:$0xf]
  %v387 = vld [vmem:[%s1 + $0x568] sm:$0xf]
  %v388 = vld [vmem:[%s1 + $0x56c] sm:$0xf]
  %v389 = vld [vmem:[%s1 + $0x570] sm:$0xf]
  %v390 = vld [vmem:[%s1 + $0x574] sm:$0xf]
  %v391 = vld [vmem:[%s1 + $0x578] sm:$0xf]
  %v392 = vld [vmem:[%s1 + $0x57c] sm:$0xf]
  %v393 = vld [vmem:[%s1 + $0x580] sm:$0xf]
  %v394 = vld [vmem:[%s1 + $0x584] sm:$0xf]
  %v395 = vld [vmem:[%s1 + $0x588] sm:$0xf]
  %v396 = vld [vmem:[%s1 + $0x58c] sm:$0xf]
  %v397 = vld [vmem:[%s1 + $0x590] sm:$0xf]
  %v398 = vld [vmem:[%s1 + $0x594] sm:$0xf]
  %v399 = vld [vmem:[%s1 + $0x598] sm:$0xf]
  %v400 = vld [vmem:[%s1 + $0x59c] sm:$0xf]
  %v401 = vld [vmem:[%s1 + $0x5a0] sm:$0xf]
  %v402 = vld [vmem:[%s1 + $0x5a4] sm:$0xf]
  %v403 = vld [vmem:[%s1 + $0x5a8] sm:$0xf]
  %v404 = vld [vmem:[%s1 + $0x5ac] sm:$0xf]
  %v405 = vld [vmem:[%s1 + $0x5b0] sm:$0xf]
  %v406 = vld [vmem:[%s1 + $0x5b4] sm:$0xf]
  %v407 = vld [vmem:[%s1 + $0x5b8] sm:$0xf]
  %v408 = vld [vmem:[%s1 + $0x5bc] sm:$0xf]
  %v409 = vld [vmem:[%s1 + $0x5c0] sm:$0xf]
  %v410 = vld [vmem:[%s1 + $0x5c4] sm:$0xf]
  %v411 = vld [vmem:[%s1 + $0x5c8] sm:$0xf]
  %v412 = vld [vmem:[%s1 + $0x5cc] sm:$0xf]
  %v413 = vld [vmem:[%s1 + $0x5d0] sm:$0xf]
  %v414 = vld [vmem:[%s1 + $0x5d4] sm:$0xf]
  %v415 = vld [vmem:[%s1 + $0x5d8] sm:$0xf]
  %v416 = vld [vmem:[%s1 + $0x5dc] sm:$0xf]
  %v417 = vld [vmem:[%s1 + $0x5e0] sm:$0xf]
  %v418 = vld [vmem:[%s1 + $0x5e4] sm:$0xf]
  %v419 = vld [vmem:[%s1 + $0x5e8] sm:$0xf]
  %v420 = vld [vmem:[%s1 + $0x5ec] sm:$0xf]
  %v421 = vld [vmem:[%s1 + $0x5f0] sm:$0xf]
  %v422 = vld [vmem:[%s1 + $0x5f4] sm:$0xf]
  %v423 = vld [vmem:[%s1 + $0x5f8] sm:$0xf]
  %v424 = vld [vmem:[%s1 + $0x5fc] sm:$0xf]
  %v425 = vld [vmem:[%s1 + $0x600] sm:$0xf]
  %v426 = vld [vmem:[%s1 + $0x604] sm:$0xf]
  %v427 = vld [vmem:[%s1 + $0x608] sm:$0xf]
  %v428 = vld [vmem:[%s1 + $0x60c] sm:$0xf]
  %v429 = vld [vmem:[%s1 + $0x610] sm:$0xf]
  %v430 = vld [vmem:[%s1 + $0x614] sm:$0xf]
  %v431 = vld [vmem:[%s1 + $0x618] sm:$0xf]
  %v432 = vld [vmem:[%s1 + $0x61c] sm:$0xf]
  %v433 = vld [vmem:[%s2] sm:$0x1]
  %v435 = vlaneseq
  %v436 = vshrl.u32 %v435, 7
  %v437 = vsub.s32 0, %v436
  %v438 = vrot.slane %v433, %v437
  %v466 = vunpack.c.l.b16 %v15
  %v467 = vunpack.c.h.b16 %v15
  %v468 = vunpack.c.l.b16 %v16
  %v469 = vunpack.c.h.b16 %v16
  %v470 = vunpack.c.l.b16 %v17
  %v471 = vunpack.c.h.b16 %v17
  %v472 = vunpack.c.l.b16 %v18
  %v473 = vunpack.c.h.b16 %v18
  %v474 = vunpack.c.l.b16 %v19
  %v475 = vunpack.c.h.b16 %v19
  %v476 = vunpack.c.l.b16 %v20
  %v477 = vunpack.c.h.b16 %v20
  %v478 = vunpack.c.l.b16 %v21
  %v479 = vunpack.c.h.b16 %v21
  %v480 = vunpack.c.l.b16 %v22
  %v481 = vunpack.c.h.b16 %v22
  %v482 = vunpack.c.l.b16 %v23
  %v483 = vunpack.c.h.b16 %v23
  %v484 = vunpack.c.l.b16 %v24
  %v485 = vunpack.c.h.b16 %v24
  %v486 = vunpack.c.l.b16 %v25
  %v487 = vunpack.c.h.b16 %v25
  %v488 = vunpack.c.l.b16 %v26
  %v489 = vunpack.c.h.b16 %v26
  %v490 = vunpack.c.l.b16 %v27
  %v491 = vunpack.c.l.b16 %v28
  %v492 = vunpack.c.h.b16 %v28
  %v493 = vunpack.c.l.b16 %v29
  %v494 = vunpack.c.h.b16 %v29
  %v495 = vunpack.c.l.b16 %v30
  %v496 = vunpack.c.h.b16 %v30
  %v497 = vunpack.c.l.b16 %v31
  %v498 = vunpack.c.h.b16 %v31
  %v499 = vunpack.c.l.b16 %v32
  %v500 = vunpack.c.h.b16 %v32
  %v501 = vunpack.c.l.b16 %v33
  %v502 = vunpack.c.h.b16 %v33
  %v503 = vunpack.c.l.b16 %v34
  %v504 = vunpack.c.h.b16 %v34
  %v505 = vunpack.c.l.b16 %v35
  %v506 = vunpack.c.h.b16 %v35
  %v507 = vunpack.c.l.b16 %v36
  %v508 = vunpack.c.h.b16 %v36
  %v509 = vunpack.c.l.b16 %v37
  %v510 = vunpack.c.h.b16 %v37
  %v511 = vunpack.c.l.b16 %v38
  %v512 = vunpack.c.h.b16 %v38
  %v513 = vunpack.c.l.b16 %v39
  %v514 = vunpack.c.h.b16 %v39
  %v515 = vunpack.c.l.b16 %v40
  %v516 = vpack.c.b16 %v491, %v466
  %v517 = vpack.c.b16 %v492, %v467
  %v518 = vpack.c.b16 %v493, %v468
  %v519 = vpack.c.b16 %v494, %v469
  %v520 = vpack.c.b16 %v495, %v470
  %v521 = vpack.c.b16 %v496, %v471
  %v522 = vpack.c.b16 %v497, %v472
  %v523 = vpack.c.b16 %v498, %v473
  %v524 = vpack.c.b16 %v499, %v474
  %v525 = vpack.c.b16 %v500, %v475
  %v526 = vpack.c.b16 %v501, %v476
  %v527 = vpack.c.b16 %v502, %v477
  %v528 = vpack.c.b16 %v503, %v478
  %v529 = vpack.c.b16 %v504, %v479
  %v530 = vpack.c.b16 %v505, %v480
  %v531 = vpack.c.b16 %v506, %v481
  %v532 = vpack.c.b16 %v507, %v482
  %v533 = vpack.c.b16 %v508, %v483
  %v534 = vpack.c.b16 %v509, %v484
  %v535 = vpack.c.b16 %v510, %v485
  %v536 = vpack.c.b16 %v511, %v486
  %v537 = vpack.c.b16 %v512, %v487
  %v538 = vpack.c.b16 %v513, %v488
  %v539 = vpack.c.b16 %v514, %v489
  %v540 = vpack.c.b16 %v515, %v490
  %v957 = vunpack.c.l.b16 %v41
  %v958 = vunpack.c.l.b16 %v42
  %v959 = vunpack.c.l.b16 %v43
  %v960 = vunpack.c.l.b16 %v44
  %v961 = vunpack.c.l.b16 %v45
  %v962 = vunpack.c.l.b16 %v46
  %v963 = vunpack.c.l.b16 %v47
  %v964 = vunpack.c.l.b16 %v48
  %v965 = vunpack.c.l.b16 %v49
  %v966 = vunpack.c.l.b16 %v50
  %v967 = vunpack.c.l.b16 %v51
  %v968 = vunpack.c.l.b16 %v52
  %v969 = vunpack.c.l.b16 %v53
  %v970 = vunpack.c.l.b16 %v54
  %v971 = vunpack.c.l.b16 %v55
  %v972 = vunpack.c.l.b16 %v56
  %v973 = vunpack.c.l.b16 %v57
  %v974 = vunpack.c.l.b16 %v58
  %v975 = vunpack.c.l.b16 %v59
  %v976 = vunpack.c.l.b16 %v60
  %v977 = vunpack.c.l.b16 %v61
  %v978 = vunpack.c.l.b16 %v62
  %v979 = vunpack.c.l.b16 %v63
  %v980 = vunpack.c.l.b16 %v64
  %v981 = vunpack.c.l.b16 %v65
  %v982 = vunpack.c.l.b16 %v66
  %v983 = vunpack.c.l.b16 %v67
  %v984 = vunpack.c.l.b16 %v68
  %v985 = vunpack.c.l.b16 %v69
  %v986 = vunpack.c.l.b16 %v70
  %v987 = vunpack.c.l.b16 %v71
  %v988 = vunpack.c.l.b16 %v72
  %v989 = vunpack.c.l.b16 %v73
  %v990 = vunpack.c.l.b16 %v74
  %v991 = vunpack.c.l.b16 %v75
  %v992 = vunpack.c.l.b16 %v76
  %v993 = vunpack.c.l.b16 %v77
  %v994 = vunpack.c.l.b16 %v78
  %v995 = vunpack.c.l.b16 %v79
  %v996 = vunpack.c.l.b16 %v80
  %v997 = vunpack.c.l.b16 %v81
  %v998 = vunpack.c.l.b16 %v82
  %v999 = vunpack.c.l.b16 %v83
  %v1000 = vunpack.c.l.b16 %v84
  %v1001 = vunpack.c.l.b16 %v85
  %v1002 = vunpack.c.l.b16 %v86
  %v1003 = vunpack.c.l.b16 %v87
  %v1004 = vunpack.c.l.b16 %v88
  %v1005 = vunpack.c.l.b16 %v89
  %v1006 = vunpack.c.l.b16 %v90
  %v1007 = vunpack.c.l.b16 %v91
  %v1008 = vunpack.c.l.b16 %v92
  %v1009 = vunpack.c.l.b16 %v93
  %v1010 = vunpack.c.l.b16 %v94
  %v1011 = vunpack.c.l.b16 %v95
  %v1012 = vunpack.c.l.b16 %v96
  %v1013 = vunpack.c.l.b16 %v97
  %v1014 = vunpack.c.l.b16 %v98
  %v1015 = vunpack.c.l.b16 %v99
  %v1016 = vunpack.c.l.b16 %v100
  %v1017 = vunpack.c.l.b16 %v101
  %v1018 = vunpack.c.l.b16 %v102
  %v1019 = vunpack.c.l.b16 %v103
  %v1020 = vunpack.c.l.b16 %v104
  %v1021 = vunpack.c.l.b16 %v105
  %v1022 = vunpack.c.l.b16 %v106
  %v1023 = vunpack.c.l.b16 %v107
  %v1024 = vunpack.c.l.b16 %v108
  %v1025 = vunpack.c.l.b16 %v109
  %v1026 = vunpack.c.l.b16 %v110
  %v1027 = vunpack.c.l.b16 %v111
  %v1028 = vunpack.c.l.b16 %v112
  %v1029 = vunpack.c.l.b16 %v113
  %v1030 = vunpack.c.l.b16 %v114
  %v1031 = vunpack.c.l.b16 %v115
  %v1032 = vunpack.c.l.b16 %v116
  %v1033 = vunpack.c.l.b16 %v117
  %v1034 = vunpack.c.l.b16 %v118
  %v1035 = vunpack.c.l.b16 %v119
  %v1036 = vunpack.c.l.b16 %v120
  %v1037 = vunpack.c.l.b16 %v121
  %v1038 = vunpack.c.l.b16 %v122
  %v1039 = vunpack.c.l.b16 %v123
  %v1040 = vunpack.c.l.b16 %v124
  %v1041 = vunpack.c.l.b16 %v125
  %v1042 = vunpack.c.l.b16 %v126
  %v1043 = vunpack.c.l.b16 %v127
  %v1044 = vunpack.c.l.b16 %v128
  %v1045 = vunpack.c.l.b16 %v129
  %v1046 = vunpack.c.l.b16 %v130
  %v1047 = vunpack.c.l.b16 %v131
  %v1048 = vunpack.c.l.b16 %v132
  %v1049 = vunpack.c.l.b16 %v133
  %v1050 = vunpack.c.l.b16 %v134
  %v1051 = vunpack.c.l.b16 %v135
  %v1052 = vunpack.c.l.b16 %v136
  %v1053 = vunpack.c.l.b16 %v137
  %v1054 = vunpack.c.l.b16 %v138
  %v1055 = vunpack.c.l.b16 %v139
  %v1056 = vunpack.c.l.b16 %v140
  %v1057 = vunpack.c.l.b16 %v141
  %v1058 = vunpack.c.l.b16 %v142
  %v1059 = vunpack.c.l.b16 %v143
  %v1060 = vunpack.c.l.b16 %v144
  %v1061 = vunpack.c.l.b16 %v145
  %v1062 = vunpack.c.l.b16 %v146
  %v1063 = vunpack.c.l.b16 %v147
  %v1064 = vunpack.c.l.b16 %v148
  %v1065 = vunpack.c.l.b16 %v149
  %v1066 = vunpack.c.l.b16 %v150
  %v1067 = vunpack.c.l.b16 %v151
  %v1068 = vunpack.c.l.b16 %v152
  %v1069 = vunpack.c.l.b16 %v153
  %v1070 = vunpack.c.l.b16 %v154
  %v1071 = vunpack.c.l.b16 %v155
  %v1072 = vunpack.c.l.b16 %v156
  %v1073 = vunpack.c.l.b16 %v157
  %v1074 = vunpack.c.l.b16 %v158
  %v1075 = vunpack.c.l.b16 %v159
  %v1076 = vunpack.c.l.b16 %v160
  %v1077 = vunpack.c.l.b16 %v161
  %v1078 = vunpack.c.l.b16 %v162
  %v1079 = vunpack.c.l.b16 %v163
  %v1080 = vunpack.c.l.b16 %v164
  %v1081 = vunpack.c.l.b16 %v165
  %v1082 = vunpack.c.l.b16 %v166
  %v1083 = vunpack.c.l.b16 %v167
  %v1084 = vunpack.c.l.b16 %v168
  %v1085 = vunpack.c.l.b16 %v169
  %v1086 = vunpack.c.l.b16 %v170
  %v1087 = vunpack.c.l.b16 %v171
  %v1088 = vunpack.c.l.b16 %v172
  %v1089 = vunpack.c.l.b16 %v173
  %v1090 = vunpack.c.l.b16 %v174
  %v1091 = vunpack.c.l.b16 %v175
  %v1092 = vunpack.c.l.b16 %v176
  %v1093 = vunpack.c.l.b16 %v177
  %v1094 = vunpack.c.l.b16 %v178
  %v1095 = vunpack.c.l.b16 %v179
  %v1096 = vunpack.c.l.b16 %v180
  %v1097 = vunpack.c.l.b16 %v181
  %v1098 = vunpack.c.l.b16 %v182
  %v1099 = vunpack.c.l.b16 %v183
  %v1100 = vunpack.c.l.b16 %v184
  %v1101 = vunpack.c.l.b16 %v185
  %v1102 = vunpack.c.l.b16 %v186
  %v1103 = vunpack.c.l.b16 %v187
  %v1104 = vunpack.c.l.b16 %v188
  %v1105 = vunpack.c.l.b16 %v189
  %v1106 = vunpack.c.l.b16 %v190
  %v1107 = vunpack.c.l.b16 %v191
  %v1108 = vunpack.c.l.b16 %v192
  %v1109 = vunpack.c.l.b16 %v193
  %v1110 = vunpack.c.l.b16 %v194
  %v1111 = vunpack.c.l.b16 %v195
  %v1112 = vunpack.c.l.b16 %v196
  %v1113 = vunpack.c.l.b16 %v197
  %v1114 = vunpack.c.l.b16 %v198
  %v1115 = vunpack.c.l.b16 %v199
  %v1116 = vunpack.c.l.b16 %v200
  %v1117 = vunpack.c.l.b16 %v201
  %v1118 = vunpack.c.l.b16 %v202
  %v1119 = vunpack.c.l.b16 %v203
  %v1120 = vunpack.c.l.b16 %v204
  %v1121 = vunpack.c.l.b16 %v205
  %v1122 = vunpack.c.l.b16 %v206
  %v1123 = vunpack.c.l.b16 %v207
  %v1124 = vunpack.c.l.b16 %v208
  %v1125 = vunpack.c.l.b16 %v209
  %v1126 = vunpack.c.l.b16 %v210
  %v1127 = vunpack.c.l.b16 %v211
  %v1128 = vunpack.c.l.b16 %v212
  %v1129 = vunpack.c.l.b16 %v213
  %v1130 = vunpack.c.l.b16 %v214
  %v1131 = vunpack.c.l.b16 %v215
  %v1132 = vunpack.c.l.b16 %v216
  %v1133 = vunpack.c.l.b16 %v217
  %v1134 = vunpack.c.l.b16 %v218
  %v1135 = vunpack.c.l.b16 %v219
  %v1136 = vunpack.c.l.b16 %v220
  %v1137 = vunpack.c.l.b16 %v221
  %v1138 = vunpack.c.l.b16 %v222
  %v1139 = vunpack.c.l.b16 %v223
  %v1140 = vunpack.c.l.b16 %v224
  %v1141 = vunpack.c.l.b16 %v225
  %v1142 = vunpack.c.l.b16 %v226
  %v1143 = vunpack.c.l.b16 %v227
  %v1144 = vunpack.c.l.b16 %v228
  %v1145 = vunpack.c.l.b16 %v229
  %v1146 = vunpack.c.l.b16 %v230
  %v1147 = vunpack.c.l.b16 %v231
  %v1148 = vunpack.c.l.b16 %v232
  %v1149 = vunpack.c.l.b16 %v233
  %v1150 = vunpack.c.l.b16 %v234
  %v1151 = vunpack.c.l.b16 %v235
  %v1152 = vunpack.c.l.b16 %v236
  %v1153 = vunpack.c.l.b16 %v237
  %v1154 = vunpack.c.l.b16 %v238
  %v1155 = vunpack.c.l.b16 %v239
  %v1156 = vunpack.c.l.b16 %v240
  %v1157 = vunpack.c.l.b16 %v241
  %v1158 = vunpack.c.l.b16 %v242
  %v1159 = vunpack.c.l.b16 %v243
  %v1160 = vunpack.c.l.b16 %v244
  %v1161 = vunpack.c.l.b16 %v245
  %v1162 = vunpack.c.l.b16 %v246
  %v1163 = vunpack.c.l.b16 %v247
  %v1164 = vunpack.c.l.b16 %v248
  %v1165 = vunpack.c.l.b16 %v249
  %v1166 = vunpack.c.l.b16 %v250
  %v1167 = vunpack.c.l.b16 %v251
  %v1168 = vunpack.c.l.b16 %v252
  %v1169 = vunpack.c.l.b16 %v253
  %v1170 = vunpack.c.l.b16 %v254
  %v1171 = vunpack.c.l.b16 %v255
  %v1172 = vunpack.c.l.b16 %v256
  %v1173 = vunpack.c.l.b16 %v257
  %v1174 = vunpack.c.l.b16 %v258
  %v1175 = vunpack.c.l.b16 %v259
  %v1176 = vunpack.c.l.b16 %v260
  %v1177 = vunpack.c.l.b16 %v261
  %v1178 = vunpack.c.l.b16 %v262
  %v1179 = vunpack.c.l.b16 %v263
  %v1180 = vunpack.c.l.b16 %v264
  %v1181 = vunpack.c.l.b16 %v265
  %v1182 = vunpack.c.l.b16 %v266
  %v1183 = vunpack.c.l.b16 %v267
  %v1184 = vunpack.c.l.b16 %v268
  %v1185 = vunpack.c.l.b16 %v269
  %v1186 = vunpack.c.l.b16 %v270
  %v1187 = vunpack.c.l.b16 %v271
  %v1188 = vunpack.c.l.b16 %v272
  %v1189 = vunpack.c.l.b16 %v273
  %v1190 = vunpack.c.l.b16 %v274
  %v1191 = vunpack.c.l.b16 %v275
  %v1192 = vunpack.c.l.b16 %v276
  %v1193 = vunpack.c.l.b16 %v277
  %v1194 = vunpack.c.l.b16 %v278
  %v1195 = vunpack.c.l.b16 %v279
  %v1196 = vunpack.c.l.b16 %v280
  %v1197 = vunpack.c.l.b16 %v281
  %v1198 = vunpack.c.l.b16 %v282
  %v1199 = vunpack.c.l.b16 %v283
  %v1200 = vunpack.c.l.b16 %v284
  %v1201 = vunpack.c.l.b16 %v285
  %v1202 = vunpack.c.l.b16 %v286
  %v1203 = vunpack.c.l.b16 %v287
  %v1204 = vunpack.c.l.b16 %v288
  %v1205 = vunpack.c.l.b16 %v289
  %v1206 = vunpack.c.l.b16 %v290
  %v1207 = vunpack.c.l.b16 %v291
  %v1208 = vunpack.c.l.b16 %v292
  %v1209 = vunpack.c.l.b16 %v293
  %v1210 = vunpack.c.l.b16 %v294
  %v1211 = vunpack.c.l.b16 %v295
  %v1212 = vunpack.c.l.b16 %v296
  %v1213 = vunpack.c.l.b16 %v297
  %v1214 = vunpack.c.l.b16 %v298
  %v1215 = vunpack.c.l.b16 %v299
  %v1216 = vunpack.c.l.b16 %v300
  %v1217 = vunpack.c.l.b16 %v301
  %v1218 = vunpack.c.l.b16 %v302
  %v1219 = vunpack.c.l.b16 %v303
  %v1220 = vunpack.c.l.b16 %v304
  %v1221 = vunpack.c.l.b16 %v305
  %v1222 = vunpack.c.l.b16 %v306
  %v1223 = vunpack.c.l.b16 %v307
  %v1224 = vunpack.c.l.b16 %v308
  %v1225 = vunpack.c.l.b16 %v309
  %v1226 = vunpack.c.l.b16 %v310
  %v1227 = vunpack.c.l.b16 %v311
  %v1228 = vunpack.c.l.b16 %v312
  %v1229 = vunpack.c.l.b16 %v313
  %v1230 = vunpack.c.l.b16 %v314
  %v1231 = vunpack.c.l.b16 %v315
  %v1232 = vunpack.c.l.b16 %v316
  %v1233 = vunpack.c.l.b16 %v317
  %v1234 = vunpack.c.l.b16 %v318
  %v1235 = vunpack.c.l.b16 %v319
  %v1236 = vunpack.c.l.b16 %v320
  %v1237 = vunpack.c.l.b16 %v321
  %v1238 = vunpack.c.l.b16 %v322
  %v1239 = vunpack.c.l.b16 %v323
  %v1240 = vunpack.c.l.b16 %v324
  %v1241 = vunpack.c.l.b16 %v325
  %v1242 = vunpack.c.l.b16 %v326
  %v1243 = vunpack.c.l.b16 %v327
  %v1244 = vunpack.c.l.b16 %v328
  %v1245 = vunpack.c.l.b16 %v329
  %v1246 = vunpack.c.l.b16 %v330
  %v1247 = vunpack.c.l.b16 %v331
  %v1248 = vunpack.c.l.b16 %v332
  %v1249 = vunpack.c.l.b16 %v333
  %v1250 = vunpack.c.l.b16 %v334
  %v1251 = vunpack.c.l.b16 %v335
  %v1252 = vunpack.c.l.b16 %v336
  %v1253 = vunpack.c.l.b16 %v337
  %v1254 = vunpack.c.l.b16 %v338
  %v1255 = vunpack.c.l.b16 %v339
  %v1256 = vunpack.c.l.b16 %v340
  %v1257 = vunpack.c.l.b16 %v341
  %v1258 = vunpack.c.l.b16 %v342
  %v1259 = vunpack.c.l.b16 %v343
  %v1260 = vunpack.c.l.b16 %v344
  %v1261 = vunpack.c.l.b16 %v345
  %v1262 = vunpack.c.l.b16 %v346
  %v1263 = vunpack.c.l.b16 %v347
  %v1264 = vunpack.c.l.b16 %v348
  %v1265 = vunpack.c.l.b16 %v349
  %v1266 = vunpack.c.l.b16 %v350
  %v1267 = vunpack.c.l.b16 %v351
  %v1268 = vunpack.c.l.b16 %v352
  %v1269 = vunpack.c.l.b16 %v353
  %v1270 = vunpack.c.l.b16 %v354
  %v1271 = vunpack.c.l.b16 %v355
  %v1272 = vunpack.c.l.b16 %v356
  %v1273 = vunpack.c.l.b16 %v357
  %v1274 = vunpack.c.l.b16 %v358
  %v1275 = vunpack.c.l.b16 %v359
  %v1276 = vunpack.c.l.b16 %v360
  %v1277 = vunpack.c.l.b16 %v361
  %v1278 = vunpack.c.l.b16 %v362
  %v1279 = vunpack.c.l.b16 %v363
  %v1280 = vunpack.c.l.b16 %v364
  %v1281 = vunpack.c.l.b16 %v365
  %v1282 = vunpack.c.l.b16 %v366
  %v1283 = vunpack.c.l.b16 %v367
  %v1284 = vunpack.c.l.b16 %v368
  %v1285 = vunpack.c.l.b16 %v369
  %v1286 = vunpack.c.l.b16 %v370
  %v1287 = vunpack.c.l.b16 %v371
  %v1288 = vunpack.c.l.b16 %v372
  %v1289 = vunpack.c.l.b16 %v373
  %v1290 = vunpack.c.l.b16 %v374
  %v1291 = vunpack.c.l.b16 %v375
  %v1292 = vunpack.c.l.b16 %v376
  %v1293 = vunpack.c.l.b16 %v377
  %v1294 = vunpack.c.l.b16 %v378
  %v1295 = vunpack.c.l.b16 %v379
  %v1296 = vunpack.c.l.b16 %v380
  %v1297 = vunpack.c.l.b16 %v381
  %v1298 = vunpack.c.l.b16 %v382
  %v1299 = vunpack.c.l.b16 %v383
  %v1300 = vunpack.c.l.b16 %v384
  %v1301 = vunpack.c.l.b16 %v385
  %v1302 = vunpack.c.l.b16 %v386
  %v1303 = vunpack.c.l.b16 %v387
  %v1304 = vunpack.c.l.b16 %v388
  %v1305 = vunpack.c.l.b16 %v389
  %v1306 = vunpack.c.l.b16 %v390
  %v1307 = vunpack.c.l.b16 %v391
  %v1308 = vunpack.c.l.b16 %v392
  %v1309 = vunpack.c.l.b16 %v393
  %v1310 = vunpack.c.l.b16 %v394
  %v1311 = vunpack.c.l.b16 %v395
  %v1312 = vunpack.c.l.b16 %v396
  %v1313 = vunpack.c.l.b16 %v397
  %v1314 = vunpack.c.l.b16 %v398
  %v1315 = vunpack.c.l.b16 %v399
  %v1316 = vunpack.c.l.b16 %v400
  %v1317 = vunpack.c.l.b16 %v401
  %v1318 = vunpack.c.l.b16 %v402
  %v1319 = vunpack.c.l.b16 %v403
  %v1320 = vunpack.c.l.b16 %v404
  %v1321 = vunpack.c.l.b16 %v405
  %v1322 = vunpack.c.l.b16 %v406
  %v1323 = vunpack.c.l.b16 %v407
  %v1324 = vunpack.c.l.b16 %v408
  %v1325 = vunpack.c.l.b16 %v409
  %v1326 = vunpack.c.l.b16 %v410
  %v1327 = vunpack.c.l.b16 %v411
  %v1328 = vunpack.c.l.b16 %v412
  %v1329 = vunpack.c.l.b16 %v413
  %v1330 = vunpack.c.l.b16 %v414
  %v1331 = vunpack.c.l.b16 %v415
  %v1332 = vunpack.c.l.b16 %v416
  %v1333 = vunpack.c.l.b16 %v417
  %v1334 = vunpack.c.l.b16 %v418
  %v1335 = vunpack.c.l.b16 %v419
  %v1336 = vunpack.c.l.b16 %v420
  %v1337 = vunpack.c.l.b16 %v421
  %v1338 = vunpack.c.l.b16 %v422
  %v1339 = vunpack.c.l.b16 %v423
  %v1340 = vunpack.c.l.b16 %v424
  %v1341 = vunpack.c.l.b16 %v425
  %v1342 = vunpack.c.l.b16 %v426
  %v1343 = vunpack.c.l.b16 %v427
  %v1344 = vunpack.c.l.b16 %v428
  %v1345 = vunpack.c.l.b16 %v429
  %v1346 = vunpack.c.l.b16 %v430
  %v1347 = vunpack.c.l.b16 %v431
  %v1348 = vunpack.c.l.b16 %v432
  %v1349 = vpack.c.b16 %v958, %v957
  %v1350 = vpack.c.b16 %v960, %v959
  %v1351 = vpack.c.b16 %v962, %v961
  %v1352 = vpack.c.b16 %v964, %v963
  %v1353 = vpack.c.b16 %v966, %v965
  %v1354 = vpack.c.b16 %v968, %v967
  %v1355 = vpack.c.b16 %v970, %v969
  %v1356 = vpack.c.b16 %v972, %v971
  %v1357 = vpack.c.b16 %v974, %v973
  %v1358 = vpack.c.b16 %v976, %v975
  %v1359 = vpack.c.b16 %v978, %v977
  %v1360 = vpack.c.b16 %v980, %v979
  %v1361 = vpack.c.b16 %v982, %v981
  %v1362 = vpack.c.b16 %v984, %v983
  %v1363 = vpack.c.b16 %v986, %v985
  %v1364 = vpack.c.b16 %v988, %v987
  %v1365 = vpack.c.b16 %v990, %v989
  %v1366 = vpack.c.b16 %v992, %v991
  %v1367 = vpack.c.b16 %v994, %v993
  %v1368 = vpack.c.b16 %v996, %v995
  %v1369 = vpack.c.b16 %v998, %v997
  %v1370 = vpack.c.b16 %v1000, %v999
  %v1371 = vpack.c.b16 %v1002, %v1001
  %v1372 = vpack.c.b16 %v1004, %v1003
  %v1373 = vpack.c.b16 %v1006, %v1005
  %v1374 = vpack.c.b16 %v1008, %v1007
  %v1375 = vpack.c.b16 %v1010, %v1009
  %v1376 = vpack.c.b16 %v1012, %v1011
  %v1377 = vpack.c.b16 %v1014, %v1013
  %v1378 = vpack.c.b16 %v1016, %v1015
  %v1379 = vpack.c.b16 %v1018, %v1017
  %v1380 = vpack.c.b16 %v1020, %v1019
  %v1381 = vpack.c.b16 %v1022, %v1021
  %v1382 = vpack.c.b16 %v1024, %v1023
  %v1383 = vpack.c.b16 %v1026, %v1025
  %v1384 = vpack.c.b16 %v1028, %v1027
  %v1385 = vpack.c.b16 %v1030, %v1029
  %v1386 = vpack.c.b16 %v1032, %v1031
  %v1387 = vpack.c.b16 %v1034, %v1033
  %v1388 = vpack.c.b16 %v1036, %v1035
  %v1389 = vpack.c.b16 %v1038, %v1037
  %v1390 = vpack.c.b16 %v1040, %v1039
  %v1391 = vpack.c.b16 %v1042, %v1041
  %v1392 = vpack.c.b16 %v1044, %v1043
  %v1393 = vpack.c.b16 %v1046, %v1045
  %v1394 = vpack.c.b16 %v1048, %v1047
  %v1395 = vpack.c.b16 %v1050, %v1049
  %v1396 = vpack.c.b16 %v1052, %v1051
  %v1397 = vpack.c.b16 %v1054, %v1053
  %v1398 = vpack.c.b16 %v1056, %v1055
  %v1399 = vpack.c.b16 %v1058, %v1057
  %v1400 = vpack.c.b16 %v1060, %v1059
  %v1401 = vpack.c.b16 %v1062, %v1061
  %v1402 = vpack.c.b16 %v1064, %v1063
  %v1403 = vpack.c.b16 %v1066, %v1065
  %v1404 = vpack.c.b16 %v1068, %v1067
  %v1405 = vpack.c.b16 %v1070, %v1069
  %v1406 = vpack.c.b16 %v1072, %v1071
  %v1407 = vpack.c.b16 %v1074, %v1073
  %v1408 = vpack.c.b16 %v1076, %v1075
  %v1409 = vpack.c.b16 %v1078, %v1077
  %v1410 = vpack.c.b16 %v1080, %v1079
  %v1411 = vpack.c.b16 %v1082, %v1081
  %v1412 = vpack.c.b16 %v1084, %v1083
  %v1413 = vpack.c.b16 %v1086, %v1085
  %v1414 = vpack.c.b16 %v1088, %v1087
  %v1415 = vpack.c.b16 %v1090, %v1089
  %v1416 = vpack.c.b16 %v1092, %v1091
  %v1417 = vpack.c.b16 %v1094, %v1093
  %v1418 = vpack.c.b16 %v1096, %v1095
  %v1419 = vpack.c.b16 %v1098, %v1097
  %v1420 = vpack.c.b16 %v1100, %v1099
  %v1421 = vpack.c.b16 %v1102, %v1101
  %v1422 = vpack.c.b16 %v1104, %v1103
  %v1423 = vpack.c.b16 %v1106, %v1105
  %v1424 = vpack.c.b16 %v1108, %v1107
  %v1425 = vpack.c.b16 %v1110, %v1109
  %v1426 = vpack.c.b16 %v1112, %v1111
  %v1427 = vpack.c.b16 %v1114, %v1113
  %v1428 = vpack.c.b16 %v1116, %v1115
  %v1429 = vpack.c.b16 %v1118, %v1117
  %v1430 = vpack.c.b16 %v1120, %v1119
  %v1431 = vpack.c.b16 %v1122, %v1121
  %v1432 = vpack.c.b16 %v1124, %v1123
  %v1433 = vpack.c.b16 %v1126, %v1125
  %v1434 = vpack.c.b16 %v1128, %v1127
  %v1435 = vpack.c.b16 %v1130, %v1129
  %v1436 = vpack.c.b16 %v1132, %v1131
  %v1437 = vpack.c.b16 %v1134, %v1133
  %v1438 = vpack.c.b16 %v1136, %v1135
  %v1439 = vpack.c.b16 %v1138, %v1137
  %v1440 = vpack.c.b16 %v1140, %v1139
  %v1441 = vpack.c.b16 %v1142, %v1141
  %v1442 = vpack.c.b16 %v1144, %v1143
  %v1443 = vpack.c.b16 %v1146, %v1145
  %v1444 = vpack.c.b16 %v1148, %v1147
  %v1445 = vpack.c.b16 %v1150, %v1149
  %v1446 = vpack.c.b16 %v1152, %v1151
  %v1447 = vpack.c.b16 %v1154, %v1153
  %v1448 = vpack.c.b16 %v1156, %v1155
  %v1449 = vpack.c.b16 %v1158, %v1157
  %v1450 = vpack.c.b16 %v1160, %v1159
  %v1451 = vpack.c.b16 %v1162, %v1161
  %v1452 = vpack.c.b16 %v1164, %v1163
  %v1453 = vpack.c.b16 %v1166, %v1165
  %v1454 = vpack.c.b16 %v1168, %v1167
  %v1455 = vpack.c.b16 %v1170, %v1169
  %v1456 = vpack.c.b16 %v1172, %v1171
  %v1457 = vpack.c.b16 %v1174, %v1173
  %v1458 = vpack.c.b16 %v1176, %v1175
  %v1459 = vpack.c.b16 %v1178, %v1177
  %v1460 = vpack.c.b16 %v1180, %v1179
  %v1461 = vpack.c.b16 %v1182, %v1181
  %v1462 = vpack.c.b16 %v1184, %v1183
  %v1463 = vpack.c.b16 %v1186, %v1185
  %v1464 = vpack.c.b16 %v1188, %v1187
  %v1465 = vpack.c.b16 %v1190, %v1189
  %v1466 = vpack.c.b16 %v1192, %v1191
  %v1467 = vpack.c.b16 %v1194, %v1193
  %v1468 = vpack.c.b16 %v1196, %v1195
  %v1469 = vpack.c.b16 %v1198, %v1197
  %v1470 = vpack.c.b16 %v1200, %v1199
  %v1471 = vpack.c.b16 %v1202, %v1201
  %v1472 = vpack.c.b16 %v1204, %v1203
  %v1473 = vpack.c.b16 %v1206, %v1205
  %v1474 = vpack.c.b16 %v1208, %v1207
  %v1475 = vpack.c.b16 %v1210, %v1209
  %v1476 = vpack.c.b16 %v1212, %v1211
  %v1477 = vpack.c.b16 %v1214, %v1213
  %v1478 = vpack.c.b16 %v1216, %v1215
  %v1479 = vpack.c.b16 %v1218, %v1217
  %v1480 = vpack.c.b16 %v1220, %v1219
  %v1481 = vpack.c.b16 %v1222, %v1221
  %v1482 = vpack.c.b16 %v1224, %v1223
  %v1483 = vpack.c.b16 %v1226, %v1225
  %v1484 = vpack.c.b16 %v1228, %v1227
  %v1485 = vpack.c.b16 %v1230, %v1229
  %v1486 = vpack.c.b16 %v1232, %v1231
  %v1487 = vpack.c.b16 %v1234, %v1233
  %v1488 = vpack.c.b16 %v1236, %v1235
  %v1489 = vpack.c.b16 %v1238, %v1237
  %v1490 = vpack.c.b16 %v1240, %v1239
  %v1491 = vpack.c.b16 %v1242, %v1241
  %v1492 = vpack.c.b16 %v1244, %v1243
  %v1493 = vpack.c.b16 %v1246, %v1245
  %v1494 = vpack.c.b16 %v1248, %v1247
  %v1495 = vpack.c.b16 %v1250, %v1249
  %v1496 = vpack.c.b16 %v1252, %v1251
  %v1497 = vpack.c.b16 %v1254, %v1253
  %v1498 = vpack.c.b16 %v1256, %v1255
  %v1499 = vpack.c.b16 %v1258, %v1257
  %v1500 = vpack.c.b16 %v1260, %v1259
  %v1501 = vpack.c.b16 %v1262, %v1261
  %v1502 = vpack.c.b16 %v1264, %v1263
  %v1503 = vpack.c.b16 %v1266, %v1265
  %v1504 = vpack.c.b16 %v1268, %v1267
  %v1505 = vpack.c.b16 %v1270, %v1269
  %v1506 = vpack.c.b16 %v1272, %v1271
  %v1507 = vpack.c.b16 %v1274, %v1273
  %v1508 = vpack.c.b16 %v1276, %v1275
  %v1509 = vpack.c.b16 %v1278, %v1277
  %v1510 = vpack.c.b16 %v1280, %v1279
  %v1511 = vpack.c.b16 %v1282, %v1281
  %v1512 = vpack.c.b16 %v1284, %v1283
  %v1513 = vpack.c.b16 %v1286, %v1285
  %v1514 = vpack.c.b16 %v1288, %v1287
  %v1515 = vpack.c.b16 %v1290, %v1289
  %v1516 = vpack.c.b16 %v1292, %v1291
  %v1517 = vpack.c.b16 %v1294, %v1293
  %v1518 = vpack.c.b16 %v1296, %v1295
  %v1519 = vpack.c.b16 %v1298, %v1297
  %v1520 = vpack.c.b16 %v1300, %v1299
  %v1521 = vpack.c.b16 %v1302, %v1301
  %v1522 = vpack.c.b16 %v1304, %v1303
  %v1523 = vpack.c.b16 %v1306, %v1305
  %v1524 = vpack.c.b16 %v1308, %v1307
  %v1525 = vpack.c.b16 %v1310, %v1309
  %v1526 = vpack.c.b16 %v1312, %v1311
  %v1527 = vpack.c.b16 %v1314, %v1313
  %v1528 = vpack.c.b16 %v1316, %v1315
  %v1529 = vpack.c.b16 %v1318, %v1317
  %v1530 = vpack.c.b16 %v1320, %v1319
  %v1531 = vpack.c.b16 %v1322, %v1321
  %v1532 = vpack.c.b16 %v1324, %v1323
  %v1533 = vpack.c.b16 %v1326, %v1325
  %v1534 = vpack.c.b16 %v1328, %v1327
  %v1535 = vpack.c.b16 %v1330, %v1329
  %v1536 = vpack.c.b16 %v1332, %v1331
  %v1537 = vpack.c.b16 %v1334, %v1333
  %v1538 = vpack.c.b16 %v1336, %v1335
  %v1539 = vpack.c.b16 %v1338, %v1337
  %v1540 = vpack.c.b16 %v1340, %v1339
  %v1541 = vpack.c.b16 %v1342, %v1341
  %v1542 = vpack.c.b16 %v1344, %v1343
  %v1543 = vpack.c.b16 %v1346, %v1345
  %v1544 = vpack.c.b16 %v1348, %v1347
  %vm1741 = vcmask 523264
  %v1743 = vsel %vm1741, %v540, 0
  %1745 = vmatprep.subr.bf16.mxu0 0
  %1746 = vmatpush1.bf16.msra.mxu0 %v1349
  %1747 = vmatprep.subr.bf16.mxu0 0
  %1748 = vmatpush1.bf16.msra.mxu0 %v1350
  %1749 = vmatprep.subr.bf16.mxu0 0
  %1750 = vmatpush1.bf16.msra.mxu0 %v1351
  %1751 = vmatprep.subr.bf16.mxu0 0
  %1752 = vmatpush1.bf16.msra.mxu0 %v1352
  %1753 = vmatprep.subr.bf16.mxu0 0
  %1754 = vmatpush1.bf16.msra.mxu0 %v1353
  %1755 = vmatprep.subr.bf16.mxu0 0
  %1756 = vmatpush1.bf16.msra.mxu0 %v1354
  %1757 = vmatprep.subr.bf16.mxu0 0
  %1758 = vmatpush1.bf16.msra.mxu0 %v1355
  %1759 = vmatprep.subr.bf16.mxu0 0
  %1760 = vmatpush1.bf16.msra.mxu0 %v1356
  %1761 = vmatprep.subr.bf16.mxu0 0
  %1762 = vmatpush1.bf16.msra.mxu0 %v1357
  %1763 = vmatprep.subr.bf16.mxu0 0
  %1764 = vmatpush1.bf16.msra.mxu0 %v1358
  %1765 = vmatprep.subr.bf16.mxu0 0
  %1766 = vmatpush1.bf16.msra.mxu0 %v1359
  %1767 = vmatprep.subr.bf16.mxu0 0
  %1768 = vmatpush1.bf16.msra.mxu0 %v1360
  %1769 = vmatprep.subr.bf16.mxu0 0
  %1770 = vmatpush1.bf16.msra.mxu0 %v1361
  %1771 = vmatprep.subr.bf16.mxu0 0
  %1772 = vmatpush1.bf16.msra.mxu0 %v1362
  %1773 = vmatprep.subr.bf16.mxu0 0
  %1774 = vmatpush1.bf16.msra.mxu0 %v1363
  %1775 = vmatprep.subr.bf16.mxu0 0
  %1776 = vmatpush1.bf16.msra.mxu0 %v1364
  %1777 = vmatprep.mubr.bf16.mxu0 %v517
  %1778 = vmatmul.mubr.bf16.gmra.mrb[0].mxu0 %v516
  %v1779 = vpop.f32.mrb[0].mxu0
  %v1780 = vadd.f32 %v438, %v1779
  %v1781 = vpop.f32.mrb[0].mxu0
  %v1782 = vpop.f32.mrb[0].mxu0
  %v1783 = vadd.f32 %v438, %v1782
  %v1784 = vpop.f32.mrb[0].mxu0
  %1785 = vdwg.mxu0
  %1786 = vmatprep.subr.bf16.mxu0 0
  %1787 = vmatpush1.bf16.msra.mxu0 %v1365
  %1788 = vmatprep.subr.bf16.mxu0 0
  %1789 = vmatpush1.bf16.msra.mxu0 %v1366
  %1790 = vmatprep.subr.bf16.mxu0 0
  %1791 = vmatpush1.bf16.msra.mxu0 %v1367
  %1792 = vmatprep.subr.bf16.mxu0 0
  %1793 = vmatpush1.bf16.msra.mxu0 %v1368
  %1794 = vmatprep.subr.bf16.mxu0 0
  %1795 = vmatpush1.bf16.msra.mxu0 %v1369
  %1796 = vmatprep.subr.bf16.mxu0 0
  %1797 = vmatpush1.bf16.msra.mxu0 %v1370
  %1798 = vmatprep.subr.bf16.mxu0 0
  %1799 = vmatpush1.bf16.msra.mxu0 %v1371
  %1800 = vmatprep.subr.bf16.mxu0 0
  %1801 = vmatpush1.bf16.msra.mxu0 %v1372
  %1802 = vmatprep.subr.bf16.mxu0 0
  %1803 = vmatpush1.bf16.msra.mxu0 %v1373
  %1804 = vmatprep.subr.bf16.mxu0 0
  %1805 = vmatpush1.bf16.msra.mxu0 %v1374
  %1806 = vmatprep.subr.bf16.mxu0 0
  %1807 = vmatpush1.bf16.msra.mxu0 %v1375
  %1808 = vmatprep.subr.bf16.mxu0 0
  %1809 = vmatpush1.bf16.msra.mxu0 %v1376
  %1810 = vmatprep.subr.bf16.mxu0 0
  %1811 = vmatpush1.bf16.msra.mxu0 %v1377
  %1812 = vmatprep.subr.bf16.mxu0 0
  %1813 = vmatpush1.bf16.msra.mxu0 %v1378
  %1814 = vmatprep.subr.bf16.mxu0 0
  %1815 = vmatpush1.bf16.msra.mxu0 %v1379
  %1816 = vmatprep.subr.bf16.mxu0 0
  %1817 = vmatpush1.bf16.msra.mxu0 %v1380
  %1818 = vmatprep.mubr.bf16.mxu0 %v519
  %1819 = vmatmul.mubr.bf16.gmra.mrb[0].mxu0 %v518
  %v1820 = vpop.f32.mrb[0].mxu0
  %v1821 = vadd.f32 %v1780, %v1820
  %v1822 = vpop.f32.mrb[0].mxu0
  %v1823 = vpop.f32.mrb[0].mxu0
  %v1824 = vadd.f32 %v1783, %v1823
  %v1825 = vpop.f32.mrb[0].mxu0
  %1826 = vdwg.mxu0
  %1827 = vmatprep.subr.bf16.mxu0 0
  %1828 = vmatpush1.bf16.msra.mxu0 %v1381
  %1829 = vmatprep.subr.bf16.mxu0 0
  %1830 = vmatpush1.bf16.msra.mxu0 %v1382
  %1831 = vmatprep.subr.bf16.mxu0 0
  %1832 = vmatpush1.bf16.msra.mxu0 %v1383
  %1833 = vmatprep.subr.bf16.mxu0 0
  %1834 = vmatpush1.bf16.msra.mxu0 %v1384
  %1835 = vmatprep.subr.bf16.mxu0 0
  %1836 = vmatpush1.bf16.msra.mxu0 %v1385
  %1837 = vmatprep.subr.bf16.mxu0 0
  %1838 = vmatpush1.bf16.msra.mxu0 %v1386
  %1839 = vmatprep.subr.bf16.mxu0 0
  %1840 = vmatpush1.bf16.msra.mxu0 %v1387
  %1841 = vmatprep.subr.bf16.mxu0 0
  %1842 = vmatpush1.bf16.msra.mxu0 %v1388
  %1843 = vmatprep.subr.bf16.mxu0 0
  %1844 = vmatpush1.bf16.msra.mxu0 %v1389
  %1845 = vmatprep.subr.bf16.mxu0 0
  %1846 = vmatpush1.bf16.msra.mxu0 %v1390
  %1847 = vmatprep.subr.bf16.mxu0 0
  %1848 = vmatpush1.bf16.msra.mxu0 %v1391
  %1849 = vmatprep.subr.bf16.mxu0 0
  %1850 = vmatpush1.bf16.msra.mxu0 %v1392
  %1851 = vmatprep.subr.bf16.mxu0 0
  %1852 = vmatpush1.bf16.msra.mxu0 %v1393
  %1853 = vmatprep.subr.bf16.mxu0 0
  %1854 = vmatpush1.bf16.msra.mxu0 %v1394
  %1855 = vmatprep.subr.bf16.mxu0 0
  %1856 = vmatpush1.bf16.msra.mxu0 %v1395
  %1857 = vmatprep.subr.bf16.mxu0 0
  %1858 = vmatpush1.bf16.msra.mxu0 %v1396
  %1859 = vmatprep.mubr.bf16.mxu0 %v521
  %1860 = vmatmul.mubr.bf16.gmra.mrb[0].mxu0 %v520
  %v1861 = vpop.f32.mrb[0].mxu0
  %v1862 = vadd.f32 %v1821, %v1861
  %v1863 = vpop.f32.mrb[0].mxu0
  %v1864 = vpop.f32.mrb[0].mxu0
  %v1865 = vadd.f32 %v1824, %v1864
  %v1866 = vpop.f32.mrb[0].mxu0
  %1867 = vdwg.mxu0
  %1868 = vmatprep.subr.bf16.mxu0 0
  %1869 = vmatpush1.bf16.msra.mxu0 %v1397
  %1870 = vmatprep.subr.bf16.mxu0 0
  %1871 = vmatpush1.bf16.msra.mxu0 %v1398
  %1872 = vmatprep.subr.bf16.mxu0 0
  %1873 = vmatpush1.bf16.msra.mxu0 %v1399
  %1874 = vmatprep.subr.bf16.mxu0 0
  %1875 = vmatpush1.bf16.msra.mxu0 %v1400
  %1876 = vmatprep.subr.bf16.mxu0 0
  %1877 = vmatpush1.bf16.msra.mxu0 %v1401
  %1878 = vmatprep.subr.bf16.mxu0 0
  %1879 = vmatpush1.bf16.msra.mxu0 %v1402
  %1880 = vmatprep.subr.bf16.mxu0 0
  %1881 = vmatpush1.bf16.msra.mxu0 %v1403
  %1882 = vmatprep.subr.bf16.mxu0 0
  %1883 = vmatpush1.bf16.msra.mxu0 %v1404
  %1884 = vmatprep.subr.bf16.mxu0 0
  %1885 = vmatpush1.bf16.msra.mxu0 %v1405
  %1886 = vmatprep.subr.bf16.mxu0 0
  %1887 = vmatpush1.bf16.msra.mxu0 %v1406
  %1888 = vmatprep.subr.bf16.mxu0 0
  %1889 = vmatpush1.bf16.msra.mxu0 %v1407
  %1890 = vmatprep.subr.bf16.mxu0 0
  %1891 = vmatpush1.bf16.msra.mxu0 %v1408
  %1892 = vmatprep.subr.bf16.mxu0 0
  %1893 = vmatpush1.bf16.msra.mxu0 %v1409
  %1894 = vmatprep.subr.bf16.mxu0 0
  %1895 = vmatpush1.bf16.msra.mxu0 %v1410
  %1896 = vmatprep.subr.bf16.mxu0 0
  %1897 = vmatpush1.bf16.msra.mxu0 %v1411
  %1898 = vmatprep.subr.bf16.mxu0 0
  %1899 = vmatpush1.bf16.msra.mxu0 %v1412
  %1900 = vmatprep.mubr.bf16.mxu0 %v523
  %1901 = vmatmul.mubr.bf16.gmra.mrb[0].mxu0 %v522
  %v1902 = vpop.f32.mrb[0].mxu0
  %v1903 = vadd.f32 %v1862, %v1902
  %v1904 = vpop.f32.mrb[0].mxu0
  %v1905 = vpop.f32.mrb[0].mxu0
  %v1906 = vadd.f32 %v1865, %v1905
  %v1907 = vpop.f32.mrb[0].mxu0
  %1908 = vdwg.mxu0
  %1909 = vmatprep.subr.bf16.mxu0 0
  %1910 = vmatpush1.bf16.msra.mxu0 %v1413
  %1911 = vmatprep.subr.bf16.mxu0 0
  %1912 = vmatpush1.bf16.msra.mxu0 %v1414
  %1913 = vmatprep.subr.bf16.mxu0 0
  %1914 = vmatpush1.bf16.msra.mxu0 %v1415
  %1915 = vmatprep.subr.bf16.mxu0 0
  %1916 = vmatpush1.bf16.msra.mxu0 %v1416
  %1917 = vmatprep.subr.bf16.mxu0 0
  %1918 = vmatpush1.bf16.msra.mxu0 %v1417
  %1919 = vmatprep.subr.bf16.mxu0 0
  %1920 = vmatpush1.bf16.msra.mxu0 %v1418
  %1921 = vmatprep.subr.bf16.mxu0 0
  %1922 = vmatpush1.bf16.msra.mxu0 %v1419
  %1923 = vmatprep.subr.bf16.mxu0 0
  %1924 = vmatpush1.bf16.msra.mxu0 %v1420
  %1925 = vmatprep.subr.bf16.mxu0 0
  %1926 = vmatpush1.bf16.msra.mxu0 %v1421
  %1927 = vmatprep.subr.bf16.mxu0 0
  %1928 = vmatpush1.bf16.msra.mxu0 %v1422
  %1929 = vmatprep.subr.bf16.mxu0 0
  %1930 = vmatpush1.bf16.msra.mxu0 %v1423
  %1931 = vmatprep.subr.bf16.mxu0 0
  %1932 = vmatpush1.bf16.msra.mxu0 %v1424
  %1933 = vmatprep.subr.bf16.mxu0 0
  %1934 = vmatpush1.bf16.msra.mxu0 %v1425
  %1935 = vmatprep.subr.bf16.mxu0 0
  %1936 = vmatpush1.bf16.msra.mxu0 %v1426
  %1937 = vmatprep.subr.bf16.mxu0 0
  %1938 = vmatpush1.bf16.msra.mxu0 %v1427
  %1939 = vmatprep.subr.bf16.mxu0 0
  %1940 = vmatpush1.bf16.msra.mxu0 %v1428
  %1941 = vmatprep.mubr.bf16.mxu0 %v525
  %1942 = vmatmul.mubr.bf16.gmra.mrb[0].mxu0 %v524
  %v1943 = vpop.f32.mrb[0].mxu0
  %v1944 = vadd.f32 %v1903, %v1943
  %v1945 = vpop.f32.mrb[0].mxu0
  %v1946 = vpop.f32.mrb[0].mxu0
  %v1947 = vadd.f32 %v1906, %v1946
  %v1948 = vpop.f32.mrb[0].mxu0
  %1949 = vdwg.mxu0
  %1950 = vmatprep.subr.bf16.mxu0 0
  %1951 = vmatpush1.bf16.msra.mxu0 %v1429
  %1952 = vmatprep.subr.bf16.mxu0 0
  %1953 = vmatpush1.bf16.msra.mxu0 %v1430
  %1954 = vmatprep.subr.bf16.mxu0 0
  %1955 = vmatpush1.bf16.msra.mxu0 %v1431
  %1956 = vmatprep.subr.bf16.mxu0 0
  %1957 = vmatpush1.bf16.msra.mxu0 %v1432
  %1958 = vmatprep.subr.bf16.mxu0 0
  %1959 = vmatpush1.bf16.msra.mxu0 %v1433
  %1960 = vmatprep.subr.bf16.mxu0 0
  %1961 = vmatpush1.bf16.msra.mxu0 %v1434
  %1962 = vmatprep.subr.bf16.mxu0 0
  %1963 = vmatpush1.bf16.msra.mxu0 %v1435
  %1964 = vmatprep.subr.bf16.mxu0 0
  %1965 = vmatpush1.bf16.msra.mxu0 %v1436
  %1966 = vmatprep.subr.bf16.mxu0 0
  %1967 = vmatpush1.bf16.msra.mxu0 %v1437
  %1968 = vmatprep.subr.bf16.mxu0 0
  %1969 = vmatpush1.bf16.msra.mxu0 %v1438
  %1970 = vmatprep.subr.bf16.mxu0 0
  %1971 = vmatpush1.bf16.msra.mxu0 %v1439
  %1972 = vmatprep.subr.bf16.mxu0 0
  %1973 = vmatpush1.bf16.msra.mxu0 %v1440
  %1974 = vmatprep.subr.bf16.mxu0 0
  %1975 = vmatpush1.bf16.msra.mxu0 %v1441
  %1976 = vmatprep.subr.bf16.mxu0 0
  %1977 = vmatpush1.bf16.msra.mxu0 %v1442
  %1978 = vmatprep.subr.bf16.mxu0 0
  %1979 = vmatpush1.bf16.msra.mxu0 %v1443
  %1980 = vmatprep.subr.bf16.mxu0 0
  %1981 = vmatpush1.bf16.msra.mxu0 %v1444
  %1982 = vmatprep.mubr.bf16.mxu0 %v527
  %1983 = vmatmul.mubr.bf16.gmra.mrb[0].mxu0 %v526
  %v1984 = vpop.f32.mrb[0].mxu0
  %v1985 = vadd.f32 %v1944, %v1984
  %v1986 = vpop.f32.mrb[0].mxu0
  %v1987 = vpop.f32.mrb[0].mxu0
  %v1988 = vadd.f32 %v1947, %v1987
  %v1989 = vpop.f32.mrb[0].mxu0
  %1990 = vdwg.mxu0
  %1991 = vmatprep.subr.bf16.mxu0 0
  %1992 = vmatpush1.bf16.msra.mxu0 %v1445
  %1993 = vmatprep.subr.bf16.mxu0 0
  %1994 = vmatpush1.bf16.msra.mxu0 %v1446
  %1995 = vmatprep.subr.bf16.mxu0 0
  %1996 = vmatpush1.bf16.msra.mxu0 %v1447
  %1997 = vmatprep.subr.bf16.mxu0 0
  %1998 = vmatpush1.bf16.msra.mxu0 %v1448
  %1999 = vmatprep.subr.bf16.mxu0 0
  %2000 = vmatpush1.bf16.msra.mxu0 %v1449
  %2001 = vmatprep.subr.bf16.mxu0 0
  %2002 = vmatpush1.bf16.msra.mxu0 %v1450
  %2003 = vmatprep.subr.bf16.mxu0 0
  %2004 = vmatpush1.bf16.msra.mxu0 %v1451
  %2005 = vmatprep.subr.bf16.mxu0 0
  %2006 = vmatpush1.bf16.msra.mxu0 %v1452
  %2007 = vmatprep.subr.bf16.mxu0 0
  %2008 = vmatpush1.bf16.msra.mxu0 %v1453
  %2009 = vmatprep.subr.bf16.mxu0 0
  %2010 = vmatpush1.bf16.msra.mxu0 %v1454
  %2011 = vmatprep.subr.bf16.mxu0 0
  %2012 = vmatpush1.bf16.msra.mxu0 %v1455
  %2013 = vmatprep.subr.bf16.mxu0 0
  %2014 = vmatpush1.bf16.msra.mxu0 %v1456
  %2015 = vmatprep.subr.bf16.mxu0 0
  %2016 = vmatpush1.bf16.msra.mxu0 %v1457
  %2017 = vmatprep.subr.bf16.mxu0 0
  %2018 = vmatpush1.bf16.msra.mxu0 %v1458
  %2019 = vmatprep.subr.bf16.mxu0 0
  %2020 = vmatpush1.bf16.msra.mxu0 %v1459
  %2021 = vmatprep.subr.bf16.mxu0 0
  %2022 = vmatpush1.bf16.msra.mxu0 %v1460
  %2023 = vmatprep.mubr.bf16.mxu0 %v529
  %2024 = vmatmul.mubr.bf16.gmra.mrb[0].mxu0 %v528
  %v2025 = vpop.f32.mrb[0].mxu0
  %v2026 = vadd.f32 %v1985, %v2025
  %v2027 = vpop.f32.mrb[0].mxu0
  %v2028 = vpop.f32.mrb[0].mxu0
  %v2029 = vadd.f32 %v1988, %v2028
  %v2030 = vpop.f32.mrb[0].mxu0
  %2031 = vdwg.mxu0
  %2032 = vmatprep.subr.bf16.mxu0 0
  %2033 = vmatpush1.bf16.msra.mxu0 %v1461
  %2034 = vmatprep.subr.bf16.mxu0 0
  %2035 = vmatpush1.bf16.msra.mxu0 %v1462
  %2036 = vmatprep.subr.bf16.mxu0 0
  %2037 = vmatpush1.bf16.msra.mxu0 %v1463
  %2038 = vmatprep.subr.bf16.mxu0 0
  %2039 = vmatpush1.bf16.msra.mxu0 %v1464
  %2040 = vmatprep.subr.bf16.mxu0 0
  %2041 = vmatpush1.bf16.msra.mxu0 %v1465
  %2042 = vmatprep.subr.bf16.mxu0 0
  %2043 = vmatpush1.bf16.msra.mxu0 %v1466
  %2044 = vmatprep.subr.bf16.mxu0 0
  %2045 = vmatpush1.bf16.msra.mxu0 %v1467
  %2046 = vmatprep.subr.bf16.mxu0 0
  %2047 = vmatpush1.bf16.msra.mxu0 %v1468
  %2048 = vmatprep.subr.bf16.mxu0 0
  %2049 = vmatpush1.bf16.msra.mxu0 %v1469
  %2050 = vmatprep.subr.bf16.mxu0 0
  %2051 = vmatpush1.bf16.msra.mxu0 %v1470
  %2052 = vmatprep.subr.bf16.mxu0 0
  %2053 = vmatpush1.bf16.msra.mxu0 %v1471
  %2054 = vmatprep.subr.bf16.mxu0 0
  %2055 = vmatpush1.bf16.msra.mxu0 %v1472
  %2056 = vmatprep.subr.bf16.mxu0 0
  %2057 = vmatpush1.bf16.msra.mxu0 %v1473
  %2058 = vmatprep.subr.bf16.mxu0 0
  %2059 = vmatpush1.bf16.msra.mxu0 %v1474
  %2060 = vmatprep.subr.bf16.mxu0 0
  %2061 = vmatpush1.bf16.msra.mxu0 %v1475
  %2062 = vmatprep.subr.bf16.mxu0 0
  %2063 = vmatpush1.bf16.msra.mxu0 %v1476
  %2064 = vmatprep.mubr.bf16.mxu0 %v531
  %2065 = vmatmul.mubr.bf16.gmra.mrb[0].mxu0 %v530
  %v2066 = vpop.f32.mrb[0].mxu0
  %v2067 = vadd.f32 %v2026, %v2066
  %v2068 = vpop.f32.mrb[0].mxu0
  %v2069 = vpop.f32.mrb[0].mxu0
  %v2070 = vadd.f32 %v2029, %v2069
  %v2071 = vpop.f32.mrb[0].mxu0
  %2072 = vdwg.mxu0
  %2073 = vmatprep.subr.bf16.mxu0 0
  %2074 = vmatpush1.bf16.msra.mxu0 %v1477
  %2075 = vmatprep.subr.bf16.mxu0 0
  %2076 = vmatpush1.bf16.msra.mxu0 %v1478
  %2077 = vmatprep.subr.bf16.mxu0 0
  %2078 = vmatpush1.bf16.msra.mxu0 %v1479
  %2079 = vmatprep.subr.bf16.mxu0 0
  %2080 = vmatpush1.bf16.msra.mxu0 %v1480
  %2081 = vmatprep.subr.bf16.mxu0 0
  %2082 = vmatpush1.bf16.msra.mxu0 %v1481
  %2083 = vmatprep.subr.bf16.mxu0 0
  %2084 = vmatpush1.bf16.msra.mxu0 %v1482
  %2085 = vmatprep.subr.bf16.mxu0 0
  %2086 = vmatpush1.bf16.msra.mxu0 %v1483
  %2087 = vmatprep.subr.bf16.mxu0 0
  %2088 = vmatpush1.bf16.msra.mxu0 %v1484
  %2089 = vmatprep.subr.bf16.mxu0 0
  %2090 = vmatpush1.bf16.msra.mxu0 %v1485
  %2091 = vmatprep.subr.bf16.mxu0 0
  %2092 = vmatpush1.bf16.msra.mxu0 %v1486
  %2093 = vmatprep.subr.bf16.mxu0 0
  %2094 = vmatpush1.bf16.msra.mxu0 %v1487
  %2095 = vmatprep.subr.bf16.mxu0 0
  %2096 = vmatpush1.bf16.msra.mxu0 %v1488
  %2097 = vmatprep.subr.bf16.mxu0 0
  %2098 = vmatpush1.bf16.msra.mxu0 %v1489
  %2099 = vmatprep.subr.bf16.mxu0 0
  %2100 = vmatpush1.bf16.msra.mxu0 %v1490
  %2101 = vmatprep.subr.bf16.mxu0 0
  %2102 = vmatpush1.bf16.msra.mxu0 %v1491
  %2103 = vmatprep.subr.bf16.mxu0 0
  %2104 = vmatpush1.bf16.msra.mxu0 %v1492
  %2105 = vmatprep.mubr.bf16.mxu0 %v533
  %2106 = vmatmul.mubr.bf16.gmra.mrb[0].mxu0 %v532
  %v2107 = vpop.f32.mrb[0].mxu0
  %v2108 = vadd.f32 %v2067, %v2107
  %v2109 = vpop.f32.mrb[0].mxu0
  %v2110 = vpop.f32.mrb[0].mxu0
  %v2111 = vadd.f32 %v2070, %v2110
  %v2112 = vpop.f32.mrb[0].mxu0
  %2113 = vdwg.mxu0
  %2114 = vmatprep.subr.bf16.mxu0 0
  %2115 = vmatpush1.bf16.msra.mxu0 %v1493
  %2116 = vmatprep.subr.bf16.mxu0 0
  %2117 = vmatpush1.bf16.msra.mxu0 %v1494
  %2118 = vmatprep.subr.bf16.mxu0 0
  %2119 = vmatpush1.bf16.msra.mxu0 %v1495
  %2120 = vmatprep.subr.bf16.mxu0 0
  %2121 = vmatpush1.bf16.msra.mxu0 %v1496
  %2122 = vmatprep.subr.bf16.mxu0 0
  %2123 = vmatpush1.bf16.msra.mxu0 %v1497
  %2124 = vmatprep.subr.bf16.mxu0 0
  %2125 = vmatpush1.bf16.msra.mxu0 %v1498
  %2126 = vmatprep.subr.bf16.mxu0 0
  %2127 = vmatpush1.bf16.msra.mxu0 %v1499
  %2128 = vmatprep.subr.bf16.mxu0 0
  %2129 = vmatpush1.bf16.msra.mxu0 %v1500
  %2130 = vmatprep.subr.bf16.mxu0 0
  %2131 = vmatpush1.bf16.msra.mxu0 %v1501
  %2132 = vmatprep.subr.bf16.mxu0 0
  %2133 = vmatpush1.bf16.msra.mxu0 %v1502
  %2134 = vmatprep.subr.bf16.mxu0 0
  %2135 = vmatpush1.bf16.msra.mxu0 %v1503
  %2136 = vmatprep.subr.bf16.mxu0 0
  %2137 = vmatpush1.bf16.msra.mxu0 %v1504
  %2138 = vmatprep.subr.bf16.mxu0 0
  %2139 = vmatpush1.bf16.msra.mxu0 %v1505
  %2140 = vmatprep.subr.bf16.mxu0 0
  %2141 = vmatpush1.bf16.msra.mxu0 %v1506
  %2142 = vmatprep.subr.bf16.mxu0 0
  %2143 = vmatpush1.bf16.msra.mxu0 %v1507
  %2144 = vmatprep.subr.bf16.mxu0 0
  %2145 = vmatpush1.bf16.msra.mxu0 %v1508
  %2146 = vmatprep.mubr.bf16.mxu0 %v535
  %2147 = vmatmul.mubr.bf16.gmra.mrb[0].mxu0 %v534
  %v2148 = vpop.f32.mrb[0].mxu0
  %v2149 = vadd.f32 %v2108, %v2148
  %v2150 = vpop.f32.mrb[0].mxu0
  %v2151 = vpop.f32.mrb[0].mxu0
  %v2152 = vadd.f32 %v2111, %v2151
  %v2153 = vpop.f32.mrb[0].mxu0
  %2154 = vdwg.mxu0
  %2155 = vmatprep.subr.bf16.mxu0 0
  %2156 = vmatpush1.bf16.msra.mxu0 %v1509
  %2157 = vmatprep.subr.bf16.mxu0 0
  %2158 = vmatpush1.bf16.msra.mxu0 %v1510
  %2159 = vmatprep.subr.bf16.mxu0 0
  %2160 = vmatpush1.bf16.msra.mxu0 %v1511
  %2161 = vmatprep.subr.bf16.mxu0 0
  %2162 = vmatpush1.bf16.msra.mxu0 %v1512
  %2163 = vmatprep.subr.bf16.mxu0 0
  %2164 = vmatpush1.bf16.msra.mxu0 %v1513
  %2165 = vmatprep.subr.bf16.mxu0 0
  %2166 = vmatpush1.bf16.msra.mxu0 %v1514
  %2167 = vmatprep.subr.bf16.mxu0 0
  %2168 = vmatpush1.bf16.msra.mxu0 %v1515
  %2169 = vmatprep.subr.bf16.mxu0 0
  %2170 = vmatpush1.bf16.msra.mxu0 %v1516
  %2171 = vmatprep.subr.bf16.mxu0 0
  %2172 = vmatpush1.bf16.msra.mxu0 %v1517
  %2173 = vmatprep.subr.bf16.mxu0 0
  %2174 = vmatpush1.bf16.msra.mxu0 %v1518
  %2175 = vmatprep.subr.bf16.mxu0 0
  %2176 = vmatpush1.bf16.msra.mxu0 %v1519
  %2177 = vmatprep.subr.bf16.mxu0 0
  %2178 = vmatpush1.bf16.msra.mxu0 %v1520
  %2179 = vmatprep.subr.bf16.mxu0 0
  %2180 = vmatpush1.bf16.msra.mxu0 %v1521
  %2181 = vmatprep.subr.bf16.mxu0 0
  %2182 = vmatpush1.bf16.msra.mxu0 %v1522
  %2183 = vmatprep.subr.bf16.mxu0 0
  %2184 = vmatpush1.bf16.msra.mxu0 %v1523
  %2185 = vmatprep.subr.bf16.mxu0 0
  %2186 = vmatpush1.bf16.msra.mxu0 %v1524
  %2187 = vmatprep.mubr.bf16.mxu0 %v537
  %2188 = vmatmul.mubr.bf16.gmra.mrb[0].mxu0 %v536
  %v2189 = vpop.f32.mrb[0].mxu0
  %v2190 = vadd.f32 %v2149, %v2189
  %v2191 = vpop.f32.mrb[0].mxu0
  %v2192 = vpop.f32.mrb[0].mxu0
  %v2193 = vadd.f32 %v2152, %v2192
  %v2194 = vpop.f32.mrb[0].mxu0
  %2195 = vdwg.mxu0
  %2196 = vmatprep.subr.bf16.mxu0 0
  %2197 = vmatpush1.bf16.msra.mxu0 %v1525
  %2198 = vmatprep.subr.bf16.mxu0 0
  %2199 = vmatpush1.bf16.msra.mxu0 %v1526
  %2200 = vmatprep.subr.bf16.mxu0 0
  %2201 = vmatpush1.bf16.msra.mxu0 %v1527
  %2202 = vmatprep.subr.bf16.mxu0 0
  %2203 = vmatpush1.bf16.msra.mxu0 %v1528
  %2204 = vmatprep.subr.bf16.mxu0 0
  %2205 = vmatpush1.bf16.msra.mxu0 %v1529
  %2206 = vmatprep.subr.bf16.mxu0 0
  %2207 = vmatpush1.bf16.msra.mxu0 %v1530
  %2208 = vmatprep.subr.bf16.mxu0 0
  %2209 = vmatpush1.bf16.msra.mxu0 %v1531
  %2210 = vmatprep.subr.bf16.mxu0 0
  %2211 = vmatpush1.bf16.msra.mxu0 %v1532
  %2212 = vmatprep.subr.bf16.mxu0 0
  %2213 = vmatpush1.bf16.msra.mxu0 %v1533
  %2214 = vmatprep.subr.bf16.mxu0 0
  %2215 = vmatpush1.bf16.msra.mxu0 %v1534
  %2216 = vmatprep.subr.bf16.mxu0 0
  %2217 = vmatpush1.bf16.msra.mxu0 %v1535
  %2218 = vmatprep.subr.bf16.mxu0 0
  %2219 = vmatpush1.bf16.msra.mxu0 %v1536
  %2220 = vmatprep.subr.bf16.mxu0 0
  %2221 = vmatpush1.bf16.msra.mxu0 %v1537
  %2222 = vmatprep.subr.bf16.mxu0 0
  %2223 = vmatpush1.bf16.msra.mxu0 %v1538
  %2224 = vmatprep.subr.bf16.mxu0 0
  %2225 = vmatpush1.bf16.msra.mxu0 %v1539
  %2226 = vmatprep.subr.bf16.mxu0 0
  %2227 = vmatpush1.bf16.msra.mxu0 %v1540
  %2228 = vmatprep.mubr.bf16.mxu0 %v539
  %2229 = vmatmul.mubr.bf16.gmra.mrb[0].mxu0 %v538
  %v2230 = vpop.f32.mrb[0].mxu0
  %v2231 = vadd.f32 %v2190, %v2230
  %v2232 = vpop.f32.mrb[0].mxu0
  %v2233 = vpop.f32.mrb[0].mxu0
  %v2234 = vadd.f32 %v2193, %v2233
  %v2235 = vpop.f32.mrb[0].mxu0
  %2236 = vdwg.mxu0
  %2237 = vmatprep.subr.bf16.mxu0 0
  %2238 = vmatpush1.bf16.msra.mxu0 %v1541
  %2239 = vmatprep.subr.bf16.mxu0 0
  %2240 = vmatpush1.bf16.msra.mxu0 %v1542
  %2241 = vmatprep.subr.bf16.mxu0 0
  %2242 = vmatpush1.bf16.msra.mxu0 %v1543
  %2243 = vmatprep.subr.bf16.mxu0 0
  %2244 = vmatpush1.bf16.msra.mxu0 %v1544
  %2245 = vmatprep.subr.bf16.mxu0 0
  %2246 = vmatpush1.bf16.msra.mxu0 0
  %2247 = vmatprep.subr.bf16.mxu0 0
  %2248 = vmatpush1.bf16.msra.mxu0 0
  %2249 = vmatprep.subr.bf16.mxu0 0
  %2250 = vmatpush1.bf16.msra.mxu0 0
  %2251 = vmatprep.subr.bf16.mxu0 0
  %2252 = vmatpush1.bf16.msra.mxu0 0
  %2253 = vmatprep.subr.bf16.mxu0 0
  %2254 = vmatpush1.bf16.msra.mxu0 0
  %2255 = vmatprep.subr.bf16.mxu0 0
  %2256 = vmatpush1.bf16.msra.mxu0 0
  %2257 = vmatprep.subr.bf16.mxu0 0
  %2258 = vmatpush1.bf16.msra.mxu0 0
  %2259 = vmatprep.subr.bf16.mxu0 0
  %2260 = vmatpush1.bf16.msra.mxu0 0
  %2261 = vmatprep.subr.bf16.mxu0 0
  %2262 = vmatpush1.bf16.msra.mxu0 0
  %2263 = vmatprep.subr.bf16.mxu0 0
  %2264 = vmatpush1.bf16.msra.mxu0 0
  %2265 = vmatprep.subr.bf16.mxu0 0
  %2266 = vmatpush1.bf16.msra.mxu0 0
  %2267 = vmatprep.subr.bf16.mxu0 0
  %2268 = vmatpush1.bf16.msra.mxu0 0
  %2269 = vmatprep.mubr.bf16.mxu0 0
  %2270 = vmatmul.mubr.bf16.gmra.mrb[0].mxu0 %v1743
  %v2271 = vpop.f32.mrb[0].mxu0
  %v2272 = vadd.f32 %v2231, %v2271
  %v2273 = vpop.f32.mrb[0].mxu0
  %v2274 = vpop.f32.mrb[0].mxu0
  %v2275 = vadd.f32 %v2234, %v2274
  %v2276 = vpop.f32.mrb[0].mxu0
  %2277 = vdwg.mxu0
  %v2278 = vmax.f32 %v2272, 0.0
  %v2279 = vmax.f32 %v2275, 0.0
  %v2280 = vpack.c.bf16 %v2279, %v2278
  %v2282 = vunpack.c.l.b16 %v2280
  %v2283 = vunpack.c.h.b16 %v2280
  %v2284 = vpack.c.b16 %v2282, %v2282
  %v2285 = vpack.c.b16 %v2283, %v2283
  %2288 = vst [vmem:[%s3] sm:$0xf] %v2284
  %2289 = vst [vmem:[%s3 + $0x4] sm:$0xf] %v2285
  // Predicated region
  $region14: #{cnn_forward.6} parent=0 // pred_check
    _
  $region15: #{cnn_forward.6} parent=0 // pred_check_branch
    %2291 = sbr.rel (0) target = $region17
  $region16: #{cnn_forward.6} parent=0 // pred_region
    _
  $region17: #{cnn_forward.6} parent=0 // pred_fallthru
    _
  // Predicated region
  $region18: #{cnn_forward.6} parent=0 // pred_check
    _
  $region19: #{cnn_forward.6} parent=0 // pred_check_branch
    %2293 = sbr.rel (0) target = $region21
  $region20: #{cnn_forward.6} parent=0 // pred_region
    _
  $region21: #{cnn_forward.6} parent=0 // pred_fallthru
    _

</llo_original>
